<compile_context>
chip_gen: v6e
topology: v6e:2x2x1
jax: 0.10.0
libtpu: 0.0.40
codegen_flags: <defaults>
</compile_context>

<pallas_src>
import numpy as np
import jax
import jax.numpy as jnp
from jax.experimental import pallas as pl
from jax.experimental.pallas import tpu as pltpu


# ----------------------------------------------------------------------------
# Host-side constant matrices (numpy float64; cast to f32 when packed)
# ----------------------------------------------------------------------------
def interp_matrix(l_in, l_out):
    """Matrix form of F.interpolate(mode='linear', align_corners=False)."""
    m = np.zeros((l_out, l_in), dtype=np.float64)
    if l_in == l_out:
        np.fill_diagonal(m, 1.0)
        return m
    scale = l_in / l_out
    for j in range(l_out):
        src = max((j + 0.5) * scale - 0.5, 0.0)
        i0 = min(int(np.floor(src)), l_in - 1)
        i1 = min(i0 + 1, l_in - 1)
        lam = src - i0
        m[j, i0] += 1.0 - lam
        m[j, i1] += lam
    return m


def adaptive_avg_pool_matrix(l_in, s):
    """Matrix form of nn.AdaptiveAvgPool1d(s)."""
    m = np.zeros((s, l_in), dtype=np.float64)
    for i in range(s):
        start = (i * l_in) // s
        end = -(-((i + 1) * l_in) // s)  # ceil
        m[i, start:end] = 1.0 / (end - start)
    return m


def shift_matrix(l, k):
    """S[i, j] = 1 iff j == i + k  (so (S @ y)[i] = y[i+k], zero-padded OOB)."""
    m = np.zeros((l, l), dtype=np.float64)
    for i in range(l):
        j = i + k
        if 0 <= j < l:
            m[i, j] = 1.0
    return m


# ----------------------------------------------------------------------------
# Constant bank: every weight / fold matrix packed into one (rows, 128) array
# ----------------------------------------------------------------------------
_LANES = 128


def _round8(n):
    return ((n + 7) // 8) * 8


class _ConstBank:
    def __init__(self):
        self._blocks = []      # (row_offset, 2-D numpy array)
        self.offsets = {}      # name -> (row_offset, rows, cols)
        self._rows = 0

    def add(self, name, arr):
        arr = np.asarray(arr, np.float64)
        if arr.ndim == 1:
            arr = arr[None, :]
        assert arr.ndim == 2 and arr.shape[1] <= _LANES, (name, arr.shape)
        off = self._rows
        self.offsets[name] = (off, int(arr.shape[0]), int(arr.shape[1]))
        self._blocks.append((off, arr))
        self._rows += _round8(arr.shape[0])   # keep every block sublane-aligned

    def build(self):
        total = _round8(max(self._rows, 8))
        bank = np.zeros((total, _LANES), np.float32)
        for off, arr in self._blocks:
            bank[off:off + arr.shape[0], :arr.shape[1]] = arr.astype(np.float32)
        return bank


def pack_params(params, lengths, pool_scales, d_model, pred_len):
    """Host-side (numpy, one-time) constant folding + packing into one bank."""
    period_num = len(lengths)
    n_lat = period_num - 1
    L3 = lengths[-1]
    D = d_model
    S = len(pool_scales)
    d_out = int(np.asarray(params["conv_seg"][0]).shape[2])
    P = int(pred_len)
    assert L3 * P <= _LANES, "tail fold needs L3*pred_len <= 128"
    assert 3 * D <= _LANES and (S + 1) * D <= 2 * _LANES

    g = lambda a: np.asarray(a, np.float64)
    bank = _ConstBank()

    # lateral 1x1 convs (row-stacked weights, separate bias rows)
    bank.add("w_lat", np.concatenate([g(w)[0] for w, _ in params["lateral"]], axis=0))
    for i, (_, b) in enumerate(params["lateral"]):
        bank.add(f"b_lat{i}", g(b))

    # PPM: AdaptiveAvgPool + interp folded to M_s ; 1x1 conv weights lane-stacked
    bank.add("w_ppm", np.concatenate([g(w)[0] for w, _ in params["ppm"]], axis=1))  # (D, S*D)
    bank.add("m_ppm", np.concatenate(
        [interp_matrix(s, L3) @ adaptive_avg_pool_matrix(L3, s) for s in pool_scales],
        axis=0))                                                                     # (S*L3, L3)

    # bottleneck K=3 conv: tap-stacked weight (cin, 3D); branch biases + conv
    # bias folded host-side into one tap-bias row (exact incl. zero padding,
    # because the padded tap rows are zeroed by the shift matrices).
    w_bott, b_bott = params["bottleneck"]
    w_bott_st = g(w_bott).transpose(1, 0, 2).reshape((S + 1) * D, 3 * D)
    psp_bias = np.zeros(((S + 1) * D,))
    for s, (_, b) in enumerate(params["ppm"]):
        psp_bias[(s + 1) * D:(s + 2) * D] = g(b)
    tb_bott = psp_bias @ w_bott_st
    tb_bott[D:2 * D] += g(b_bott)
    bank.add("w_bott", w_bott_st)
    bank.add("tb_bott", tb_bott)

    # +/-1 shift matrices for the padded K=3 convs at length L3
    bank.add("s_prev", shift_matrix(L3, -1))   # (S_prev @ y)[l] = y[l-1]
    bank.add("s_next", shift_matrix(L3, +1))   # (S_next @ y)[l] = y[l+1]

    # top-down interpolation matrices
    for i in range(n_lat):
        bank.add(f"m_td{i}", interp_matrix(lengths[i], lengths[i + 1]))

    # FPN K=3 convs: tap-stacked weights; shift folded into the resize-to-L3
    bank.add("w_fpn", np.concatenate(
        [g(w).transpose(1, 0, 2).reshape(D, 3 * D) for w, _ in params["fpn"]], axis=0))
    for i in range(n_lat):
        up = interp_matrix(lengths[i], L3)
        bank.add(f"r_fpn{i}", np.concatenate(
            [up @ shift_matrix(lengths[i], -1), up, up @ shift_matrix(lengths[i], +1)],
            axis=0))                                                                  # (3*L3, L_i)

    # fpn_bottleneck K=3 conv (FPN branch biases + its own bias folded in)
    w_fb, b_fb = params["fpn_bottleneck"]
    w_fb_st = g(w_fb).transpose(1, 0, 2).reshape(period_num * D, 3 * D)
    fpn_bias = np.zeros((period_num * D,))
    for i, (_, b) in enumerate(params["fpn"]):
        fpn_bias[i * D:(i + 1) * D] = g(b)
    tb_fb = fpn_bias @ w_fb_st
    tb_fb[D:2 * D] += g(b_fb)
    bank.add("w_fb", w_fb_st)
    bank.add("tb_fb", tb_fb)

    # tail: conv_seg + Flatten(-2) + output Linear folded into
    #   z = feat @ w_tail        (L3, L3*P)
    #   out[p] = sum_l z[l, l*P+p] + b_tail[p]
    w_seg = g(params["conv_seg"][0])[0]                  # (D, d_out)
    b_seg = g(params["conv_seg"][1])                     # (d_out,)
    w_out = g(params["out_w"]).reshape(L3, d_out, P)     # Flatten(-2) is token-major
    bank.add("w_tail", np.einsum("cd,ldp->clp", w_seg, w_out).reshape(D, L3 * P))
    l_idx = np.arange(L3)[:, None]
    q_idx = np.arange(L3 * P)[None, :]
    bank.add("mask_diag", (q_idx // P == l_idx).astype(np.float64))                  # (L3, L3*P)
    bank.add("rep_fold", (np.arange(L3 * P)[:, None] % P ==
                          np.arange(P)[None, :]).astype(np.float64))                 # (L3*P, P)
    bank.add("b_tail", g(params["out_b"]) + np.einsum("d,ldp->p", b_seg, w_out))

    return jnp.asarray(bank.build()), bank.offsets


# ----------------------------------------------------------------------------
# Fused Pallas kernel
# ----------------------------------------------------------------------------
def _make_kernel(offsets, lengths, D, S, P):
    period_num = len(lengths)
    n_lat = period_num - 1
    L3 = lengths[-1]
    f32 = jnp.float32

    def kernel(*refs):
        x_refs = refs[:period_num]           # (1, L_i, D) each
        bank = refs[period_num]              # (rows, 128) constant bank
        o_ref = refs[period_num + 1]         # (1, 1, P)

        def const(name):
            off, r, c = offsets[name]
            return bank[off:off + r, 0:c]

        def const_rows(name, r0, r1):
            off, _, c = offsets[name]
            return bank[off + r0:off + r1, 0:c]

        def mm(a, b):
            return jnp.dot(a, b, preferred_element_type=f32)

        xs = [x_refs[i][0] for i in range(period_num)]          # (L_i, D)

        s_prev = const("s_prev")
        s_next = const("s_next")

        def conv3_accum(branches, w_name, tb_name):
            # K=3, padding=1 conv over the (virtual) channel concatenation of
            # `branches`: per-branch matmul accumulation against row blocks of
            # the tap-stacked weight; accumulation seeded by the folded tap-bias
            # row (no zeros, no concatenate).
            a = const(tb_name)                                   # (1, 3D)
            for j, br in enumerate(branches):
                a = a + mm(br, const_rows(w_name, j * D, (j + 1) * D))
            return (mm(s_prev, a[:, 0:D]) + a[:, D:2 * D]
                    + mm(s_next, a[:, 2 * D:3 * D]))

        # ---- lateral 1x1 convs on the coarser scales -------------------------
        lats = [mm(xs[i], const_rows("w_lat", i * D, (i + 1) * D)) + const(f"b_lat{i}")
                for i in range(n_lat)]

        # ---- PSP head on the finest scale (pool+interp folded into m_ppm) ----
        x_fine = xs[-1]                                          # (L3, D)
        proj = mm(x_fine, const("w_ppm"))                        # (L3, S*D)
        branches = [x_fine] + [
            mm(const_rows("m_ppm", s * L3, (s + 1) * L3), proj[:, s * D:(s + 1) * D])
            for s in range(S)]
        lats.append(conv3_accum(branches, "w_bott", "tb_bott"))  # psp_out (L3, D)

        # ---- top-down accumulation (coarse -> fine, sequential) --------------
        for i in range(n_lat):
            lats[i + 1] = lats[i + 1] + mm(const(f"m_td{i}"), lats[i])

        # ---- FPN K=3 convs (tap-stacked) with resize-to-L3 folded into r_fpn -
        fpn = []
        for i in range(n_lat):
            a = mm(lats[i], const_rows("w_fpn", i * D, (i + 1) * D))     # (L_i, 3D)
            acc = mm(const_rows(f"r_fpn{i}", 0, L3), a[:, 0:D])
            acc = acc + mm(const_rows(f"r_fpn{i}", L3, 2 * L3), a[:, D:2 * D])
            acc = acc + mm(const_rows(f"r_fpn{i}", 2 * L3, 3 * L3), a[:, 2 * D:3 * D])
            fpn.append(acc)
        fpn.append(lats[-1])

        # ---- fpn_bottleneck (K=3) + dropout (identity) ------------------------
        feat = conv3_accum(fpn, "w_fb", "tb_fb")                 # (L3, D)

        # ---- conv_seg + Flatten(-2) + output Linear, fully folded -------------
        z = mm(feat, const("w_tail")) * const("mask_diag")       # (L3, L3*P)
        out = jnp.sum(mm(z, const("rep_fold")), axis=0, keepdims=True) + const("b_tail")
        o_ref[0] = out.astype(o_ref.dtype)

    return kernel


# ----------------------------------------------------------------------------
# Wrapper: single pallas_call, batch on a "parallel" grid axis (v7x megacore)
# ----------------------------------------------------------------------------
def make_forward(offsets, lengths, d_model, n_scales, pred_len, bank_shape):
    period_num = len(lengths)
    kernel = _make_kernel(offsets, lengths, d_model, n_scales, pred_len)

    @jax.jit
    def forward(inputs, bank):
        B = inputs[0].shape[0]
        in_specs = [pl.BlockSpec((1, lengths[i], d_model), lambda b: (b, 0, 0))
                    for i in range(period_num)]
        in_specs.append(pl.BlockSpec(bank_shape, lambda b: (0, 0)))   # one big constant DMA
        out = pl.pallas_call(
            kernel,
            out_shape=jax.ShapeDtypeStruct((B, 1, pred_len), jnp.float32),
            grid=(B,),
            in_specs=in_specs,
            out_specs=pl.BlockSpec((1, 1, pred_len), lambda b: (b, 0, 0)),
            compiler_params=pltpu.CompilerParams(
                dimension_semantics=("parallel",),   # batch -> second TC on v7x
                vmem_limit_bytes=32 * 1024 * 1024,
            ),
        )(*inputs, bank)
        return out.reshape(B, pred_len)

    return forward


# ----------------------------------------------------------------------------
# Parameters (PyTorch-equivalent initialisation)
# ----------------------------------------------------------------------------
def init_conv(key, K, cin, cout):
    k1, k2 = jax.random.split(key)
    bound = 1.0 / np.sqrt(cin * K)
    w = jax.random.uniform(k1, (K, cin, cout), jnp.float32, -bound, bound)
    b = jax.random.uniform(k2, (cout,), jnp.float32, -bound, bound)
    return w, b


def init_params(key, token_num_max, d_model, pred_len, pool_scales, period_num):
    d_out = 8
    keys = jax.random.split(key, 32)
    ki = iter(range(32))
    params = {
        "ppm": [init_conv(keys[next(ki)], 1, d_model, d_model) for _ in pool_scales],
        "bottleneck": init_conv(keys[next(ki)], 3, (len(pool_scales) + 1) * d_model, d_model),
        "lateral": [init_conv(keys[next(ki)], 1, d_model, d_model) for _ in range(period_num - 1)],
        "fpn": [init_conv(keys[next(ki)], 3, d_model, d_model) for _ in range(period_num - 1)],
        "fpn_bottleneck": init_conv(keys[next(ki)], 3, period_num * d_model, d_model),
        "conv_seg": init_conv(keys[next(ki)], 1, d_model, d_out),
    }
    k1, k2 = jax.random.split(keys[next(ki)])
    f_in = token_num_max * d_out
    bound = 1.0 / np.sqrt(f_in)
    params["out_w"] = jax.random.uniform(k1, (f_in, pred_len), jnp.float32, -bound, bound)
    params["out_b"] = jax.random.uniform(k2, (pred_len,), jnp.float32, -bound, bound)
    return params


# ----------------------------------------------------------------------------
# Pure-numpy float64 reference (original op-by-op structure), for validation
# ----------------------------------------------------------------------------
def _conv1d_ref(x, w, b, pad):
    K = w.shape[0]
    L = x.shape[1]
    xp = np.pad(x, ((0, 0), (pad, pad), (0, 0)))
    L_out = L + 2 * pad - K + 1
    out = np.zeros((x.shape[0], L_out, w.shape[2]))
    for k in range(K):
        out += np.einsum('blc,cd->bld', xp[:, k:k + L_out, :], w[k])
    return out + b


def reference_forward(inputs, params, pool_scales):
    xs = [np.asarray(x, np.float64) for x in inputs]
    get = lambda p: (np.asarray(p[0], np.float64), np.asarray(p[1], np.float64))
    period_num = len(xs)
    L3 = xs[-1].shape[1]

    laterals = []
    for i in range(period_num - 1):
        w, b = get(params["lateral"][i])
        laterals.append(_conv1d_ref(xs[i], w, b, 0))

    x = xs[-1]
    psp_outs = [x]
    for si, s in enumerate(pool_scales):
        pooled = np.einsum('oi,bic->boc', adaptive_avg_pool_matrix(L3, s), x)
        w, b = get(params["ppm"][si])
        conv = _conv1d_ref(pooled, w, b, 0)
        psp_outs.append(np.einsum('oi,bic->boc', interp_matrix(s, L3), conv))
    psp_cat = np.concatenate(psp_outs, axis=-1)
    w, b = get(params["bottleneck"])
    laterals.append(_conv1d_ref(psp_cat, w, b, 1))

    for i in range(period_num - 1):
        m = interp_matrix(laterals[i].shape[1], laterals[i + 1].shape[1])
        laterals[i + 1] = laterals[i + 1] + np.einsum('oi,bic->boc', m, laterals[i])

    fpn = []
    for i in range(period_num - 1):
        w, b = get(params["fpn"][i])
        fpn.append(_conv1d_ref(laterals[i], w, b, 1))
    fpn.append(laterals[-1])
    for i in range(period_num - 1):
        m = interp_matrix(fpn[i].shape[1], L3)
        fpn[i] = np.einsum('oi,bic->boc', m, fpn[i])
    fpn_cat = np.concatenate(fpn, axis=-1)
    w, b = get(params["fpn_bottleneck"])
    feat = _conv1d_ref(fpn_cat, w, b, 1)
    w, b = get(params["conv_seg"])
    seasonal = _conv1d_ref(feat, w, b, 0)
    flat = seasonal.reshape(seasonal.shape[0], -1)   # token-major == Flatten(-2)
    return flat @ np.asarray(params["out_w"], np.float64) + np.asarray(params["out_b"], np.float64)


# ----------------------------------------------------------------------------
if __name__ == "__main__":
    token_num_max = 16
    d_model = 16
    pred_len = 8
    pool_scales = (1, 2, 3, 6)
    period_num = 4
    B = 2

    # multi-scale inputs, coarse -> fine; the last one has token_num_max tokens
    lengths = [token_num_max // (2 ** (period_num - 1 - i)) for i in range(period_num)]

    key = jax.random.PRNGKey(0)
    k_par, k_in = jax.random.split(key)
    params = init_params(k_par, token_num_max, d_model, pred_len, pool_scales, period_num)

    in_keys = jax.random.split(k_in, period_num)
    inputs = tuple(
        jax.random.normal(in_keys[i], (B, lengths[i], d_model), jnp.float32)
        for i in range(period_num)
    )

    # host-side (one-time) constant folding + packing
    bank, offsets = pack_params(params, lengths, pool_scales, d_model, pred_len)
    fwd = make_forward(offsets, lengths, d_model, len(pool_scales), pred_len, bank.shape)

    out = jax.block_until_ready(fwd(inputs, bank))

    assert out.shape == (B, pred_len), out.shape
    assert bool(jnp.all(jnp.isfinite(out)))

    ref = reference_forward([np.asarray(x) for x in inputs], params, pool_scales)
    np.testing.assert_allclose(np.asarray(out), ref, rtol=2e-2, atol=2e-2)

    print("KERNEL_OK")
</pallas_src>

<mosaic_0001>
module attributes {stable_mosaic.version = 11 : i64} {
  func.func @kernel(%arg0: i32, %arg1: memref<1x2x16xf32, #tpu.memory_space<vmem>>, %arg2: memref<1x4x16xf32, #tpu.memory_space<vmem>>, %arg3: memref<1x8x16xf32, #tpu.memory_space<vmem>>, %arg4: memref<1x16x16xf32, #tpu.memory_space<vmem>>, %arg5: memref<736x128xf32, #tpu.memory_space<vmem>>, %arg6: memref<1x1x8xf32, #tpu.memory_space<vmem>>) attributes {dimension_semantics = [#tpu.dimension_semantics<parallel>], iteration_bounds = array<i64: 2>, scalar_prefetch = 0 : i64, scratch_operands = 0 : i64, tpu.core_type = #tpu.core_type<tc>, window_params = [{transform_indices = @transform_0, window_bounds = array<i64: 1, 2, 16>}, {transform_indices = @transform_1, window_bounds = array<i64: 1, 4, 16>}, {transform_indices = @transform_2, window_bounds = array<i64: 1, 8, 16>}, {transform_indices = @transform_3, window_bounds = array<i64: 1, 16, 16>}, {pipeline_mode = #tpu.pipeline_mode<synchronous>, transform_indices = @transform_4, window_bounds = array<i64: 736, 128>}, {transform_indices = @transform_5, window_bounds = array<i64: 1, 1, 8>}]} {
    %c0 = arith.constant 0 : index
    %c0_0 = arith.constant 0 : index
    %c0_1 = arith.constant 0 : index
    %0 = vector.load %arg1[%c0, %c0_0, %c0_1] : memref<1x2x16xf32, #tpu.memory_space<vmem>>, vector<1x2x16xf32>
    %1 = vector.shape_cast %0 : vector<1x2x16xf32> to vector<2x16xf32>
    %c0_2 = arith.constant 0 : index
    %c0_3 = arith.constant 0 : index
    %c0_4 = arith.constant 0 : index
    %2 = vector.load %arg2[%c0_2, %c0_3, %c0_4] : memref<1x4x16xf32, #tpu.memory_space<vmem>>, vector<1x4x16xf32>
    %3 = vector.shape_cast %2 : vector<1x4x16xf32> to vector<4x16xf32>
    %c0_5 = arith.constant 0 : index
    %c0_6 = arith.constant 0 : index
    %c0_7 = arith.constant 0 : index
    %4 = vector.load %arg3[%c0_5, %c0_6, %c0_7] : memref<1x8x16xf32, #tpu.memory_space<vmem>>, vector<1x8x16xf32>
    %5 = vector.shape_cast %4 : vector<1x8x16xf32> to vector<8x16xf32>
    %c0_8 = arith.constant 0 : index
    %c0_9 = arith.constant 0 : index
    %c0_10 = arith.constant 0 : index
    %6 = vector.load %arg4[%c0_8, %c0_9, %c0_10] : memref<1x16x16xf32, #tpu.memory_space<vmem>>, vector<1x16x16xf32>
    %7 = vector.shape_cast %6 : vector<1x16x16xf32> to vector<16x16xf32>
    %c240 = arith.constant 240 : index
    %c0_11 = arith.constant 0 : index
    %8 = vector.load %arg5[%c240, %c0_11] : memref<736x128xf32, #tpu.memory_space<vmem>>, vector<16x16xf32>
    %c256 = arith.constant 256 : index
    %c0_12 = arith.constant 0 : index
    %9 = vector.load %arg5[%c256, %c0_12] : memref<736x128xf32, #tpu.memory_space<vmem>>, vector<16x16xf32>
    %c0_13 = arith.constant 0 : index
    %c0_14 = arith.constant 0 : index
    %10 = vector.load %arg5[%c0_13, %c0_14] : memref<736x128xf32, #tpu.memory_space<vmem>>, vector<16x16xf32>
    %cst = arith.constant dense<0.000000e+00> : vector<2x16xf32>
    %11 = tpu.matmul %1, %10, %cst {dimension_numbers = #tpu.dot_dimension_numbers<[1], [0], [0], [1], [0, 0, 1, 1], [], []>} : vector<2x16xf32>, vector<16x16xf32>, vector<2x16xf32> -> vector<2x16xf32>
    %c48 = arith.constant 48 : index
    %c0_15 = arith.constant 0 : index
    %12 = vector.load %arg5[%c48, %c0_15] : memref<736x128xf32, #tpu.memory_space<vmem>>, vector<1x16xf32>
    %13 = vector.broadcast %12 : vector<1x16xf32> to vector<2x16xf32>
    %14 = arith.addf %11, %13 : vector<2x16xf32>
    %c16 = arith.constant 16 : index
    %c0_16 = arith.constant 0 : index
    %15 = vector.load %arg5[%c16, %c0_16] : memref<736x128xf32, #tpu.memory_space<vmem>>, vector<16x16xf32>
    %cst_17 = arith.constant dense<0.000000e+00> : vector<4x16xf32>
    %16 = tpu.matmul %3, %15, %cst_17 {dimension_numbers = #tpu.dot_dimension_numbers<[1], [0], [0], [1], [0, 0, 1, 1], [], []>} : vector<4x16xf32>, vector<16x16xf32>, vector<4x16xf32> -> vector<4x16xf32>
    %c56 = arith.constant 56 : index
    %c0_18 = arith.constant 0 : index
    %17 = vector.load %arg5[%c56, %c0_18] : memref<736x128xf32, #tpu.memory_space<vmem>>, vector<1x16xf32>
    %18 = vector.broadcast %17 : vector<1x16xf32> to vector<4x16xf32>
    %19 = arith.addf %16, %18 : vector<4x16xf32>
    %c32 = arith.constant 32 : index
    %c0_19 = arith.constant 0 : index
    %20 = vector.load %arg5[%c32, %c0_19] : memref<736x128xf32, #tpu.memory_space<vmem>>, vector<16x16xf32>
    %cst_20 = arith.constant dense<0.000000e+00> : vector<8x16xf32>
    %21 = tpu.matmul %5, %20, %cst_20 {dimension_numbers = #tpu.dot_dimension_numbers<[1], [0], [0], [1], [0, 0, 1, 1], [], []>} : vector<8x16xf32>, vector<16x16xf32>, vector<8x16xf32> -> vector<8x16xf32>
    %c64 = arith.constant 64 : index
    %c0_21 = arith.constant 0 : index
    %22 = vector.load %arg5[%c64, %c0_21] : memref<736x128xf32, #tpu.memory_space<vmem>>, vector<1x16xf32>
    %23 = vector.broadcast %22 : vector<1x16xf32> to vector<8x16xf32>
    %24 = arith.addf %21, %23 : vector<8x16xf32>
    %c72 = arith.constant 72 : index
    %c0_22 = arith.constant 0 : index
    %25 = vector.load %arg5[%c72, %c0_22] : memref<736x128xf32, #tpu.memory_space<vmem>>, vector<16x64xf32>
    %cst_23 = arith.constant dense<0.000000e+00> : vector<16x64xf32>
    %26 = tpu.matmul %7, %25, %cst_23 {dimension_numbers = #tpu.dot_dimension_numbers<[1], [0], [0], [1], [0, 0, 1, 1], [], []>} : vector<16x16xf32>, vector<16x64xf32>, vector<16x64xf32> -> vector<16x64xf32>
    %c88 = arith.constant 88 : index
    %c0_24 = arith.constant 0 : index
    %27 = vector.load %arg5[%c88, %c0_24] : memref<736x128xf32, #tpu.memory_space<vmem>>, vector<16x16xf32>
    %28 = vector.extract_strided_slice %26 {offsets = [0, 0], sizes = [16, 16], strides = [1, 1]} : vector<16x64xf32> to vector<16x16xf32>
    %cst_25 = arith.constant dense<0.000000e+00> : vector<16x16xf32>
    %29 = tpu.matmul %27, %28, %cst_25 {dimension_numbers = #tpu.dot_dimension_numbers<[1], [0], [0], [1], [0, 0, 1, 1], [], []>} : vector<16x16xf32>, vector<16x16xf32>, vector<16x16xf32> -> vector<16x16xf32>
    %c104 = arith.constant 104 : index
    %c0_26 = arith.constant 0 : index
    %30 = vector.load %arg5[%c104, %c0_26] : memref<736x128xf32, #tpu.memory_space<vmem>>, vector<16x16xf32>
    %31 = vector.extract_strided_slice %26 {offsets = [0, 16], sizes = [16, 16], strides = [1, 1]} : vector<16x64xf32> to vector<16x16xf32>
    %cst_27 = arith.constant dense<0.000000e+00> : vector<16x16xf32>
    %32 = tpu.matmul %30, %31, %cst_27 {dimension_numbers = #tpu.dot_dimension_numbers<[1], [0], [0], [1], [0, 0, 1, 1], [], []>} : vector<16x16xf32>, vector<16x16xf32>, vector<16x16xf32> -> vector<16x16xf32>
    %c120 = arith.constant 120 : index
    %c0_28 = arith.constant 0 : index
    %33 = vector.load %arg5[%c120, %c0_28] : memref<736x128xf32, #tpu.memory_space<vmem>>, vector<16x16xf32>
    %34 = vector.extract_strided_slice %26 {offsets = [0, 32], sizes = [16, 16], strides = [1, 1]} : vector<16x64xf32> to vector<16x16xf32>
    %cst_29 = arith.constant dense<0.000000e+00> : vector<16x16xf32>
    %35 = tpu.matmul %33, %34, %cst_29 {dimension_numbers = #tpu.dot_dimension_numbers<[1], [0], [0], [1], [0, 0, 1, 1], [], []>} : vector<16x16xf32>, vector<16x16xf32>, vector<16x16xf32> -> vector<16x16xf32>
    %c136 = arith.constant 136 : index
    %c0_30 = arith.constant 0 : index
    %36 = vector.load %arg5[%c136, %c0_30] : memref<736x128xf32, #tpu.memory_space<vmem>>, vector<16x16xf32>
    %37 = vector.extract_strided_slice %26 {offsets = [0, 48], sizes = [16, 16], strides = [1, 1]} : vector<16x64xf32> to vector<16x16xf32>
    %cst_31 = arith.constant dense<0.000000e+00> : vector<16x16xf32>
    %38 = tpu.matmul %36, %37, %cst_31 {dimension_numbers = #tpu.dot_dimension_numbers<[1], [0], [0], [1], [0, 0, 1, 1], [], []>} : vector<16x16xf32>, vector<16x16xf32>, vector<16x16xf32> -> vector<16x16xf32>
    %c232 = arith.constant 232 : index
    %c0_32 = arith.constant 0 : index
    %39 = vector.load %arg5[%c232, %c0_32] : memref<736x128xf32, #tpu.memory_space<vmem>>, vector<1x48xf32>
    %c152 = arith.constant 152 : index
    %c0_33 = arith.constant 0 : index
    %40 = vector.load %arg5[%c152, %c0_33] : memref<736x128xf32, #tpu.memory_space<vmem>>, vector<16x48xf32>
    %cst_34 = arith.constant dense<0.000000e+00> : vector<16x48xf32>
    %41 = tpu.matmul %7, %40, %cst_34 {dimension_numbers = #tpu.dot_dimension_numbers<[1], [0], [0], [1], [0, 0, 1, 1], [], []>} : vector<16x16xf32>, vector<16x48xf32>, vector<16x48xf32> -> vector<16x48xf32>
    %42 = vector.broadcast %39 : vector<1x48xf32> to vector<16x48xf32>
    %43 = arith.addf %42, %41 : vector<16x48xf32>
    %c168 = arith.constant 168 : index
    %c0_35 = arith.constant 0 : index
    %44 = vector.load %arg5[%c168, %c0_35] : memref<736x128xf32, #tpu.memory_space<vmem>>, vector<16x48xf32>
    %cst_36 = arith.constant dense<0.000000e+00> : vector<16x48xf32>
    %45 = tpu.matmul %29, %44, %cst_36 {dimension_numbers = #tpu.dot_dimension_numbers<[1], [0], [0], [1], [0, 0, 1, 1], [], []>} : vector<16x16xf32>, vector<16x48xf32>, vector<16x48xf32> -> vector<16x48xf32>
    %46 = arith.addf %43, %45 : vector<16x48xf32>
    %c184 = arith.constant 184 : index
    %c0_37 = arith.constant 0 : index
    %47 = vector.load %arg5[%c184, %c0_37] : memref<736x128xf32, #tpu.memory_space<vmem>>, vector<16x48xf32>
    %cst_38 = arith.constant dense<0.000000e+00> : vector<16x48xf32>
    %48 = tpu.matmul %32, %47, %cst_38 {dimension_numbers = #tpu.dot_dimension_numbers<[1], [0], [0], [1], [0, 0, 1, 1], [], []>} : vector<16x16xf32>, vector<16x48xf32>, vector<16x48xf32> -> vector<16x48xf32>
    %49 = arith.addf %46, %48 : vector<16x48xf32>
    %c200 = arith.constant 200 : index
    %c0_39 = arith.constant 0 : index
    %50 = vector.load %arg5[%c200, %c0_39] : memref<736x128xf32, #tpu.memory_space<vmem>>, vector<16x48xf32>
    %cst_40 = arith.constant dense<0.000000e+00> : vector<16x48xf32>
    %51 = tpu.matmul %35, %50, %cst_40 {dimension_numbers = #tpu.dot_dimension_numbers<[1], [0], [0], [1], [0, 0, 1, 1], [], []>} : vector<16x16xf32>, vector<16x48xf32>, vector<16x48xf32> -> vector<16x48xf32>
    %52 = arith.addf %49, %51 : vector<16x48xf32>
    %c216 = arith.constant 216 : index
    %c0_41 = arith.constant 0 : index
    %53 = vector.load %arg5[%c216, %c0_41] : memref<736x128xf32, #tpu.memory_space<vmem>>, vector<16x48xf32>
    %cst_42 = arith.constant dense<0.000000e+00> : vector<16x48xf32>
    %54 = tpu.matmul %38, %53, %cst_42 {dimension_numbers = #tpu.dot_dimension_numbers<[1], [0], [0], [1], [0, 0, 1, 1], [], []>} : vector<16x16xf32>, vector<16x48xf32>, vector<16x48xf32> -> vector<16x48xf32>
    %55 = arith.addf %52, %54 : vector<16x48xf32>
    %56 = vector.extract_strided_slice %55 {offsets = [0, 0], sizes = [16, 16], strides = [1, 1]} : vector<16x48xf32> to vector<16x16xf32>
    %cst_43 = arith.constant dense<0.000000e+00> : vector<16x16xf32>
    %57 = tpu.matmul %8, %56, %cst_43 {dimension_numbers = #tpu.dot_dimension_numbers<[1], [0], [0], [1], [0, 0, 1, 1], [], []>} : vector<16x16xf32>, vector<16x16xf32>, vector<16x16xf32> -> vector<16x16xf32>
    %58 = vector.extract_strided_slice %55 {offsets = [0, 16], sizes = [16, 16], strides = [1, 1]} : vector<16x48xf32> to vector<16x16xf32>
    %59 = arith.addf %57, %58 : vector<16x16xf32>
    %60 = vector.extract_strided_slice %55 {offsets = [0, 32], sizes = [16, 16], strides = [1, 1]} : vector<16x48xf32> to vector<16x16xf32>
    %cst_44 = arith.constant dense<0.000000e+00> : vector<16x16xf32>
    %61 = tpu.matmul %9, %60, %cst_44 {dimension_numbers = #tpu.dot_dimension_numbers<[1], [0], [0], [1], [0, 0, 1, 1], [], []>} : vector<16x16xf32>, vector<16x16xf32>, vector<16x16xf32> -> vector<16x16xf32>
    %62 = arith.addf %59, %61 : vector<16x16xf32>
    %c272 = arith.constant 272 : index
    %c0_45 = arith.constant 0 : index
    %63 = vector.load %arg5[%c272, %c0_45] : memref<736x128xf32, #tpu.memory_space<vmem>>, vector<4x2xf32>
    %cst_46 = arith.constant dense<0.000000e+00> : vector<4x16xf32>
    %64 = tpu.matmul %63, %14, %cst_46 {dimension_numbers = #tpu.dot_dimension_numbers<[1], [0], [0], [1], [0, 0, 1, 1], [], []>} : vector<4x2xf32>, vector<2x16xf32>, vector<4x16xf32> -> vector<4x16xf32>
    %65 = arith.addf %19, %64 : vector<4x16xf32>
    %c280 = arith.constant 280 : index
    %c0_47 = arith.constant 0 : index
    %66 = vector.load %arg5[%c280, %c0_47] : memref<736x128xf32, #tpu.memory_space<vmem>>, vector<8x4xf32>
    %cst_48 = arith.constant dense<0.000000e+00> : vector<8x16xf32>
    %67 = tpu.matmul %66, %65, %cst_48 {dimension_numbers = #tpu.dot_dimension_numbers<[1], [0], [0], [1], [0, 0, 1, 1], [], []>} : vector<8x4xf32>, vector<4x16xf32>, vector<8x16xf32> -> vector<8x16xf32>
    %68 = arith.addf %24, %67 : vector<8x16xf32>
    %c288 = arith.constant 288 : index
    %c0_49 = arith.constant 0 : index
    %69 = vector.load %arg5[%c288, %c0_49] : memref<736x128xf32, #tpu.memory_space<vmem>>, vector<16x8xf32>
    %cst_50 = arith.constant dense<0.000000e+00> : vector<16x16xf32>
    %70 = tpu.matmul %69, %68, %cst_50 {dimension_numbers = #tpu.dot_dimension_numbers<[1], [0], [0], [1], [0, 0, 1, 1], [], []>} : vector<16x8xf32>, vector<8x16xf32>, vector<16x16xf32> -> vector<16x16xf32>
    %71 = arith.addf %62, %70 : vector<16x16xf32>
    %c304 = arith.constant 304 : index
    %c0_51 = arith.constant 0 : index
    %72 = vector.load %arg5[%c304, %c0_51] : memref<736x128xf32, #tpu.memory_space<vmem>>, vector<16x48xf32>
    %cst_52 = arith.constant dense<0.000000e+00> : vector<2x48xf32>
    %73 = tpu.matmul %14, %72, %cst_52 {dimension_numbers = #tpu.dot_dimension_numbers<[1], [0], [0], [1], [0, 0, 1, 1], [], []>} : vector<2x16xf32>, vector<16x48xf32>, vector<2x48xf32> -> vector<2x48xf32>
    %c352 = arith.constant 352 : index
    %c0_53 = arith.constant 0 : index
    %74 = vector.load %arg5[%c352, %c0_53] : memref<736x128xf32, #tpu.memory_space<vmem>>, vector<16x2xf32>
    %75 = vector.extract_strided_slice %73 {offsets = [0, 0], sizes = [2, 16], strides = [1, 1]} : vector<2x48xf32> to vector<2x16xf32>
    %cst_54 = arith.constant dense<0.000000e+00> : vector<16x16xf32>
    %76 = tpu.matmul %74, %75, %cst_54 {dimension_numbers = #tpu.dot_dimension_numbers<[1], [0], [0], [1], [0, 0, 1, 1], [], []>} : vector<16x2xf32>, vector<2x16xf32>, vector<16x16xf32> -> vector<16x16xf32>
    %c368 = arith.constant 368 : index
    %c0_55 = arith.constant 0 : index
    %77 = vector.load %arg5[%c368, %c0_55] : memref<736x128xf32, #tpu.memory_space<vmem>>, vector<16x2xf32>
    %78 = vector.extract_strided_slice %73 {offsets = [0, 16], sizes = [2, 16], strides = [1, 1]} : vector<2x48xf32> to vector<2x16xf32>
    %cst_56 = arith.constant dense<0.000000e+00> : vector<16x16xf32>
    %79 = tpu.matmul %77, %78, %cst_56 {dimension_numbers = #tpu.dot_dimension_numbers<[1], [0], [0], [1], [0, 0, 1, 1], [], []>} : vector<16x2xf32>, vector<2x16xf32>, vector<16x16xf32> -> vector<16x16xf32>
    %80 = arith.addf %76, %79 : vector<16x16xf32>
    %c384 = arith.constant 384 : index
    %c0_57 = arith.constant 0 : index
    %81 = vector.load %arg5[%c384, %c0_57] : memref<736x128xf32, #tpu.memory_space<vmem>>, vector<16x2xf32>
    %82 = vector.extract_strided_slice %73 {offsets = [0, 32], sizes = [2, 16], strides = [1, 1]} : vector<2x48xf32> to vector<2x16xf32>
    %cst_58 = arith.constant dense<0.000000e+00> : vector<16x16xf32>
    %83 = tpu.matmul %81, %82, %cst_58 {dimension_numbers = #tpu.dot_dimension_numbers<[1], [0], [0], [1], [0, 0, 1, 1], [], []>} : vector<16x2xf32>, vector<2x16xf32>, vector<16x16xf32> -> vector<16x16xf32>
    %84 = arith.addf %80, %83 : vector<16x16xf32>
    %c320 = arith.constant 320 : index
    %c0_59 = arith.constant 0 : index
    %85 = vector.load %arg5[%c320, %c0_59] : memref<736x128xf32, #tpu.memory_space<vmem>>, vector<16x48xf32>
    %cst_60 = arith.constant dense<0.000000e+00> : vector<4x48xf32>
    %86 = tpu.matmul %65, %85, %cst_60 {dimension_numbers = #tpu.dot_dimension_numbers<[1], [0], [0], [1], [0, 0, 1, 1], [], []>} : vector<4x16xf32>, vector<16x48xf32>, vector<4x48xf32> -> vector<4x48xf32>
    %c400 = arith.constant 400 : index
    %c0_61 = arith.constant 0 : index
    %87 = vector.load %arg5[%c400, %c0_61] : memref<736x128xf32, #tpu.memory_space<vmem>>, vector<16x4xf32>
    %88 = vector.extract_strided_slice %86 {offsets = [0, 0], sizes = [4, 16], strides = [1, 1]} : vector<4x48xf32> to vector<4x16xf32>
    %cst_62 = arith.constant dense<0.000000e+00> : vector<16x16xf32>
    %89 = tpu.matmul %87, %88, %cst_62 {dimension_numbers = #tpu.dot_dimension_numbers<[1], [0], [0], [1], [0, 0, 1, 1], [], []>} : vector<16x4xf32>, vector<4x16xf32>, vector<16x16xf32> -> vector<16x16xf32>
    %c416 = arith.constant 416 : index
    %c0_63 = arith.constant 0 : index
    %90 = vector.load %arg5[%c416, %c0_63] : memref<736x128xf32, #tpu.memory_space<vmem>>, vector<16x4xf32>
    %91 = vector.extract_strided_slice %86 {offsets = [0, 16], sizes = [4, 16], strides = [1, 1]} : vector<4x48xf32> to vector<4x16xf32>
    %cst_64 = arith.constant dense<0.000000e+00> : vector<16x16xf32>
    %92 = tpu.matmul %90, %91, %cst_64 {dimension_numbers = #tpu.dot_dimension_numbers<[1], [0], [0], [1], [0, 0, 1, 1], [], []>} : vector<16x4xf32>, vector<4x16xf32>, vector<16x16xf32> -> vector<16x16xf32>
    %93 = arith.addf %89, %92 : vector<16x16xf32>
    %c432 = arith.constant 432 : index
    %c0_65 = arith.constant 0 : index
    %94 = vector.load %arg5[%c432, %c0_65] : memref<736x128xf32, #tpu.memory_space<vmem>>, vector<16x4xf32>
    %95 = vector.extract_strided_slice %86 {offsets = [0, 32], sizes = [4, 16], strides = [1, 1]} : vector<4x48xf32> to vector<4x16xf32>
    %cst_66 = arith.constant dense<0.000000e+00> : vector<16x16xf32>
    %96 = tpu.matmul %94, %95, %cst_66 {dimension_numbers = #tpu.dot_dimension_numbers<[1], [0], [0], [1], [0, 0, 1, 1], [], []>} : vector<16x4xf32>, vector<4x16xf32>, vector<16x16xf32> -> vector<16x16xf32>
    %97 = arith.addf %93, %96 : vector<16x16xf32>
    %c336 = arith.constant 336 : index
    %c0_67 = arith.constant 0 : index
    %98 = vector.load %arg5[%c336, %c0_67] : memref<736x128xf32, #tpu.memory_space<vmem>>, vector<16x48xf32>
    %cst_68 = arith.constant dense<0.000000e+00> : vector<8x48xf32>
    %99 = tpu.matmul %68, %98, %cst_68 {dimension_numbers = #tpu.dot_dimension_numbers<[1], [0], [0], [1], [0, 0, 1, 1], [], []>} : vector<8x16xf32>, vector<16x48xf32>, vector<8x48xf32> -> vector<8x48xf32>
    %c448 = arith.constant 448 : index
    %c0_69 = arith.constant 0 : index
    %100 = vector.load %arg5[%c448, %c0_69] : memref<736x128xf32, #tpu.memory_space<vmem>>, vector<16x8xf32>
    %101 = vector.extract_strided_slice %99 {offsets = [0, 0], sizes = [8, 16], strides = [1, 1]} : vector<8x48xf32> to vector<8x16xf32>
    %cst_70 = arith.constant dense<0.000000e+00> : vector<16x16xf32>
    %102 = tpu.matmul %100, %101, %cst_70 {dimension_numbers = #tpu.dot_dimension_numbers<[1], [0], [0], [1], [0, 0, 1, 1], [], []>} : vector<16x8xf32>, vector<8x16xf32>, vector<16x16xf32> -> vector<16x16xf32>
    %c464 = arith.constant 464 : index
    %c0_71 = arith.constant 0 : index
    %103 = vector.load %arg5[%c464, %c0_71] : memref<736x128xf32, #tpu.memory_space<vmem>>, vector<16x8xf32>
    %104 = vector.extract_strided_slice %99 {offsets = [0, 16], sizes = [8, 16], strides = [1, 1]} : vector<8x48xf32> to vector<8x16xf32>
    %cst_72 = arith.constant dense<0.000000e+00> : vector<16x16xf32>
    %105 = tpu.matmul %103, %104, %cst_72 {dimension_numbers = #tpu.dot_dimension_numbers<[1], [0], [0], [1], [0, 0, 1, 1], [], []>} : vector<16x8xf32>, vector<8x16xf32>, vector<16x16xf32> -> vector<16x16xf32>
    %106 = arith.addf %102, %105 : vector<16x16xf32>
    %c480 = arith.constant 480 : index
    %c0_73 = arith.constant 0 : index
    %107 = vector.load %arg5[%c480, %c0_73] : memref<736x128xf32, #tpu.memory_space<vmem>>, vector<16x8xf32>
    %108 = vector.extract_strided_slice %99 {offsets = [0, 32], sizes = [8, 16], strides = [1, 1]} : vector<8x48xf32> to vector<8x16xf32>
    %cst_74 = arith.constant dense<0.000000e+00> : vector<16x16xf32>
    %109 = tpu.matmul %107, %108, %cst_74 {dimension_numbers = #tpu.dot_dimension_numbers<[1], [0], [0], [1], [0, 0, 1, 1], [], []>} : vector<16x8xf32>, vector<8x16xf32>, vector<16x16xf32> -> vector<16x16xf32>
    %110 = arith.addf %106, %109 : vector<16x16xf32>
    %c560 = arith.constant 560 : index
    %c0_75 = arith.constant 0 : index
    %111 = vector.load %arg5[%c560, %c0_75] : memref<736x128xf32, #tpu.memory_space<vmem>>, vector<1x48xf32>
    %c496 = arith.constant 496 : index
    %c0_76 = arith.constant 0 : index
    %112 = vector.load %arg5[%c496, %c0_76] : memref<736x128xf32, #tpu.memory_space<vmem>>, vector<16x48xf32>
    %cst_77 = arith.constant dense<0.000000e+00> : vector<16x48xf32>
    %113 = tpu.matmul %84, %112, %cst_77 {dimension_numbers = #tpu.dot_dimension_numbers<[1], [0], [0], [1], [0, 0, 1, 1], [], []>} : vector<16x16xf32>, vector<16x48xf32>, vector<16x48xf32> -> vector<16x48xf32>
    %114 = vector.broadcast %111 : vector<1x48xf32> to vector<16x48xf32>
    %115 = arith.addf %114, %113 : vector<16x48xf32>
    %c512 = arith.constant 512 : index
    %c0_78 = arith.constant 0 : index
    %116 = vector.load %arg5[%c512, %c0_78] : memref<736x128xf32, #tpu.memory_space<vmem>>, vector<16x48xf32>
    %cst_79 = arith.constant dense<0.000000e+00> : vector<16x48xf32>
    %117 = tpu.matmul %97, %116, %cst_79 {dimension_numbers = #tpu.dot_dimension_numbers<[1], [0], [0], [1], [0, 0, 1, 1], [], []>} : vector<16x16xf32>, vector<16x48xf32>, vector<16x48xf32> -> vector<16x48xf32>
    %118 = arith.addf %115, %117 : vector<16x48xf32>
    %c528 = arith.constant 528 : index
    %c0_80 = arith.constant 0 : index
    %119 = vector.load %arg5[%c528, %c0_80] : memref<736x128xf32, #tpu.memory_space<vmem>>, vector<16x48xf32>
    %cst_81 = arith.constant dense<0.000000e+00> : vector<16x48xf32>
    %120 = tpu.matmul %110, %119, %cst_81 {dimension_numbers = #tpu.dot_dimension_numbers<[1], [0], [0], [1], [0, 0, 1, 1], [], []>} : vector<16x16xf32>, vector<16x48xf32>, vector<16x48xf32> -> vector<16x48xf32>
    %121 = arith.addf %118, %120 : vector<16x48xf32>
    %c544 = arith.constant 544 : index
    %c0_82 = arith.constant 0 : index
    %122 = vector.load %arg5[%c544, %c0_82] : memref<736x128xf32, #tpu.memory_space<vmem>>, vector<16x48xf32>
    %cst_83 = arith.constant dense<0.000000e+00> : vector<16x48xf32>
    %123 = tpu.matmul %71, %122, %cst_83 {dimension_numbers = #tpu.dot_dimension_numbers<[1], [0], [0], [1], [0, 0, 1, 1], [], []>} : vector<16x16xf32>, vector<16x48xf32>, vector<16x48xf32> -> vector<16x48xf32>
    %124 = arith.addf %121, %123 : vector<16x48xf32>
    %125 = vector.extract_strided_slice %124 {offsets = [0, 0], sizes = [16, 16], strides = [1, 1]} : vector<16x48xf32> to vector<16x16xf32>
    %cst_84 = arith.constant dense<0.000000e+00> : vector<16x16xf32>
    %126 = tpu.matmul %8, %125, %cst_84 {dimension_numbers = #tpu.dot_dimension_numbers<[1], [0], [0], [1], [0, 0, 1, 1], [], []>} : vector<16x16xf32>, vector<16x16xf32>, vector<16x16xf32> -> vector<16x16xf32>
    %127 = vector.extract_strided_slice %124 {offsets = [0, 16], sizes = [16, 16], strides = [1, 1]} : vector<16x48xf32> to vector<16x16xf32>
    %128 = arith.addf %126, %127 : vector<16x16xf32>
    %129 = vector.extract_strided_slice %124 {offsets = [0, 32], sizes = [16, 16], strides = [1, 1]} : vector<16x48xf32> to vector<16x16xf32>
    %cst_85 = arith.constant dense<0.000000e+00> : vector<16x16xf32>
    %130 = tpu.matmul %9, %129, %cst_85 {dimension_numbers = #tpu.dot_dimension_numbers<[1], [0], [0], [1], [0, 0, 1, 1], [], []>} : vector<16x16xf32>, vector<16x16xf32>, vector<16x16xf32> -> vector<16x16xf32>
    %131 = arith.addf %128, %130 : vector<16x16xf32>
    %c568 = arith.constant 568 : index
    %c0_86 = arith.constant 0 : index
    %132 = vector.load %arg5[%c568, %c0_86] : memref<736x128xf32, #tpu.memory_space<vmem>>, vector<16x128xf32>
    %cst_87 = arith.constant dense<0.000000e+00> : vector<16x128xf32>
    %133 = tpu.matmul %131, %132, %cst_87 {dimension_numbers = #tpu.dot_dimension_numbers<[1], [0], [0], [1], [0, 0, 1, 1], [], []>} : vector<16x16xf32>, vector<16x128xf32>, vector<16x128xf32> -> vector<16x128xf32>
    %c584 = arith.constant 584 : index
    %c0_88 = arith.constant 0 : index
    %134 = vector.load %arg5[%c584, %c0_88] : memref<736x128xf32, #tpu.memory_space<vmem>>, vector<16x128xf32>
    %135 = arith.mulf %133, %134 : vector<16x128xf32>
    %c600 = arith.constant 600 : index
    %c0_89 = arith.constant 0 : index
    %136 = vector.load %arg5[%c600, %c0_89] : memref<736x128xf32, #tpu.memory_space<vmem>>, vector<128x8xf32>
    %cst_90 = arith.constant dense<0.000000e+00> : vector<16x8xf32>
    %137 = tpu.matmul %135, %136, %cst_90 {dimension_numbers = #tpu.dot_dimension_numbers<[1], [0], [0], [1], [0, 0, 1, 1], [], []>} : vector<16x128xf32>, vector<128x8xf32>, vector<16x8xf32> -> vector<16x8xf32>
    %cst_91 = arith.constant dense<0.000000e+00> : vector<8xf32>
    %138 = vector.multi_reduction <add>, %137, %cst_91 [0] : vector<16x8xf32> to vector<8xf32>
    %139 = vector.shape_cast %138 : vector<8xf32> to vector<1x8xf32>
    %c728 = arith.constant 728 : index
    %c0_92 = arith.constant 0 : index
    %140 = vector.load %arg5[%c728, %c0_92] : memref<736x128xf32, #tpu.memory_space<vmem>>, vector<1x8xf32>
    %141 = arith.addf %139, %140 : vector<1x8xf32>
    %c0_93 = arith.constant 0 : index
    %c0_94 = arith.constant 0 : index
    %c0_95 = arith.constant 0 : index
    %142 = vector.load %arg6[%c0_93, %c0_94, %c0_95] : memref<1x1x8xf32, #tpu.memory_space<vmem>>, vector<1x1x8xf32>
    %143 = vector.shape_cast %142 : vector<1x1x8xf32> to vector<1x8xf32>
    %144 = vector.shape_cast %141 : vector<1x8xf32> to vector<1x1x8xf32>
    tpu.vector_store %arg6[%c0_93, %c0_94, %c0_95], %144 {strides = array<i32>} : memref<1x1x8xf32, #tpu.memory_space<vmem>>, vector<1x1x8xf32>,
    return
  }
  func.func @transform_0(%arg0: i32) -> (i32, i32, i32) {
    %c0_i32 = arith.constant 0 : i32
    %c0_i32_0 = arith.constant 0 : i32
    %c0_i32_1 = arith.constant 0 : i32
    return %arg0, %c0_i32, %c0_i32_0 : i32, i32, i32
  }
  func.func @transform_1(%arg0: i32) -> (i32, i32, i32) {
    %c0_i32 = arith.constant 0 : i32
    %c0_i32_0 = arith.constant 0 : i32
    %c0_i32_1 = arith.constant 0 : i32
    return %arg0, %c0_i32, %c0_i32_0 : i32, i32, i32
  }
  func.func @transform_2(%arg0: i32) -> (i32, i32, i32) {
    %c0_i32 = arith.constant 0 : i32
    %c0_i32_0 = arith.constant 0 : i32
    %c0_i32_1 = arith.constant 0 : i32
    return %arg0, %c0_i32, %c0_i32_0 : i32, i32, i32
  }
  func.func @transform_3(%arg0: i32) -> (i32, i32, i32) {
    %c0_i32 = arith.constant 0 : i32
    %c0_i32_0 = arith.constant 0 : i32
    %c0_i32_1 = arith.constant 0 : i32
    return %arg0, %c0_i32, %c0_i32_0 : i32, i32, i32
  }
  func.func @transform_4(%arg0: i32) -> (i32, i32) {
    %c0_i32 = arith.constant 0 : i32
    %c0_i32_0 = arith.constant 0 : i32
    %c0_i32_1 = arith.constant 0 : i32
    return %c0_i32, %c0_i32_0 : i32, i32
  }
  func.func @transform_5(%arg0: i32) -> (i32, i32, i32) {
    %c0_i32 = arith.constant 0 : i32
    %c0_i32_0 = arith.constant 0 : i32
    %c0_i32_1 = arith.constant 0 : i32
    return %arg0, %c0_i32, %c0_i32_0 : i32, i32, i32
  }
}

</mosaic_0001>

<llo_original>
// kernel: forward.1
$region0: #{forward.1}
  #allocation0 [shape = 'u32[]', space=smem, size = 0x4, offset = 0x4, fixed_abs, tag = 'smem constant byte address 0x4 - core index']
  #allocation1 [shape = 'u32[144,128]{1,0:T(1,128)}', space=vmem, size = 0x12000, scoped, tag = 'internal scratch']
  %s0 = inlined_call_operand.hbm [shape: f32[2,2,16], index: 0, kind: input, shape index: {}]
  %s1 = inlined_call_operand.hbm [shape: f32[2,4,16], index: 1, kind: input, shape index: {}]
  %s2 = inlined_call_operand.hbm [shape: f32[2,8,16], index: 2, kind: input, shape index: {}]
  %s3 = inlined_call_operand.hbm [shape: f32[2,16,16], index: 3, kind: input, shape index: {}]
  %s4 = inlined_call_operand.hbm [shape: f32[736,128], index: 4, kind: input, shape index: {}]
  %s5 = inlined_call_operand.hbm [shape: f32[2,1,8], index: 5, kind: output, shape index: {}]
  %s6 = sld [smem:[#allocation0]]
  $region73: #{forward.1} parent=0
    _
  %s8 = ssub.s32 1, %s6
  %s9 = scalar_select 0, %s8, %s6
  $region1: #{forward.1} parent=0
    #allocation2 [shape = 'u8[2048]{0}', space=vmem, size = 0x800, scoped, tag = 'input window, operand 0']
    #allocation3 [shape = 's32[2]{0}', space=sflag, size = 0x8, scoped, tag = 'scoped memory for forward.1']
    #allocation4 [shape = 's32[2]{0}', space=sflag, size = 0x8, scoped, tag = 'scoped memory for forward.1']
    #allocation5 [shape = 'u8[4096]{0}', space=vmem, size = 0x1000, scoped, tag = 'input window, operand 1']
    #allocation6 [shape = 's32[2]{0}', space=sflag, size = 0x8, scoped, tag = 'scoped memory for forward.1']
    #allocation7 [shape = 'u8[8192]{0}', space=vmem, size = 0x2000, scoped, tag = 'input window, operand 2']
    #allocation8 [shape = 'u8[16384]{0}', space=vmem, size = 0x4000, scoped, tag = 'input window, operand 3']
    #allocation9 [shape = 's32[2]{0}', space=sflag, size = 0x8, scoped, tag = 'scoped memory for forward.1']
    #allocation10 [shape = 'u8[376832]{0}', space=vmem, size = 0x5c000, scoped, tag = 'input window, operand 4, single buffered']
    #allocation11 [shape = 'u8[1024]{0}', space=vmem, size = 0x400, scoped, tag = 'output window, operand 0']
    %10 = vsyncpa [#allocation3], 0
    %s11 = scalar_lea.sflag [#allocation3], 1
    %12 = vsyncpa %s11, 0
    %13 = vsyncpa [#allocation6], 0
    %s14 = scalar_lea.sflag [#allocation6], 1
    %15 = vsyncpa %s14, 0
    %16 = vsyncpa [#allocation9], 0
    %s17 = scalar_lea.sflag [#allocation9], 1
    %18 = vsyncpa %s17, 0
    %19 = vsyncpa [#allocation4], 0
    %s20 = scalar_lea.sflag [#allocation4], 1
    %21 = vsyncpa %s20, 0
    loop: start=0, step=1, limit=4
    $region2: #{forward.1} parent=1 // loop_pre_header
      _
    $region3: #{forward.1} parent=1 // loop_header
      %s23 = sphi 0, %s27
      %p24 = scmp.ge.s32.totalorder %s23, 4
      %s33 = sphi 0, %s35
      %s36 = sphi 0, %s33
      %s37 = sphi 0, %s36
      %s53 = sphi 0, %s37
      %s59 = sphi 0, %s61
      %s62 = sphi 0, %s59
      %s63 = sphi 0, %s62
      %s79 = sphi 0, %s63
      %s85 = sphi 0, %s87
      %s88 = sphi 0, %s85
      %s89 = sphi 0, %s88
      %s105 = sphi 0, %s89
      %s111 = sphi 0, %s113
      %s114 = sphi 0, %s111
      %s115 = sphi 0, %s114
      %s131 = sphi 0, %s115
      %s135 = sphi 0, %s135
      %s137 = sphi 0, %s135
      %s138 = sphi 0, %s137
      %s152 = sphi 0, %s138
      %s158 = sphi 0, %s160
      %s161 = sphi 0, %s158
      %s162 = sphi 0, %s161
      %s178 = sphi 0, %s162
    $region4: #{forward.1} parent=1 // loop_header_branch
      %26 = sbr.rel (%p24) target = $region8
    $region5: #{forward.1} parent=1 // loop_body
      %s28 = ssub.s32 %s23, 1
      %s29 = ssub.s32 %s23, 2
      %s30 = sadd.s32 %s23, 1
      %s31 = ssub.s32 %s23, %s30
      %p32 = scmp.eq.s32.totalorder %s31, 0
      %s34 = sadd.s32 %s33, 1
      %s35 = scalar_select %p32, %s33, %s34
      %p38 = pneg %p32
      %p39 = scmp.eq.s32.totalorder %s23, 1
      %p40 = por %p38, %p39
      %p41 = scmp.ne.s32.totalorder %s33, %s36
      %p42 = scmp.eq.s32.totalorder %s23, 0
      %p43 = por %p41, %p42
      %p44 = scmp.ne.s32.totalorder %s33, %s36
      %p45 = scmp.eq.s32.totalorder %s28, 1
      %p46 = por %p44, %p45
      %p47 = scmp.ne.s32.totalorder %s36, %s37
      %p48 = scmp.eq.s32.totalorder %s28, 0
      %p49 = por %p47, %p48
      %p50 = scmp.ne.s32.totalorder %s36, %s37
      %p51 = scmp.eq.s32.totalorder %s29, 1
      %p52 = por %p50, %p51
      %p54 = scmp.ne.s32.totalorder %s37, %s53
      %p55 = scmp.eq.s32.totalorder %s29, 0
      %p56 = por %p54, %p55
      %s57 = ssub.s32 %s23, %s30
      %p58 = scmp.eq.s32.totalorder %s57, 0
      %s60 = sadd.s32 %s59, 1
      %s61 = scalar_select %p58, %s59, %s60
      %p64 = pneg %p58
      %p65 = scmp.eq.s32.totalorder %s23, 1
      %p66 = por %p64, %p65
      %p67 = scmp.ne.s32.totalorder %s59, %s62
      %p68 = scmp.eq.s32.totalorder %s23, 0
      %p69 = por %p67, %p68
      %p70 = scmp.ne.s32.totalorder %s59, %s62
      %p71 = scmp.eq.s32.totalorder %s28, 1
      %p72 = por %p70, %p71
      %p73 = scmp.ne.s32.totalorder %s62, %s63
      %p74 = scmp.eq.s32.totalorder %s28, 0
      %p75 = por %p73, %p74
      %p76 = scmp.ne.s32.totalorder %s62, %s63
      %p77 = scmp.eq.s32.totalorder %s29, 1
      %p78 = por %p76, %p77
      %p80 = scmp.ne.s32.totalorder %s63, %s79
      %p81 = scmp.eq.s32.totalorder %s29, 0
      %p82 = por %p80, %p81
      %s83 = ssub.s32 %s23, %s30
      %p84 = scmp.eq.s32.totalorder %s83, 0
      %s86 = sadd.s32 %s85, 1
      %s87 = scalar_select %p84, %s85, %s86
      %p90 = pneg %p84
      %p91 = scmp.eq.s32.totalorder %s23, 1
      %p92 = por %p90, %p91
      %p93 = scmp.ne.s32.totalorder %s85, %s88
      %p94 = scmp.eq.s32.totalorder %s23, 0
      %p95 = por %p93, %p94
      %p96 = scmp.ne.s32.totalorder %s85, %s88
      %p97 = scmp.eq.s32.totalorder %s28, 1
      %p98 = por %p96, %p97
      %p99 = scmp.ne.s32.totalorder %s88, %s89
      %p100 = scmp.eq.s32.totalorder %s28, 0
      %p101 = por %p99, %p100
      %p102 = scmp.ne.s32.totalorder %s88, %s89
      %p103 = scmp.eq.s32.totalorder %s29, 1
      %p104 = por %p102, %p103
      %p106 = scmp.ne.s32.totalorder %s89, %s105
      %p107 = scmp.eq.s32.totalorder %s29, 0
      %p108 = por %p106, %p107
      %s109 = ssub.s32 %s23, %s30
      %p110 = scmp.eq.s32.totalorder %s109, 0
      %s112 = sadd.s32 %s111, 1
      %s113 = scalar_select %p110, %s111, %s112
      %p116 = pneg %p110
      %p117 = scmp.eq.s32.totalorder %s23, 1
      %p118 = por %p116, %p117
      %p119 = scmp.ne.s32.totalorder %s111, %s114
      %p120 = scmp.eq.s32.totalorder %s23, 0
      %p121 = por %p119, %p120
      %p122 = scmp.ne.s32.totalorder %s111, %s114
      %p123 = scmp.eq.s32.totalorder %s28, 1
      %p124 = por %p122, %p123
      %p125 = scmp.ne.s32.totalorder %s114, %s115
      %p126 = scmp.eq.s32.totalorder %s28, 0
      %p127 = por %p125, %p126
      %p128 = scmp.ne.s32.totalorder %s114, %s115
      %p129 = scmp.eq.s32.totalorder %s29, 1
      %p130 = por %p128, %p129
      %p132 = scmp.ne.s32.totalorder %s115, %s131
      %p133 = scmp.eq.s32.totalorder %s29, 0
      %p134 = por %p132, %p133
      %s136 = sadd.s32 %s135, 1
      %p139 = scmp.eq.s32.totalorder %s23, 1
      %p140 = scmp.ne.s32.totalorder %s135, %s137
      %p141 = scmp.eq.s32.totalorder %s23, 0
      %p142 = por %p140, %p141
      %p143 = scmp.ne.s32.totalorder %s135, %s137
      %p144 = scmp.eq.s32.totalorder %s28, 1
      %p145 = por %p143, %p144
      %p146 = scmp.ne.s32.totalorder %s137, %s138
      %p147 = scmp.eq.s32.totalorder %s28, 0
      %p148 = por %p146, %p147
      %p149 = scmp.ne.s32.totalorder %s137, %s138
      %p150 = scmp.eq.s32.totalorder %s29, 1
      %p151 = por %p149, %p150
      %p153 = scmp.ne.s32.totalorder %s138, %s152
      %p154 = scmp.eq.s32.totalorder %s29, 0
      %p155 = por %p153, %p154
      %s156 = ssub.s32 %s23, %s30
      %p157 = scmp.eq.s32.totalorder %s156, 0
      %s159 = sadd.s32 %s158, 1
      %s160 = scalar_select %p157, %s158, %s159
      %p163 = pneg %p157
      %p164 = scmp.eq.s32.totalorder %s23, 1
      %p165 = por %p163, %p164
      %p166 = scmp.ne.s32.totalorder %s158, %s161
      %p167 = scmp.eq.s32.totalorder %s23, 0
      %p168 = por %p166, %p167
      %p169 = scmp.ne.s32.totalorder %s158, %s161
      %p170 = scmp.eq.s32.totalorder %s28, 1
      %p171 = por %p169, %p170
      %p172 = scmp.ne.s32.totalorder %s161, %s162
      %p173 = scmp.eq.s32.totalorder %s28, 0
      %p174 = por %p172, %p173
      %p175 = scmp.ne.s32.totalorder %s161, %s162
      %p176 = scmp.eq.s32.totalorder %s29, 1
      %p177 = por %p175, %p176
      %p179 = scmp.ne.s32.totalorder %s162, %s178
      %p180 = scmp.eq.s32.totalorder %s29, 0
      %p181 = por %p179, %p180
      %p182 = scmp.le.s32.totalorder 1, %s23
      %p183 = scmp.lt.s32.totalorder %s23, 3
      %p184 = pnand %p182, %p183
      %p185 = pneg %p184
      // Predicated region
      $region9: #{forward.1} parent=5 // pred_check
        _
      $region10: #{forward.1} parent=5 // pred_check_branch
        %187 = sbr.rel (%p184) target = $region12
      $region11: #{forward.1} parent=5 // pred_region
        %s188 = ssub.s32 %s23, 1
        // Predicated region
        $region13: #{forward.1} parent=11 // pred_check
          %p189 = pneg %p148
        $region14: #{forward.1} parent=11 // pred_check_branch
          %191 = sbr.rel (%p189) target = $region16
        $region15: #{forward.1} parent=11 // pred_region
          %s193 = ssub.s32 11776, 11776
          %194 = vsyncadd [#allocation9], %s193
          %s195 = sshll.u32 [#allocation10], 4
          %s196 = int_to_ptr.vmem [resolvable:$true] %s195
          %201 = dma.hbm_to_vmem [thread:$0]  %s4, 11776, %s196, [#allocation9], 128, 128, 8
        $region16: #{forward.1} parent=11 // pred_fallthru
          _
      $region12: #{forward.1} parent=5 // pred_fallthru
        _
      %p202 = scmp.lt.s32.totalorder %s23, 2
      // Predicated region
      $region17: #{forward.1} parent=5 // pred_check
        %p203 = pneg %p202
      $region18: #{forward.1} parent=5 // pred_check_branch
        %205 = sbr.rel (%p203) target = $region20
      $region19: #{forward.1} parent=5 // pred_region
        // Predicated region
        $region21: #{forward.1} parent=19 // pred_check
          %p206 = pneg %p43
        $region22: #{forward.1} parent=19 // pred_check_branch
          %208 = sbr.rel (%p206) target = $region24
        $region23: #{forward.1} parent=19 // pred_region
          %s209 = sand.u32 %s33, 1
          %s210 = scalar_lea.sflag [#allocation3], %s209
          %s211 = sand.u32 %s33, 1
          %s212 = smul.addr %s211, 2
          %s213 = scalar_lea.vmem [#allocation2], %s212
          %s215 = ssub.s32 32, 32
          %216 = vsyncadd %s210, %s215
          %s217 = smul.addr %s23, 32
          %s218 = scalar_lea.hbm %s0, %s217
          %s220 = sshll.u32 %s213, 4
          %s221 = int_to_ptr.vmem [resolvable:$true] %s220
          %223 = dma.hbm_to_vmem [thread:$0]  %s218, 32, %s221, %s210
        $region24: #{forward.1} parent=19 // pred_fallthru
          _
        // Predicated region
        $region25: #{forward.1} parent=19 // pred_check
          %p224 = pneg %p69
        $region26: #{forward.1} parent=19 // pred_check_branch
          %226 = sbr.rel (%p224) target = $region28
        $region27: #{forward.1} parent=19 // pred_region
          %s227 = sand.u32 %s23, 1
          %s228 = scalar_lea.sflag [#allocation6], %s227
          %s229 = sand.u32 %s59, 1
          %s230 = smul.addr %s229, 4
          %s231 = scalar_lea.vmem [#allocation5], %s230
          %s233 = ssub.s32 64, 64
          %234 = vsyncadd %s228, %s233
          %s235 = smul.addr %s23, 64
          %s236 = scalar_lea.hbm %s1, %s235
          %s238 = sshll.u32 %s231, 4
          %s239 = int_to_ptr.vmem [resolvable:$true] %s238
          %241 = dma.hbm_to_vmem [thread:$0]  %s236, 64, %s239, %s228
        $region28: #{forward.1} parent=19 // pred_fallthru
          _
        // Predicated region
        $region29: #{forward.1} parent=19 // pred_check
          %p242 = pneg %p95
        $region30: #{forward.1} parent=19 // pred_check_branch
          %244 = sbr.rel (%p242) target = $region32
        $region31: #{forward.1} parent=19 // pred_region
          %s245 = sand.u32 %s23, 1
          %s246 = scalar_lea.sflag [#allocation6], %s245
          %s247 = sand.u32 %s85, 1
          %s248 = smul.addr %s247, 8
          %s249 = scalar_lea.vmem [#allocation7], %s248
          %s251 = ssub.s32 128, 128
          %252 = vsyncadd %s246, %s251
          %s253 = smul.addr %s23, 128
          %s254 = scalar_lea.hbm %s2, %s253
          %s256 = sshll.u32 %s249, 4
          %s257 = int_to_ptr.vmem [resolvable:$true] %s256
          %259 = dma.hbm_to_vmem [thread:$0]  %s254, 128, %s257, %s246
        $region32: #{forward.1} parent=19 // pred_fallthru
          _
        // Predicated region
        $region33: #{forward.1} parent=19 // pred_check
          %p260 = pneg %p121
        $region34: #{forward.1} parent=19 // pred_check_branch
          %262 = sbr.rel (%p260) target = $region36
        $region35: #{forward.1} parent=19 // pred_region
          %s263 = sand.u32 %s23, 1
          %s264 = scalar_lea.sflag [#allocation9], %s263
          %s265 = sand.u32 %s111, 1
          %s266 = smul.addr %s265, 16
          %s267 = scalar_lea.vmem [#allocation8], %s266
          %s269 = ssub.s32 256, 256
          %270 = vsyncadd %s264, %s269
          %s271 = smul.addr %s23, 2
          %s272 = smul.addr %s271, 128
          %s273 = scalar_lea.hbm %s3, %s272
          %s274 = sshll.u32 %s267, 4
          %s275 = int_to_ptr.vmem [resolvable:$true] %s274
          %280 = dma.hbm_to_vmem [thread:$0]  %s273, 256, %s275, %s264, 128, 128, 8
        $region36: #{forward.1} parent=19 // pred_fallthru
          _
      $region20: #{forward.1} parent=5 // pred_fallthru
        _
      %p281 = scmp.le.s32.totalorder 1, %s23
      %p282 = scmp.lt.s32.totalorder %s23, 3
      %p283 = pnand %p281, %p282
      %p284 = pneg %p283
      // Predicated region
      $region37: #{forward.1} parent=5 // pred_check
        _
      $region38: #{forward.1} parent=5 // pred_check_branch
        %286 = sbr.rel (%p283) target = $region40
      $region39: #{forward.1} parent=5 // pred_region
        %s287 = ssub.s32 %s23, 1
        %s288 = sand.u32 %s36, 1
        %s289 = scalar_lea.sflag [#allocation3], %s288
        %s290 = sand.u32 %s36, 1
        %s291 = smul.addr %s290, 2
        %s292 = scalar_lea.vmem [#allocation2], %s291
        // Predicated region
        $region41: #{forward.1} parent=39 // pred_check
          %p293 = pneg %p49
        $region42: #{forward.1} parent=39 // pred_check_branch
          %295 = sbr.rel (%p293) target = $region44
        $region43: #{forward.1} parent=39 // pred_region
          %296 = dma.done %s289, 32
        $region44: #{forward.1} parent=39 // pred_fallthru
          _
        %s297 = sand.u32 %s28, 1
        %s298 = scalar_lea.sflag [#allocation6], %s297
        %s299 = sand.u32 %s62, 1
        %s300 = smul.addr %s299, 4
        %s301 = scalar_lea.vmem [#allocation5], %s300
        // Predicated region
        $region45: #{forward.1} parent=39 // pred_check
          %p302 = pneg %p75
        $region46: #{forward.1} parent=39 // pred_check_branch
          %304 = sbr.rel (%p302) target = $region48
        $region47: #{forward.1} parent=39 // pred_region
          %305 = dma.done %s298, 64
        $region48: #{forward.1} parent=39 // pred_fallthru
          _
        %s306 = sand.u32 %s28, 1
        %s307 = scalar_lea.sflag [#allocation6], %s306
        %s308 = sand.u32 %s88, 1
        %s309 = smul.addr %s308, 8
        %s310 = scalar_lea.vmem [#allocation7], %s309
        // Predicated region
        $region49: #{forward.1} parent=39 // pred_check
          %p311 = pneg %p101
        $region50: #{forward.1} parent=39 // pred_check_branch
          %313 = sbr.rel (%p311) target = $region52
        $region51: #{forward.1} parent=39 // pred_region
          %314 = dma.done %s307, 128
        $region52: #{forward.1} parent=39 // pred_fallthru
          _
        %s315 = sand.u32 %s28, 1
        %s316 = scalar_lea.sflag [#allocation9], %s315
        %s317 = sand.u32 %s114, 1
        %s318 = smul.addr %s317, 16
        %s319 = scalar_lea.vmem [#allocation8], %s318
        // Predicated region
        $region53: #{forward.1} parent=39 // pred_check
          %p320 = pneg %p127
        $region54: #{forward.1} parent=39 // pred_check_branch
          %322 = sbr.rel (%p320) target = $region56
        $region55: #{forward.1} parent=39 // pred_region
          %323 = dma.done %s316, 256
        $region56: #{forward.1} parent=39 // pred_fallthru
          _
        // Predicated region
        $region57: #{forward.1} parent=39 // pred_check
          %p324 = pneg %p148
        $region58: #{forward.1} parent=39 // pred_check_branch
          %326 = sbr.rel (%p324) target = $region60
        $region59: #{forward.1} parent=39 // pred_region
          %327 = dma.done [#allocation9], 11776
        $region60: #{forward.1} parent=39 // pred_fallthru
          _
        %s328 = sand.u32 %s36, 1
        %s329 = scalar_lea.sflag [#allocation3], %s328
        %s330 = sand.u32 %s36, 1
        %s331 = smul.addr %s330, 2
        %s332 = scalar_lea.vmem [#allocation2], %s331
        %p333 = pneg %p49
        %p334 = pneg %p46
        %s335 = sand.u32 %s28, 1
        %s336 = scalar_lea.sflag [#allocation6], %s335
        %s337 = sand.u32 %s62, 1
        %s338 = smul.addr %s337, 4
        %s339 = scalar_lea.vmem [#allocation5], %s338
        %p340 = pneg %p75
        %p341 = pneg %p72
        %s342 = sand.u32 %s28, 1
        %s343 = scalar_lea.sflag [#allocation6], %s342
        %s344 = sand.u32 %s88, 1
        %s345 = smul.addr %s344, 8
        %s346 = scalar_lea.vmem [#allocation7], %s345
        %p347 = pneg %p101
        %p348 = pneg %p98
        %s349 = sand.u32 %s28, 1
        %s350 = scalar_lea.sflag [#allocation9], %s349
        %s351 = sand.u32 %s114, 1
        %s352 = smul.addr %s351, 16
        %s353 = scalar_lea.vmem [#allocation8], %s352
        %p354 = pneg %p127
        %p355 = pneg %p124
        %p356 = pneg %p148
        %p357 = pneg %p145
        %p358 = pneg %p174
        %p359 = pneg %p171
        %s360 = sand.u32 %s161, 1
        %s361 = scalar_lea.sflag [#allocation4], %s360
        %s362 = sand.u32 %s161, 1
        %s363 = scalar_lea.vmem [#allocation11], %s362
        %v364 = vld [vmem:[%s292] sm:$0x3]
        %v365 = vld [vmem:[%s301] sm:$0xf]
        %v366 = vld [vmem:[%s310] sm:$0xff]
        %v367 = vld [vmem:[%s319] sm:$0xff]
        %v368 = vld [vmem:[%s319 + $0x8] sm:$0xff]
        %v369 = vld [vmem:[#allocation10 + $0xf0] sm:$0xff]
        %v370 = vld [vmem:[#allocation10 + $0xf8] sm:$0xff]
        %v371 = vld [vmem:[#allocation10 + $0x100] sm:$0xff]
        %v372 = vld [vmem:[#allocation10 + $0x108] sm:$0xff]
        %v373 = vld [vmem:[#allocation10] sm:$0xff]
        %v374 = vld [vmem:[#allocation10 + $0x8] sm:$0xff]
        %v375 = vld [vmem:[#allocation10 + $0x30] sm:$0x1]
        %v376 = vlaneseq
        %v377 = vshrl.u32 %v376, 7
        %v378 = vsub.s32 0, %v377
        %v379 = vrot.slane %v375, %v378
        %vm380 = vcmask 130048
        %v382 = vsel %vm380, %v364, 0
        %384 = vmatprep.subr.mxu0 0.0
        %385 = vmatpush1.msra.mxu0 0.0
        %386 = vmatprep.subr.mxu0 0.0
        %387 = vmatpush1.msra.mxu0 0.0
        %388 = vmatprep.subr.mxu0 0.0
        %389 = vmatpush1.msra.mxu0 0.0
        %390 = vmatprep.subr.mxu0 0.0
        %391 = vmatpush1.msra.mxu0 0.0
        %392 = vmatprep.subr.mxu0 0.0
        %393 = vmatpush1.msra.mxu0 0.0
        %394 = vmatprep.subr.mxu0 0.0
        %395 = vmatpush1.msra.mxu0 0.0
        %396 = vmatprep.subr.mxu0 0.0
        %397 = vmatpush1.msra.mxu0 0.0
        %398 = vmatprep.subr.mxu0 0.0
        %399 = vmatpush1.msra.mxu0 0.0
        %400 = vmatprep.subr.mxu0 0.0
        %401 = vmatpush1.msra.mxu0 0.0
        %402 = vmatprep.subr.mxu0 0.0
        %403 = vmatpush1.msra.mxu0 0.0
        %404 = vmatprep.subr.mxu0 0.0
        %405 = vmatpush1.msra.mxu0 0.0
        %406 = vmatprep.subr.mxu0 0.0
        %407 = vmatpush1.msra.mxu0 0.0
        %408 = vmatprep.subr.mxu0 0.0
        %409 = vmatpush1.msra.mxu0 0.0
        %410 = vmatprep.subr.mxu0 0.0
        %411 = vmatpush1.msra.mxu0 0.0
        %412 = vmatprep.subr.mxu0 0.0
        %413 = vmatpush1.msra.mxu0 %v374
        %414 = vmatprep.subr.mxu0 0.0
        %415 = vmatpush1.msra.mxu0 %v373
        %416 = vmatprep.subr.mxu0 0.0
        %417 = vmatpush2.msra.mxu0 0.0
        %418 = vmatprep.subr.mxu0 0.0
        %419 = vmatpush2.msra.mxu0 0.0
        %420 = vmatprep.subr.mxu0 0.0
        %421 = vmatpush2.msra.mxu0 0.0
        %422 = vmatprep.subr.mxu0 0.0
        %423 = vmatpush2.msra.mxu0 0.0
        %424 = vmatprep.subr.mxu0 0.0
        %425 = vmatpush2.msra.mxu0 0.0
        %426 = vmatprep.subr.mxu0 0.0
        %427 = vmatpush2.msra.mxu0 0.0
        %428 = vmatprep.subr.mxu0 0.0
        %429 = vmatpush2.msra.mxu0 0.0
        %430 = vmatprep.subr.mxu0 0.0
        %431 = vmatpush2.msra.mxu0 0.0
        %432 = vmatprep.subr.mxu0 0.0
        %433 = vmatpush2.msra.mxu0 0.0
        %434 = vmatprep.subr.mxu0 0.0
        %435 = vmatpush2.msra.mxu0 0.0
        %436 = vmatprep.subr.mxu0 0.0
        %437 = vmatpush2.msra.mxu0 0.0
        %438 = vmatprep.subr.mxu0 0.0
        %439 = vmatpush2.msra.mxu0 0.0
        %440 = vmatprep.subr.mxu0 0.0
        %441 = vmatpush2.msra.mxu0 0.0
        %442 = vmatprep.subr.mxu0 0.0
        %443 = vmatpush2.msra.mxu0 0.0
        %444 = vmatprep.subr.mxu0 0.0
        %445 = vmatpush2.msra.mxu0 0.0
        %446 = vmatprep.subr.mxu0 0.0
        %447 = vmatpush2.msra.mxu0 0.0
        %448 = vmatprep.mubr.f32.mxu0 0.0
        %449 = vmatmul.mubr.f32.gmra.mxu0 %v382
        %v450 = vpop.f32.mrf.mxu0
        %v451 = vadd.f32 %v379, %v450
        %v452 = vpop.f32.mrf.mxu0
        %453 = vdwg.mxu0
        %v454 = vld [vmem:[#allocation10 + $0x10] sm:$0xff]
        %v455 = vld [vmem:[#allocation10 + $0x18] sm:$0xff]
        %v456 = vld [vmem:[#allocation10 + $0x38] sm:$0x1]
        %v457 = vlaneseq
        %v458 = vshrl.u32 %v457, 7
        %v459 = vsub.s32 0, %v458
        %v460 = vrot.slane %v456, %v459
        %v462 = vsel %vm380, %v365, 0
        %464 = vmatprep.subr.mxu0 0.0
        %465 = vmatpush1.msra.mxu0 0.0
        %466 = vmatprep.subr.mxu0 0.0
        %467 = vmatpush1.msra.mxu0 0.0
        %468 = vmatprep.subr.mxu0 0.0
        %469 = vmatpush1.msra.mxu0 0.0
        %470 = vmatprep.subr.mxu0 0.0
        %471 = vmatpush1.msra.mxu0 0.0
        %472 = vmatprep.subr.mxu0 0.0
        %473 = vmatpush1.msra.mxu0 0.0
        %474 = vmatprep.subr.mxu0 0.0
        %475 = vmatpush1.msra.mxu0 0.0
        %476 = vmatprep.subr.mxu0 0.0
        %477 = vmatpush1.msra.mxu0 0.0
        %478 = vmatprep.subr.mxu0 0.0
        %479 = vmatpush1.msra.mxu0 0.0
        %480 = vmatprep.subr.mxu0 0.0
        %481 = vmatpush1.msra.mxu0 0.0
        %482 = vmatprep.subr.mxu0 0.0
        %483 = vmatpush1.msra.mxu0 0.0
        %484 = vmatprep.subr.mxu0 0.0
        %485 = vmatpush1.msra.mxu0 0.0
        %486 = vmatprep.subr.mxu0 0.0
        %487 = vmatpush1.msra.mxu0 0.0
        %488 = vmatprep.subr.mxu0 0.0
        %489 = vmatpush1.msra.mxu0 0.0
        %490 = vmatprep.subr.mxu0 0.0
        %491 = vmatpush1.msra.mxu0 0.0
        %492 = vmatprep.subr.mxu0 0.0
        %493 = vmatpush1.msra.mxu0 %v455
        %494 = vmatprep.subr.mxu0 0.0
        %495 = vmatpush1.msra.mxu0 %v454
        %496 = vmatprep.subr.mxu0 0.0
        %497 = vmatpush2.msra.mxu0 0.0
        %498 = vmatprep.subr.mxu0 0.0
        %499 = vmatpush2.msra.mxu0 0.0
        %500 = vmatprep.subr.mxu0 0.0
        %501 = vmatpush2.msra.mxu0 0.0
        %502 = vmatprep.subr.mxu0 0.0
        %503 = vmatpush2.msra.mxu0 0.0
        %504 = vmatprep.subr.mxu0 0.0
        %505 = vmatpush2.msra.mxu0 0.0
        %506 = vmatprep.subr.mxu0 0.0
        %507 = vmatpush2.msra.mxu0 0.0
        %508 = vmatprep.subr.mxu0 0.0
        %509 = vmatpush2.msra.mxu0 0.0
        %510 = vmatprep.subr.mxu0 0.0
        %511 = vmatpush2.msra.mxu0 0.0
        %512 = vmatprep.subr.mxu0 0.0
        %513 = vmatpush2.msra.mxu0 0.0
        %514 = vmatprep.subr.mxu0 0.0
        %515 = vmatpush2.msra.mxu0 0.0
        %516 = vmatprep.subr.mxu0 0.0
        %517 = vmatpush2.msra.mxu0 0.0
        %518 = vmatprep.subr.mxu0 0.0
        %519 = vmatpush2.msra.mxu0 0.0
        %520 = vmatprep.subr.mxu0 0.0
        %521 = vmatpush2.msra.mxu0 0.0
        %522 = vmatprep.subr.mxu0 0.0
        %523 = vmatpush2.msra.mxu0 0.0
        %524 = vmatprep.subr.mxu0 0.0
        %525 = vmatpush2.msra.mxu0 0.0
        %526 = vmatprep.subr.mxu0 0.0
        %527 = vmatpush2.msra.mxu0 0.0
        %528 = vmatprep.mubr.f32.mxu0 0.0
        %529 = vmatmul.mubr.f32.gmra.mxu0 %v462
        %v530 = vpop.f32.mrf.mxu0
        %v531 = vadd.f32 %v460, %v530
        %v532 = vpop.f32.mrf.mxu0
        %533 = vdwg.mxu0
        %v534 = vld [vmem:[#allocation10 + $0x20] sm:$0xff]
        %v535 = vld [vmem:[#allocation10 + $0x28] sm:$0xff]
        %v536 = vld [vmem:[#allocation10 + $0x40] sm:$0x1]
        %v537 = vlaneseq
        %v538 = vshrl.u32 %v537, 7
        %v539 = vsub.s32 0, %v538
        %v540 = vrot.slane %v536, %v539
        %v542 = vsel %vm380, %v366, 0
        %544 = vmatprep.subr.mxu0 0.0
        %545 = vmatpush1.msra.mxu0 0.0
        %546 = vmatprep.subr.mxu0 0.0
        %547 = vmatpush1.msra.mxu0 0.0
        %548 = vmatprep.subr.mxu0 0.0
        %549 = vmatpush1.msra.mxu0 0.0
        %550 = vmatprep.subr.mxu0 0.0
        %551 = vmatpush1.msra.mxu0 0.0
        %552 = vmatprep.subr.mxu0 0.0
        %553 = vmatpush1.msra.mxu0 0.0
        %554 = vmatprep.subr.mxu0 0.0
        %555 = vmatpush1.msra.mxu0 0.0
        %556 = vmatprep.subr.mxu0 0.0
        %557 = vmatpush1.msra.mxu0 0.0
        %558 = vmatprep.subr.mxu0 0.0
        %559 = vmatpush1.msra.mxu0 0.0
        %560 = vmatprep.subr.mxu0 0.0
        %561 = vmatpush1.msra.mxu0 0.0
        %562 = vmatprep.subr.mxu0 0.0
        %563 = vmatpush1.msra.mxu0 0.0
        %564 = vmatprep.subr.mxu0 0.0
        %565 = vmatpush1.msra.mxu0 0.0
        %566 = vmatprep.subr.mxu0 0.0
        %567 = vmatpush1.msra.mxu0 0.0
        %568 = vmatprep.subr.mxu0 0.0
        %569 = vmatpush1.msra.mxu0 0.0
        %570 = vmatprep.subr.mxu0 0.0
        %571 = vmatpush1.msra.mxu0 0.0
        %572 = vmatprep.subr.mxu0 0.0
        %573 = vmatpush1.msra.mxu0 %v535
        %574 = vmatprep.subr.mxu0 0.0
        %575 = vmatpush1.msra.mxu0 %v534
        %576 = vmatprep.subr.mxu0 0.0
        %577 = vmatpush2.msra.mxu0 0.0
        %578 = vmatprep.subr.mxu0 0.0
        %579 = vmatpush2.msra.mxu0 0.0
        %580 = vmatprep.subr.mxu0 0.0
        %581 = vmatpush2.msra.mxu0 0.0
        %582 = vmatprep.subr.mxu0 0.0
        %583 = vmatpush2.msra.mxu0 0.0
        %584 = vmatprep.subr.mxu0 0.0
        %585 = vmatpush2.msra.mxu0 0.0
        %586 = vmatprep.subr.mxu0 0.0
        %587 = vmatpush2.msra.mxu0 0.0
        %588 = vmatprep.subr.mxu0 0.0
        %589 = vmatpush2.msra.mxu0 0.0
        %590 = vmatprep.subr.mxu0 0.0
        %591 = vmatpush2.msra.mxu0 0.0
        %592 = vmatprep.subr.mxu0 0.0
        %593 = vmatpush2.msra.mxu0 0.0
        %594 = vmatprep.subr.mxu0 0.0
        %595 = vmatpush2.msra.mxu0 0.0
        %596 = vmatprep.subr.mxu0 0.0
        %597 = vmatpush2.msra.mxu0 0.0
        %598 = vmatprep.subr.mxu0 0.0
        %599 = vmatpush2.msra.mxu0 0.0
        %600 = vmatprep.subr.mxu0 0.0
        %601 = vmatpush2.msra.mxu0 0.0
        %602 = vmatprep.subr.mxu0 0.0
        %603 = vmatpush2.msra.mxu0 0.0
        %604 = vmatprep.subr.mxu0 0.0
        %605 = vmatpush2.msra.mxu0 0.0
        %606 = vmatprep.subr.mxu0 0.0
        %607 = vmatpush2.msra.mxu0 0.0
        %608 = vmatprep.mubr.f32.mxu0 0.0
        %609 = vmatmul.mubr.f32.gmra.mxu0 %v542
        %v610 = vpop.f32.mrf.mxu0
        %v611 = vadd.f32 %v540, %v610
        %v612 = vpop.f32.mrf.mxu0
        %613 = vdwg.mxu0
        %v614 = vld [vmem:[#allocation10 + $0x48] sm:$0xff]
        %v615 = vld [vmem:[#allocation10 + $0x50] sm:$0xff]
        %v617 = vsel %vm380, %v367, 0
        %v620 = vsel %vm380, %v368, 0
        %622 = vmatprep.subr.mxu0 0.0
        %623 = vmatpush1.msra.mxu0 0.0
        %624 = vmatprep.subr.mxu0 0.0
        %625 = vmatpush1.msra.mxu0 0.0
        %626 = vmatprep.subr.mxu0 0.0
        %627 = vmatpush1.msra.mxu0 0.0
        %628 = vmatprep.subr.mxu0 0.0
        %629 = vmatpush1.msra.mxu0 0.0
        %630 = vmatprep.subr.mxu0 0.0
        %631 = vmatpush1.msra.mxu0 0.0
        %632 = vmatprep.subr.mxu0 0.0
        %633 = vmatpush1.msra.mxu0 0.0
        %634 = vmatprep.subr.mxu0 0.0
        %635 = vmatpush1.msra.mxu0 0.0
        %636 = vmatprep.subr.mxu0 0.0
        %637 = vmatpush1.msra.mxu0 0.0
        %638 = vmatprep.subr.mxu0 0.0
        %639 = vmatpush1.msra.mxu0 0.0
        %640 = vmatprep.subr.mxu0 0.0
        %641 = vmatpush1.msra.mxu0 0.0
        %642 = vmatprep.subr.mxu0 0.0
        %643 = vmatpush1.msra.mxu0 0.0
        %644 = vmatprep.subr.mxu0 0.0
        %645 = vmatpush1.msra.mxu0 0.0
        %646 = vmatprep.subr.mxu0 0.0
        %647 = vmatpush1.msra.mxu0 0.0
        %648 = vmatprep.subr.mxu0 0.0
        %649 = vmatpush1.msra.mxu0 0.0
        %650 = vmatprep.subr.mxu0 0.0
        %651 = vmatpush1.msra.mxu0 %v615
        %652 = vmatprep.subr.mxu0 0.0
        %653 = vmatpush1.msra.mxu0 %v614
        %654 = vmatprep.subr.mxu0 0.0
        %655 = vmatpush2.msra.mxu0 0.0
        %656 = vmatprep.subr.mxu0 0.0
        %657 = vmatpush2.msra.mxu0 0.0
        %658 = vmatprep.subr.mxu0 0.0
        %659 = vmatpush2.msra.mxu0 0.0
        %660 = vmatprep.subr.mxu0 0.0
        %661 = vmatpush2.msra.mxu0 0.0
        %662 = vmatprep.subr.mxu0 0.0
        %663 = vmatpush2.msra.mxu0 0.0
        %664 = vmatprep.subr.mxu0 0.0
        %665 = vmatpush2.msra.mxu0 0.0
        %666 = vmatprep.subr.mxu0 0.0
        %667 = vmatpush2.msra.mxu0 0.0
        %668 = vmatprep.subr.mxu0 0.0
        %669 = vmatpush2.msra.mxu0 0.0
        %670 = vmatprep.subr.mxu0 0.0
        %671 = vmatpush2.msra.mxu0 0.0
        %672 = vmatprep.subr.mxu0 0.0
        %673 = vmatpush2.msra.mxu0 0.0
        %674 = vmatprep.subr.mxu0 0.0
        %675 = vmatpush2.msra.mxu0 0.0
        %676 = vmatprep.subr.mxu0 0.0
        %677 = vmatpush2.msra.mxu0 0.0
        %678 = vmatprep.subr.mxu0 0.0
        %679 = vmatpush2.msra.mxu0 0.0
        %680 = vmatprep.subr.mxu0 0.0
        %681 = vmatpush2.msra.mxu0 0.0
        %682 = vmatprep.subr.mxu0 0.0
        %683 = vmatpush2.msra.mxu0 0.0
        %684 = vmatprep.subr.mxu0 0.0
        %685 = vmatpush2.msra.mxu0 0.0
        %686 = vmatprep.mubr.f32.mxu0 0.0
        %687 = vmatmul.mubr.f32.gmra.mxu0 %v617
        %v688 = vpop.f32.mrf.mxu0
        %v689 = vadd.f32 0.0, %v688
        %v690 = vpop.f32.mrf.mxu0
        %691 = vmatprep.mubr.f32.mxu0 0.0
        %692 = vmatmul.mubr.f32.gmra.mxu0 %v620
        %v693 = vpop.f32.mrf.mxu0
        %v694 = vadd.f32 0.0, %v693
        %v695 = vpop.f32.mrf.mxu0
        %696 = vdwg.mxu0
        %v697 = vld [vmem:[#allocation10 + $0x58] sm:$0xff]
        %v698 = vld [vmem:[#allocation10 + $0x60] sm:$0xff]
        %v700 = vsel %vm380, %v697, 0
        %v703 = vsel %vm380, %v698, 0
        %705 = vmatprep.subr.mxu0 0.0
        %706 = vmatpush1.msra.mxu0 0.0
        %707 = vmatprep.subr.mxu0 0.0
        %708 = vmatpush1.msra.mxu0 0.0
        %709 = vmatprep.subr.mxu0 0.0
        %710 = vmatpush1.msra.mxu0 0.0
        %711 = vmatprep.subr.mxu0 0.0
        %712 = vmatpush1.msra.mxu0 0.0
        %713 = vmatprep.subr.mxu0 0.0
        %714 = vmatpush1.msra.mxu0 0.0
        %715 = vmatprep.subr.mxu0 0.0
        %716 = vmatpush1.msra.mxu0 0.0
        %717 = vmatprep.subr.mxu0 0.0
        %718 = vmatpush1.msra.mxu0 0.0
        %719 = vmatprep.subr.mxu0 0.0
        %720 = vmatpush1.msra.mxu0 0.0
        %721 = vmatprep.subr.mxu0 0.0
        %722 = vmatpush1.msra.mxu0 0.0
        %723 = vmatprep.subr.mxu0 0.0
        %724 = vmatpush1.msra.mxu0 0.0
        %725 = vmatprep.subr.mxu0 0.0
        %726 = vmatpush1.msra.mxu0 0.0
        %727 = vmatprep.subr.mxu0 0.0
        %728 = vmatpush1.msra.mxu0 0.0
        %729 = vmatprep.subr.mxu0 0.0
        %730 = vmatpush1.msra.mxu0 0.0
        %731 = vmatprep.subr.mxu0 0.0
        %732 = vmatpush1.msra.mxu0 0.0
        %733 = vmatprep.subr.mxu0 0.0
        %734 = vmatpush1.msra.mxu0 %v694
        %735 = vmatprep.subr.mxu0 0.0
        %736 = vmatpush1.msra.mxu0 %v689
        %737 = vmatprep.subr.mxu0 0.0
        %738 = vmatpush2.msra.mxu0 0.0
        %739 = vmatprep.subr.mxu0 0.0
        %740 = vmatpush2.msra.mxu0 0.0
        %741 = vmatprep.subr.mxu0 0.0
        %742 = vmatpush2.msra.mxu0 0.0
        %743 = vmatprep.subr.mxu0 0.0
        %744 = vmatpush2.msra.mxu0 0.0
        %745 = vmatprep.subr.mxu0 0.0
        %746 = vmatpush2.msra.mxu0 0.0
        %747 = vmatprep.subr.mxu0 0.0
        %748 = vmatpush2.msra.mxu0 0.0
        %749 = vmatprep.subr.mxu0 0.0
        %750 = vmatpush2.msra.mxu0 0.0
        %751 = vmatprep.subr.mxu0 0.0
        %752 = vmatpush2.msra.mxu0 0.0
        %753 = vmatprep.subr.mxu0 0.0
        %754 = vmatpush2.msra.mxu0 0.0
        %755 = vmatprep.subr.mxu0 0.0
        %756 = vmatpush2.msra.mxu0 0.0
        %757 = vmatprep.subr.mxu0 0.0
        %758 = vmatpush2.msra.mxu0 0.0
        %759 = vmatprep.subr.mxu0 0.0
        %760 = vmatpush2.msra.mxu0 0.0
        %761 = vmatprep.subr.mxu0 0.0
        %762 = vmatpush2.msra.mxu0 0.0
        %763 = vmatprep.subr.mxu0 0.0
        %764 = vmatpush2.msra.mxu0 0.0
        %765 = vmatprep.subr.mxu0 0.0
        %766 = vmatpush2.msra.mxu0 0.0
        %767 = vmatprep.subr.mxu0 0.0
        %768 = vmatpush2.msra.mxu0 0.0
        %769 = vmatprep.mubr.f32.mxu0 0.0
        %770 = vmatmul.mubr.f32.gmra.mxu0 %v700
        %v771 = vpop.f32.mrf.mxu0
        %v772 = vadd.f32 0.0, %v771
        %v773 = vpop.f32.mrf.mxu0
        %774 = vmatprep.mubr.f32.mxu0 0.0
        %775 = vmatmul.mubr.f32.gmra.mxu0 %v703
        %v776 = vpop.f32.mrf.mxu0
        %v777 = vadd.f32 0.0, %v776
        %v778 = vpop.f32.mrf.mxu0
        %779 = vdwg.mxu0
        %v780 = vld [vmem:[#allocation10 + $0x68] sm:$0xff]
        %v781 = vld [vmem:[#allocation10 + $0x70] sm:$0xff]
        %784 = vrot.lane.b32.xlu0 %v689, 112
        %v785 = vpop.permute.xlu0 %784
        %786 = vrot.lane.b32.xlu0 %v694, 112
        %v787 = vpop.permute.xlu0 %786
        %v791 = vsel %vm380, %v780, 0
        %v794 = vsel %vm380, %v781, 0
        %796 = vmatprep.subr.mxu0 0.0
        %797 = vmatpush1.msra.mxu0 0.0
        %798 = vmatprep.subr.mxu0 0.0
        %799 = vmatpush1.msra.mxu0 0.0
        %800 = vmatprep.subr.mxu0 0.0
        %801 = vmatpush1.msra.mxu0 0.0
        %802 = vmatprep.subr.mxu0 0.0
        %803 = vmatpush1.msra.mxu0 0.0
        %804 = vmatprep.subr.mxu0 0.0
        %805 = vmatpush1.msra.mxu0 0.0
        %806 = vmatprep.subr.mxu0 0.0
        %807 = vmatpush1.msra.mxu0 0.0
        %808 = vmatprep.subr.mxu0 0.0
        %809 = vmatpush1.msra.mxu0 0.0
        %810 = vmatprep.subr.mxu0 0.0
        %811 = vmatpush1.msra.mxu0 0.0
        %812 = vmatprep.subr.mxu0 0.0
        %813 = vmatpush1.msra.mxu0 0.0
        %814 = vmatprep.subr.mxu0 0.0
        %815 = vmatpush1.msra.mxu0 0.0
        %816 = vmatprep.subr.mxu0 0.0
        %817 = vmatpush1.msra.mxu0 0.0
        %818 = vmatprep.subr.mxu0 0.0
        %819 = vmatpush1.msra.mxu0 0.0
        %820 = vmatprep.subr.mxu0 0.0
        %821 = vmatpush1.msra.mxu0 0.0
        %822 = vmatprep.subr.mxu0 0.0
        %823 = vmatpush1.msra.mxu0 0.0
        %824 = vmatprep.subr.mxu0 0.0
        %825 = vmatpush1.msra.mxu0 %v787
        %826 = vmatprep.subr.mxu0 0.0
        %827 = vmatpush1.msra.mxu0 %v785
        %828 = vmatprep.subr.mxu0 0.0
        %829 = vmatpush2.msra.mxu0 0.0
        %830 = vmatprep.subr.mxu0 0.0
        %831 = vmatpush2.msra.mxu0 0.0
        %832 = vmatprep.subr.mxu0 0.0
        %833 = vmatpush2.msra.mxu0 0.0
        %834 = vmatprep.subr.mxu0 0.0
        %835 = vmatpush2.msra.mxu0 0.0
        %836 = vmatprep.subr.mxu0 0.0
        %837 = vmatpush2.msra.mxu0 0.0
        %838 = vmatprep.subr.mxu0 0.0
        %839 = vmatpush2.msra.mxu0 0.0
        %840 = vmatprep.subr.mxu0 0.0
        %841 = vmatpush2.msra.mxu0 0.0
        %842 = vmatprep.subr.mxu0 0.0
        %843 = vmatpush2.msra.mxu0 0.0
        %844 = vmatprep.subr.mxu0 0.0
        %845 = vmatpush2.msra.mxu0 0.0
        %846 = vmatprep.subr.mxu0 0.0
        %847 = vmatpush2.msra.mxu0 0.0
        %848 = vmatprep.subr.mxu0 0.0
        %849 = vmatpush2.msra.mxu0 0.0
        %850 = vmatprep.subr.mxu0 0.0
        %851 = vmatpush2.msra.mxu0 0.0
        %852 = vmatprep.subr.mxu0 0.0
        %853 = vmatpush2.msra.mxu0 0.0
        %854 = vmatprep.subr.mxu0 0.0
        %855 = vmatpush2.msra.mxu0 0.0
        %856 = vmatprep.subr.mxu0 0.0
        %857 = vmatpush2.msra.mxu0 0.0
        %858 = vmatprep.subr.mxu0 0.0
        %859 = vmatpush2.msra.mxu0 0.0
        %860 = vmatprep.mubr.f32.mxu0 0.0
        %861 = vmatmul.mubr.f32.gmra.mxu0 %v791
        %v862 = vpop.f32.mrf.mxu0
        %v863 = vadd.f32 0.0, %v862
        %v864 = vpop.f32.mrf.mxu0
        %865 = vmatprep.mubr.f32.mxu0 0.0
        %866 = vmatmul.mubr.f32.gmra.mxu0 %v794
        %v867 = vpop.f32.mrf.mxu0
        %v868 = vadd.f32 0.0, %v867
        %v869 = vpop.f32.mrf.mxu0
        %870 = vdwg.mxu0
        %v871 = vld [vmem:[#allocation10 + $0x78] sm:$0xff]
        %v872 = vld [vmem:[#allocation10 + $0x80] sm:$0xff]
        %873 = vrot.lane.b32.xlu0 %v689, 96
        %v874 = vpop.permute.xlu0 %873
        %875 = vrot.lane.b32.xlu0 %v694, 96
        %v876 = vpop.permute.xlu0 %875
        %v880 = vsel %vm380, %v871, 0
        %v883 = vsel %vm380, %v872, 0
        %885 = vmatprep.subr.mxu0 0.0
        %886 = vmatpush1.msra.mxu0 0.0
        %887 = vmatprep.subr.mxu0 0.0
        %888 = vmatpush1.msra.mxu0 0.0
        %889 = vmatprep.subr.mxu0 0.0
        %890 = vmatpush1.msra.mxu0 0.0
        %891 = vmatprep.subr.mxu0 0.0
        %892 = vmatpush1.msra.mxu0 0.0
        %893 = vmatprep.subr.mxu0 0.0
        %894 = vmatpush1.msra.mxu0 0.0
        %895 = vmatprep.subr.mxu0 0.0
        %896 = vmatpush1.msra.mxu0 0.0
        %897 = vmatprep.subr.mxu0 0.0
        %898 = vmatpush1.msra.mxu0 0.0
        %899 = vmatprep.subr.mxu0 0.0
        %900 = vmatpush1.msra.mxu0 0.0
        %901 = vmatprep.subr.mxu0 0.0
        %902 = vmatpush1.msra.mxu0 0.0
        %903 = vmatprep.subr.mxu0 0.0
        %904 = vmatpush1.msra.mxu0 0.0
        %905 = vmatprep.subr.mxu0 0.0
        %906 = vmatpush1.msra.mxu0 0.0
        %907 = vmatprep.subr.mxu0 0.0
        %908 = vmatpush1.msra.mxu0 0.0
        %909 = vmatprep.subr.mxu0 0.0
        %910 = vmatpush1.msra.mxu0 0.0
        %911 = vmatprep.subr.mxu0 0.0
        %912 = vmatpush1.msra.mxu0 0.0
        %913 = vmatprep.subr.mxu0 0.0
        %914 = vmatpush1.msra.mxu0 %v876
        %915 = vmatprep.subr.mxu0 0.0
        %916 = vmatpush1.msra.mxu0 %v874
        %917 = vmatprep.subr.mxu0 0.0
        %918 = vmatpush2.msra.mxu0 0.0
        %919 = vmatprep.subr.mxu0 0.0
        %920 = vmatpush2.msra.mxu0 0.0
        %921 = vmatprep.subr.mxu0 0.0
        %922 = vmatpush2.msra.mxu0 0.0
        %923 = vmatprep.subr.mxu0 0.0
        %924 = vmatpush2.msra.mxu0 0.0
        %925 = vmatprep.subr.mxu0 0.0
        %926 = vmatpush2.msra.mxu0 0.0
        %927 = vmatprep.subr.mxu0 0.0
        %928 = vmatpush2.msra.mxu0 0.0
        %929 = vmatprep.subr.mxu0 0.0
        %930 = vmatpush2.msra.mxu0 0.0
        %931 = vmatprep.subr.mxu0 0.0
        %932 = vmatpush2.msra.mxu0 0.0
        %933 = vmatprep.subr.mxu0 0.0
        %934 = vmatpush2.msra.mxu0 0.0
        %935 = vmatprep.subr.mxu0 0.0
        %936 = vmatpush2.msra.mxu0 0.0
        %937 = vmatprep.subr.mxu0 0.0
        %938 = vmatpush2.msra.mxu0 0.0
        %939 = vmatprep.subr.mxu0 0.0
        %940 = vmatpush2.msra.mxu0 0.0
        %941 = vmatprep.subr.mxu0 0.0
        %942 = vmatpush2.msra.mxu0 0.0
        %943 = vmatprep.subr.mxu0 0.0
        %944 = vmatpush2.msra.mxu0 0.0
        %945 = vmatprep.subr.mxu0 0.0
        %946 = vmatpush2.msra.mxu0 0.0
        %947 = vmatprep.subr.mxu0 0.0
        %948 = vmatpush2.msra.mxu0 0.0
        %949 = vmatprep.mubr.f32.mxu0 0.0
        %950 = vmatmul.mubr.f32.gmra.mxu0 %v880
        %v951 = vpop.f32.mrf.mxu0
        %v952 = vadd.f32 0.0, %v951
        %v953 = vpop.f32.mrf.mxu0
        %954 = vmatprep.mubr.f32.mxu0 0.0
        %955 = vmatmul.mubr.f32.gmra.mxu0 %v883
        %v956 = vpop.f32.mrf.mxu0
        %v957 = vadd.f32 0.0, %v956
        %v958 = vpop.f32.mrf.mxu0
        %959 = vdwg.mxu0
        %v960 = vld [vmem:[#allocation10 + $0x88] sm:$0xff]
        %v961 = vld [vmem:[#allocation10 + $0x90] sm:$0xff]
        %962 = vrot.lane.b32.xlu0 %v689, 80
        %v963 = vpop.permute.xlu0 %962
        %964 = vrot.lane.b32.xlu0 %v694, 80
        %v965 = vpop.permute.xlu0 %964
        %v969 = vsel %vm380, %v960, 0
        %v972 = vsel %vm380, %v961, 0
        %974 = vmatprep.subr.mxu0 0.0
        %975 = vmatpush1.msra.mxu0 0.0
        %976 = vmatprep.subr.mxu0 0.0
        %977 = vmatpush1.msra.mxu0 0.0
        %978 = vmatprep.subr.mxu0 0.0
        %979 = vmatpush1.msra.mxu0 0.0
        %980 = vmatprep.subr.mxu0 0.0
        %981 = vmatpush1.msra.mxu0 0.0
        %982 = vmatprep.subr.mxu0 0.0
        %983 = vmatpush1.msra.mxu0 0.0
        %984 = vmatprep.subr.mxu0 0.0
        %985 = vmatpush1.msra.mxu0 0.0
        %986 = vmatprep.subr.mxu0 0.0
        %987 = vmatpush1.msra.mxu0 0.0
        %988 = vmatprep.subr.mxu0 0.0
        %989 = vmatpush1.msra.mxu0 0.0
        %990 = vmatprep.subr.mxu0 0.0
        %991 = vmatpush1.msra.mxu0 0.0
        %992 = vmatprep.subr.mxu0 0.0
        %993 = vmatpush1.msra.mxu0 0.0
        %994 = vmatprep.subr.mxu0 0.0
        %995 = vmatpush1.msra.mxu0 0.0
        %996 = vmatprep.subr.mxu0 0.0
        %997 = vmatpush1.msra.mxu0 0.0
        %998 = vmatprep.subr.mxu0 0.0
        %999 = vmatpush1.msra.mxu0 0.0
        %1000 = vmatprep.subr.mxu0 0.0
        %1001 = vmatpush1.msra.mxu0 0.0
        %1002 = vmatprep.subr.mxu0 0.0
        %1003 = vmatpush1.msra.mxu0 %v965
        %1004 = vmatprep.subr.mxu0 0.0
        %1005 = vmatpush1.msra.mxu0 %v963
        %1006 = vmatprep.subr.mxu0 0.0
        %1007 = vmatpush2.msra.mxu0 0.0
        %1008 = vmatprep.subr.mxu0 0.0
        %1009 = vmatpush2.msra.mxu0 0.0
        %1010 = vmatprep.subr.mxu0 0.0
        %1011 = vmatpush2.msra.mxu0 0.0
        %1012 = vmatprep.subr.mxu0 0.0
        %1013 = vmatpush2.msra.mxu0 0.0
        %1014 = vmatprep.subr.mxu0 0.0
        %1015 = vmatpush2.msra.mxu0 0.0
        %1016 = vmatprep.subr.mxu0 0.0
        %1017 = vmatpush2.msra.mxu0 0.0
        %1018 = vmatprep.subr.mxu0 0.0
        %1019 = vmatpush2.msra.mxu0 0.0
        %1020 = vmatprep.subr.mxu0 0.0
        %1021 = vmatpush2.msra.mxu0 0.0
        %1022 = vmatprep.subr.mxu0 0.0
        %1023 = vmatpush2.msra.mxu0 0.0
        %1024 = vmatprep.subr.mxu0 0.0
        %1025 = vmatpush2.msra.mxu0 0.0
        %1026 = vmatprep.subr.mxu0 0.0
        %1027 = vmatpush2.msra.mxu0 0.0
        %1028 = vmatprep.subr.mxu0 0.0
        %1029 = vmatpush2.msra.mxu0 0.0
        %1030 = vmatprep.subr.mxu0 0.0
        %1031 = vmatpush2.msra.mxu0 0.0
        %1032 = vmatprep.subr.mxu0 0.0
        %1033 = vmatpush2.msra.mxu0 0.0
        %1034 = vmatprep.subr.mxu0 0.0
        %1035 = vmatpush2.msra.mxu0 0.0
        %1036 = vmatprep.subr.mxu0 0.0
        %1037 = vmatpush2.msra.mxu0 0.0
        %1038 = vmatprep.mubr.f32.mxu0 0.0
        %1039 = vmatmul.mubr.f32.gmra.mxu0 %v969
        %v1040 = vpop.f32.mrf.mxu0
        %v1041 = vadd.f32 0.0, %v1040
        %v1042 = vpop.f32.mrf.mxu0
        %1043 = vmatprep.mubr.f32.mxu0 0.0
        %1044 = vmatmul.mubr.f32.gmra.mxu0 %v972
        %v1045 = vpop.f32.mrf.mxu0
        %v1046 = vadd.f32 0.0, %v1045
        %v1047 = vpop.f32.mrf.mxu0
        %1048 = vdwg.mxu0
        %v1049 = vld [vmem:[#allocation10 + $0xe8] sm:$0x1]
        %v1050 = vld [vmem:[#allocation10 + $0x98] sm:$0xff]
        %v1051 = vld [vmem:[#allocation10 + $0xa0] sm:$0xff]
        %1052 = vmatprep.subr.mxu0 0.0
        %1053 = vmatpush1.msra.mxu0 0.0
        %1054 = vmatprep.subr.mxu0 0.0
        %1055 = vmatpush1.msra.mxu0 0.0
        %1056 = vmatprep.subr.mxu0 0.0
        %1057 = vmatpush1.msra.mxu0 0.0
        %1058 = vmatprep.subr.mxu0 0.0
        %1059 = vmatpush1.msra.mxu0 0.0
        %1060 = vmatprep.subr.mxu0 0.0
        %1061 = vmatpush1.msra.mxu0 0.0
        %1062 = vmatprep.subr.mxu0 0.0
        %1063 = vmatpush1.msra.mxu0 0.0
        %1064 = vmatprep.subr.mxu0 0.0
        %1065 = vmatpush1.msra.mxu0 0.0
        %1066 = vmatprep.subr.mxu0 0.0
        %1067 = vmatpush1.msra.mxu0 0.0
        %1068 = vmatprep.subr.mxu0 0.0
        %1069 = vmatpush1.msra.mxu0 0.0
        %1070 = vmatprep.subr.mxu0 0.0
        %1071 = vmatpush1.msra.mxu0 0.0
        %1072 = vmatprep.subr.mxu0 0.0
        %1073 = vmatpush1.msra.mxu0 0.0
        %1074 = vmatprep.subr.mxu0 0.0
        %1075 = vmatpush1.msra.mxu0 0.0
        %1076 = vmatprep.subr.mxu0 0.0
        %1077 = vmatpush1.msra.mxu0 0.0
        %1078 = vmatprep.subr.mxu0 0.0
        %1079 = vmatpush1.msra.mxu0 0.0
        %1080 = vmatprep.subr.mxu0 0.0
        %1081 = vmatpush1.msra.mxu0 %v1051
        %1082 = vmatprep.subr.mxu0 0.0
        %1083 = vmatpush1.msra.mxu0 %v1050
        %1084 = vmatprep.subr.mxu0 0.0
        %1085 = vmatpush2.msra.mxu0 0.0
        %1086 = vmatprep.subr.mxu0 0.0
        %1087 = vmatpush2.msra.mxu0 0.0
        %1088 = vmatprep.subr.mxu0 0.0
        %1089 = vmatpush2.msra.mxu0 0.0
        %1090 = vmatprep.subr.mxu0 0.0
        %1091 = vmatpush2.msra.mxu0 0.0
        %1092 = vmatprep.subr.mxu0 0.0
        %1093 = vmatpush2.msra.mxu0 0.0
        %1094 = vmatprep.subr.mxu0 0.0
        %1095 = vmatpush2.msra.mxu0 0.0
        %1096 = vmatprep.subr.mxu0 0.0
        %1097 = vmatpush2.msra.mxu0 0.0
        %1098 = vmatprep.subr.mxu0 0.0
        %1099 = vmatpush2.msra.mxu0 0.0
        %1100 = vmatprep.subr.mxu0 0.0
        %1101 = vmatpush2.msra.mxu0 0.0
        %1102 = vmatprep.subr.mxu0 0.0
        %1103 = vmatpush2.msra.mxu0 0.0
        %1104 = vmatprep.subr.mxu0 0.0
        %1105 = vmatpush2.msra.mxu0 0.0
        %1106 = vmatprep.subr.mxu0 0.0
        %1107 = vmatpush2.msra.mxu0 0.0
        %1108 = vmatprep.subr.mxu0 0.0
        %1109 = vmatpush2.msra.mxu0 0.0
        %1110 = vmatprep.subr.mxu0 0.0
        %1111 = vmatpush2.msra.mxu0 0.0
        %1112 = vmatprep.subr.mxu0 0.0
        %1113 = vmatpush2.msra.mxu0 0.0
        %1114 = vmatprep.subr.mxu0 0.0
        %1115 = vmatpush2.msra.mxu0 0.0
        %1116 = vmatprep.mubr.f32.mxu0 0.0
        %1117 = vmatmul.mubr.f32.gmra.mxu0 %v617
        %v1118 = vpop.f32.mrf.mxu0
        %v1119 = vadd.f32 0.0, %v1118
        %v1120 = vpop.f32.mrf.mxu0
        %1121 = vmatprep.mubr.f32.mxu0 0.0
        %1122 = vmatmul.mubr.f32.gmra.mxu0 %v620
        %v1123 = vpop.f32.mrf.mxu0
        %v1124 = vadd.f32 0.0, %v1123
        %v1125 = vpop.f32.mrf.mxu0
        %1126 = vdwg.mxu0
        %v1127 = vlaneseq
        %v1128 = vshrl.u32 %v1127, 7
        %v1129 = vsub.s32 0, %v1128
        %v1130 = vrot.slane %v1049, %v1129
        %v1131 = vadd.f32 %v1130, %v1119
        %v1132 = vadd.f32 %v1130, %v1124
        %v1133 = vld [vmem:[#allocation10 + $0xa8] sm:$0xff]
        %v1134 = vld [vmem:[#allocation10 + $0xb0] sm:$0xff]
        %v1136 = vsel %vm380, %v772, 0
        %v1139 = vsel %vm380, %v777, 0
        %1141 = vmatprep.subr.mxu0 0.0
        %1142 = vmatpush1.msra.mxu0 0.0
        %1143 = vmatprep.subr.mxu0 0.0
        %1144 = vmatpush1.msra.mxu0 0.0
        %1145 = vmatprep.subr.mxu0 0.0
        %1146 = vmatpush1.msra.mxu0 0.0
        %1147 = vmatprep.subr.mxu0 0.0
        %1148 = vmatpush1.msra.mxu0 0.0
        %1149 = vmatprep.subr.mxu0 0.0
        %1150 = vmatpush1.msra.mxu0 0.0
        %1151 = vmatprep.subr.mxu0 0.0
        %1152 = vmatpush1.msra.mxu0 0.0
        %1153 = vmatprep.subr.mxu0 0.0
        %1154 = vmatpush1.msra.mxu0 0.0
        %1155 = vmatprep.subr.mxu0 0.0
        %1156 = vmatpush1.msra.mxu0 0.0
        %1157 = vmatprep.subr.mxu0 0.0
        %1158 = vmatpush1.msra.mxu0 0.0
        %1159 = vmatprep.subr.mxu0 0.0
        %1160 = vmatpush1.msra.mxu0 0.0
        %1161 = vmatprep.subr.mxu0 0.0
        %1162 = vmatpush1.msra.mxu0 0.0
        %1163 = vmatprep.subr.mxu0 0.0
        %1164 = vmatpush1.msra.mxu0 0.0
        %1165 = vmatprep.subr.mxu0 0.0
        %1166 = vmatpush1.msra.mxu0 0.0
        %1167 = vmatprep.subr.mxu0 0.0
        %1168 = vmatpush1.msra.mxu0 0.0
        %1169 = vmatprep.subr.mxu0 0.0
        %1170 = vmatpush1.msra.mxu0 %v1134
        %1171 = vmatprep.subr.mxu0 0.0
        %1172 = vmatpush1.msra.mxu0 %v1133
        %1173 = vmatprep.subr.mxu0 0.0
        %1174 = vmatpush2.msra.mxu0 0.0
        %1175 = vmatprep.subr.mxu0 0.0
        %1176 = vmatpush2.msra.mxu0 0.0
        %1177 = vmatprep.subr.mxu0 0.0
        %1178 = vmatpush2.msra.mxu0 0.0
        %1179 = vmatprep.subr.mxu0 0.0
        %1180 = vmatpush2.msra.mxu0 0.0
        %1181 = vmatprep.subr.mxu0 0.0
        %1182 = vmatpush2.msra.mxu0 0.0
        %1183 = vmatprep.subr.mxu0 0.0
        %1184 = vmatpush2.msra.mxu0 0.0
        %1185 = vmatprep.subr.mxu0 0.0
        %1186 = vmatpush2.msra.mxu0 0.0
        %1187 = vmatprep.subr.mxu0 0.0
        %1188 = vmatpush2.msra.mxu0 0.0
        %1189 = vmatprep.subr.mxu0 0.0
        %1190 = vmatpush2.msra.mxu0 0.0
        %1191 = vmatprep.subr.mxu0 0.0
        %1192 = vmatpush2.msra.mxu0 0.0
        %1193 = vmatprep.subr.mxu0 0.0
        %1194 = vmatpush2.msra.mxu0 0.0
        %1195 = vmatprep.subr.mxu0 0.0
        %1196 = vmatpush2.msra.mxu0 0.0
        %1197 = vmatprep.subr.mxu0 0.0
        %1198 = vmatpush2.msra.mxu0 0.0
        %1199 = vmatprep.subr.mxu0 0.0
        %1200 = vmatpush2.msra.mxu0 0.0
        %1201 = vmatprep.subr.mxu0 0.0
        %1202 = vmatpush2.msra.mxu0 0.0
        %1203 = vmatprep.subr.mxu0 0.0
        %1204 = vmatpush2.msra.mxu0 0.0
        %1205 = vmatprep.mubr.f32.mxu0 0.0
        %1206 = vmatmul.mubr.f32.gmra.mxu0 %v1136
        %v1207 = vpop.f32.mrf.mxu0
        %v1208 = vadd.f32 0.0, %v1207
        %v1209 = vpop.f32.mrf.mxu0
        %1210 = vmatprep.mubr.f32.mxu0 0.0
        %1211 = vmatmul.mubr.f32.gmra.mxu0 %v1139
        %v1212 = vpop.f32.mrf.mxu0
        %v1213 = vadd.f32 0.0, %v1212
        %v1214 = vpop.f32.mrf.mxu0
        %1215 = vdwg.mxu0
        %v1216 = vadd.f32 %v1131, %v1208
        %v1217 = vadd.f32 %v1132, %v1213
        %v1218 = vld [vmem:[#allocation10 + $0xb8] sm:$0xff]
        %v1219 = vld [vmem:[#allocation10 + $0xc0] sm:$0xff]
        %v1221 = vsel %vm380, %v863, 0
        %v1224 = vsel %vm380, %v868, 0
        %1226 = vmatprep.subr.mxu0 0.0
        %1227 = vmatpush1.msra.mxu0 0.0
        %1228 = vmatprep.subr.mxu0 0.0
        %1229 = vmatpush1.msra.mxu0 0.0
        %1230 = vmatprep.subr.mxu0 0.0
        %1231 = vmatpush1.msra.mxu0 0.0
        %1232 = vmatprep.subr.mxu0 0.0
        %1233 = vmatpush1.msra.mxu0 0.0
        %1234 = vmatprep.subr.mxu0 0.0
        %1235 = vmatpush1.msra.mxu0 0.0
        %1236 = vmatprep.subr.mxu0 0.0
        %1237 = vmatpush1.msra.mxu0 0.0
        %1238 = vmatprep.subr.mxu0 0.0
        %1239 = vmatpush1.msra.mxu0 0.0
        %1240 = vmatprep.subr.mxu0 0.0
        %1241 = vmatpush1.msra.mxu0 0.0
        %1242 = vmatprep.subr.mxu0 0.0
        %1243 = vmatpush1.msra.mxu0 0.0
        %1244 = vmatprep.subr.mxu0 0.0
        %1245 = vmatpush1.msra.mxu0 0.0
        %1246 = vmatprep.subr.mxu0 0.0
        %1247 = vmatpush1.msra.mxu0 0.0
        %1248 = vmatprep.subr.mxu0 0.0
        %1249 = vmatpush1.msra.mxu0 0.0
        %1250 = vmatprep.subr.mxu0 0.0
        %1251 = vmatpush1.msra.mxu0 0.0
        %1252 = vmatprep.subr.mxu0 0.0
        %1253 = vmatpush1.msra.mxu0 0.0
        %1254 = vmatprep.subr.mxu0 0.0
        %1255 = vmatpush1.msra.mxu0 %v1219
        %1256 = vmatprep.subr.mxu0 0.0
        %1257 = vmatpush1.msra.mxu0 %v1218
        %1258 = vmatprep.subr.mxu0 0.0
        %1259 = vmatpush2.msra.mxu0 0.0
        %1260 = vmatprep.subr.mxu0 0.0
        %1261 = vmatpush2.msra.mxu0 0.0
        %1262 = vmatprep.subr.mxu0 0.0
        %1263 = vmatpush2.msra.mxu0 0.0
        %1264 = vmatprep.subr.mxu0 0.0
        %1265 = vmatpush2.msra.mxu0 0.0
        %1266 = vmatprep.subr.mxu0 0.0
        %1267 = vmatpush2.msra.mxu0 0.0
        %1268 = vmatprep.subr.mxu0 0.0
        %1269 = vmatpush2.msra.mxu0 0.0
        %1270 = vmatprep.subr.mxu0 0.0
        %1271 = vmatpush2.msra.mxu0 0.0
        %1272 = vmatprep.subr.mxu0 0.0
        %1273 = vmatpush2.msra.mxu0 0.0
        %1274 = vmatprep.subr.mxu0 0.0
        %1275 = vmatpush2.msra.mxu0 0.0
        %1276 = vmatprep.subr.mxu0 0.0
        %1277 = vmatpush2.msra.mxu0 0.0
        %1278 = vmatprep.subr.mxu0 0.0
        %1279 = vmatpush2.msra.mxu0 0.0
        %1280 = vmatprep.subr.mxu0 0.0
        %1281 = vmatpush2.msra.mxu0 0.0
        %1282 = vmatprep.subr.mxu0 0.0
        %1283 = vmatpush2.msra.mxu0 0.0
        %1284 = vmatprep.subr.mxu0 0.0
        %1285 = vmatpush2.msra.mxu0 0.0
        %1286 = vmatprep.subr.mxu0 0.0
        %1287 = vmatpush2.msra.mxu0 0.0
        %1288 = vmatprep.subr.mxu0 0.0
        %1289 = vmatpush2.msra.mxu0 0.0
        %1290 = vmatprep.mubr.f32.mxu0 0.0
        %1291 = vmatmul.mubr.f32.gmra.mxu0 %v1221
        %v1292 = vpop.f32.mrf.mxu0
        %v1293 = vadd.f32 0.0, %v1292
        %v1294 = vpop.f32.mrf.mxu0
        %1295 = vmatprep.mubr.f32.mxu0 0.0
        %1296 = vmatmul.mubr.f32.gmra.mxu0 %v1224
        %v1297 = vpop.f32.mrf.mxu0
        %v1298 = vadd.f32 0.0, %v1297
        %v1299 = vpop.f32.mrf.mxu0
        %1300 = vdwg.mxu0
        %v1301 = vadd.f32 %v1216, %v1293
        %v1302 = vadd.f32 %v1217, %v1298
        %v1303 = vld [vmem:[#allocation10 + $0xc8] sm:$0xff]
        %v1304 = vld [vmem:[#allocation10 + $0xd0] sm:$0xff]
        %v1306 = vsel %vm380, %v952, 0
        %v1309 = vsel %vm380, %v957, 0
        %1311 = vmatprep.subr.mxu0 0.0
        %1312 = vmatpush1.msra.mxu0 0.0
        %1313 = vmatprep.subr.mxu0 0.0
        %1314 = vmatpush1.msra.mxu0 0.0
        %1315 = vmatprep.subr.mxu0 0.0
        %1316 = vmatpush1.msra.mxu0 0.0
        %1317 = vmatprep.subr.mxu0 0.0
        %1318 = vmatpush1.msra.mxu0 0.0
        %1319 = vmatprep.subr.mxu0 0.0
        %1320 = vmatpush1.msra.mxu0 0.0
        %1321 = vmatprep.subr.mxu0 0.0
        %1322 = vmatpush1.msra.mxu0 0.0
        %1323 = vmatprep.subr.mxu0 0.0
        %1324 = vmatpush1.msra.mxu0 0.0
        %1325 = vmatprep.subr.mxu0 0.0
        %1326 = vmatpush1.msra.mxu0 0.0
        %1327 = vmatprep.subr.mxu0 0.0
        %1328 = vmatpush1.msra.mxu0 0.0
        %1329 = vmatprep.subr.mxu0 0.0
        %1330 = vmatpush1.msra.mxu0 0.0
        %1331 = vmatprep.subr.mxu0 0.0
        %1332 = vmatpush1.msra.mxu0 0.0
        %1333 = vmatprep.subr.mxu0 0.0
        %1334 = vmatpush1.msra.mxu0 0.0
        %1335 = vmatprep.subr.mxu0 0.0
        %1336 = vmatpush1.msra.mxu0 0.0
        %1337 = vmatprep.subr.mxu0 0.0
        %1338 = vmatpush1.msra.mxu0 0.0
        %1339 = vmatprep.subr.mxu0 0.0
        %1340 = vmatpush1.msra.mxu0 %v1304
        %1341 = vmatprep.subr.mxu0 0.0
        %1342 = vmatpush1.msra.mxu0 %v1303
        %1343 = vmatprep.subr.mxu0 0.0
        %1344 = vmatpush2.msra.mxu0 0.0
        %1345 = vmatprep.subr.mxu0 0.0
        %1346 = vmatpush2.msra.mxu0 0.0
        %1347 = vmatprep.subr.mxu0 0.0
        %1348 = vmatpush2.msra.mxu0 0.0
        %1349 = vmatprep.subr.mxu0 0.0
        %1350 = vmatpush2.msra.mxu0 0.0
        %1351 = vmatprep.subr.mxu0 0.0
        %1352 = vmatpush2.msra.mxu0 0.0
        %1353 = vmatprep.subr.mxu0 0.0
        %1354 = vmatpush2.msra.mxu0 0.0
        %1355 = vmatprep.subr.mxu0 0.0
        %1356 = vmatpush2.msra.mxu0 0.0
        %1357 = vmatprep.subr.mxu0 0.0
        %1358 = vmatpush2.msra.mxu0 0.0
        %1359 = vmatprep.subr.mxu0 0.0
        %1360 = vmatpush2.msra.mxu0 0.0
        %1361 = vmatprep.subr.mxu0 0.0
        %1362 = vmatpush2.msra.mxu0 0.0
        %1363 = vmatprep.subr.mxu0 0.0
        %1364 = vmatpush2.msra.mxu0 0.0
        %1365 = vmatprep.subr.mxu0 0.0
        %1366 = vmatpush2.msra.mxu0 0.0
        %1367 = vmatprep.subr.mxu0 0.0
        %1368 = vmatpush2.msra.mxu0 0.0
        %1369 = vmatprep.subr.mxu0 0.0
        %1370 = vmatpush2.msra.mxu0 0.0
        %1371 = vmatprep.subr.mxu0 0.0
        %1372 = vmatpush2.msra.mxu0 0.0
        %1373 = vmatprep.subr.mxu0 0.0
        %1374 = vmatpush2.msra.mxu0 0.0
        %1375 = vmatprep.mubr.f32.mxu0 0.0
        %1376 = vmatmul.mubr.f32.gmra.mxu0 %v1306
        %v1377 = vpop.f32.mrf.mxu0
        %v1378 = vadd.f32 0.0, %v1377
        %v1379 = vpop.f32.mrf.mxu0
        %1380 = vmatprep.mubr.f32.mxu0 0.0
        %1381 = vmatmul.mubr.f32.gmra.mxu0 %v1309
        %v1382 = vpop.f32.mrf.mxu0
        %v1383 = vadd.f32 0.0, %v1382
        %v1384 = vpop.f32.mrf.mxu0
        %1385 = vdwg.mxu0
        %v1386 = vadd.f32 %v1301, %v1378
        %v1387 = vadd.f32 %v1302, %v1383
        %v1388 = vld [vmem:[#allocation10 + $0xd8] sm:$0xff]
        %v1389 = vld [vmem:[#allocation10 + $0xe0] sm:$0xff]
        %v1391 = vsel %vm380, %v1041, 0
        %v1394 = vsel %vm380, %v1046, 0
        %1396 = vmatprep.subr.mxu0 0.0
        %1397 = vmatpush1.msra.mxu0 0.0
        %1398 = vmatprep.subr.mxu0 0.0
        %1399 = vmatpush1.msra.mxu0 0.0
        %1400 = vmatprep.subr.mxu0 0.0
        %1401 = vmatpush1.msra.mxu0 0.0
        %1402 = vmatprep.subr.mxu0 0.0
        %1403 = vmatpush1.msra.mxu0 0.0
        %1404 = vmatprep.subr.mxu0 0.0
        %1405 = vmatpush1.msra.mxu0 0.0
        %1406 = vmatprep.subr.mxu0 0.0
        %1407 = vmatpush1.msra.mxu0 0.0
        %1408 = vmatprep.subr.mxu0 0.0
        %1409 = vmatpush1.msra.mxu0 0.0
        %1410 = vmatprep.subr.mxu0 0.0
        %1411 = vmatpush1.msra.mxu0 0.0
        %1412 = vmatprep.subr.mxu0 0.0
        %1413 = vmatpush1.msra.mxu0 0.0
        %1414 = vmatprep.subr.mxu0 0.0
        %1415 = vmatpush1.msra.mxu0 0.0
        %1416 = vmatprep.subr.mxu0 0.0
        %1417 = vmatpush1.msra.mxu0 0.0
        %1418 = vmatprep.subr.mxu0 0.0
        %1419 = vmatpush1.msra.mxu0 0.0
        %1420 = vmatprep.subr.mxu0 0.0
        %1421 = vmatpush1.msra.mxu0 0.0
        %1422 = vmatprep.subr.mxu0 0.0
        %1423 = vmatpush1.msra.mxu0 0.0
        %1424 = vmatprep.subr.mxu0 0.0
        %1425 = vmatpush1.msra.mxu0 %v1389
        %1426 = vmatprep.subr.mxu0 0.0
        %1427 = vmatpush1.msra.mxu0 %v1388
        %1428 = vmatprep.subr.mxu0 0.0
        %1429 = vmatpush2.msra.mxu0 0.0
        %1430 = vmatprep.subr.mxu0 0.0
        %1431 = vmatpush2.msra.mxu0 0.0
        %1432 = vmatprep.subr.mxu0 0.0
        %1433 = vmatpush2.msra.mxu0 0.0
        %1434 = vmatprep.subr.mxu0 0.0
        %1435 = vmatpush2.msra.mxu0 0.0
        %1436 = vmatprep.subr.mxu0 0.0
        %1437 = vmatpush2.msra.mxu0 0.0
        %1438 = vmatprep.subr.mxu0 0.0
        %1439 = vmatpush2.msra.mxu0 0.0
        %1440 = vmatprep.subr.mxu0 0.0
        %1441 = vmatpush2.msra.mxu0 0.0
        %1442 = vmatprep.subr.mxu0 0.0
        %1443 = vmatpush2.msra.mxu0 0.0
        %1444 = vmatprep.subr.mxu0 0.0
        %1445 = vmatpush2.msra.mxu0 0.0
        %1446 = vmatprep.subr.mxu0 0.0
        %1447 = vmatpush2.msra.mxu0 0.0
        %1448 = vmatprep.subr.mxu0 0.0
        %1449 = vmatpush2.msra.mxu0 0.0
        %1450 = vmatprep.subr.mxu0 0.0
        %1451 = vmatpush2.msra.mxu0 0.0
        %1452 = vmatprep.subr.mxu0 0.0
        %1453 = vmatpush2.msra.mxu0 0.0
        %1454 = vmatprep.subr.mxu0 0.0
        %1455 = vmatpush2.msra.mxu0 0.0
        %1456 = vmatprep.subr.mxu0 0.0
        %1457 = vmatpush2.msra.mxu0 0.0
        %1458 = vmatprep.subr.mxu0 0.0
        %1459 = vmatpush2.msra.mxu0 0.0
        %1460 = vmatprep.mubr.f32.mxu0 0.0
        %1461 = vmatmul.mubr.f32.gmra.mxu0 %v1391
        %v1462 = vpop.f32.mrf.mxu0
        %v1463 = vadd.f32 0.0, %v1462
        %v1464 = vpop.f32.mrf.mxu0
        %1465 = vmatprep.mubr.f32.mxu0 0.0
        %1466 = vmatmul.mubr.f32.gmra.mxu0 %v1394
        %v1467 = vpop.f32.mrf.mxu0
        %v1468 = vadd.f32 0.0, %v1467
        %v1469 = vpop.f32.mrf.mxu0
        %1470 = vdwg.mxu0
        %v1471 = vadd.f32 %v1386, %v1463
        %v1472 = vadd.f32 %v1387, %v1468
        %1475 = vrot.lane.b32.xlu0 %v1471, 112
        %v1476 = vpop.permute.xlu0 %1475
        %1477 = vrot.lane.b32.xlu0 %v1472, 112
        %v1478 = vpop.permute.xlu0 %1477
        %v1482 = vsel %vm380, %v369, 0
        %v1485 = vsel %vm380, %v370, 0
        %1487 = vmatprep.subr.mxu0 0.0
        %1488 = vmatpush1.msra.mxu0 0.0
        %1489 = vmatprep.subr.mxu0 0.0
        %1490 = vmatpush1.msra.mxu0 0.0
        %1491 = vmatprep.subr.mxu0 0.0
        %1492 = vmatpush1.msra.mxu0 0.0
        %1493 = vmatprep.subr.mxu0 0.0
        %1494 = vmatpush1.msra.mxu0 0.0
        %1495 = vmatprep.subr.mxu0 0.0
        %1496 = vmatpush1.msra.mxu0 0.0
        %1497 = vmatprep.subr.mxu0 0.0
        %1498 = vmatpush1.msra.mxu0 0.0
        %1499 = vmatprep.subr.mxu0 0.0
        %1500 = vmatpush1.msra.mxu0 0.0
        %1501 = vmatprep.subr.mxu0 0.0
        %1502 = vmatpush1.msra.mxu0 0.0
        %1503 = vmatprep.subr.mxu0 0.0
        %1504 = vmatpush1.msra.mxu0 0.0
        %1505 = vmatprep.subr.mxu0 0.0
        %1506 = vmatpush1.msra.mxu0 0.0
        %1507 = vmatprep.subr.mxu0 0.0
        %1508 = vmatpush1.msra.mxu0 0.0
        %1509 = vmatprep.subr.mxu0 0.0
        %1510 = vmatpush1.msra.mxu0 0.0
        %1511 = vmatprep.subr.mxu0 0.0
        %1512 = vmatpush1.msra.mxu0 0.0
        %1513 = vmatprep.subr.mxu0 0.0
        %1514 = vmatpush1.msra.mxu0 0.0
        %1515 = vmatprep.subr.mxu0 0.0
        %1516 = vmatpush1.msra.mxu0 %v1472
        %1517 = vmatprep.subr.mxu0 0.0
        %1518 = vmatpush1.msra.mxu0 %v1471
        %1519 = vmatprep.subr.mxu0 0.0
        %1520 = vmatpush2.msra.mxu0 0.0
        %1521 = vmatprep.subr.mxu0 0.0
        %1522 = vmatpush2.msra.mxu0 0.0
        %1523 = vmatprep.subr.mxu0 0.0
        %1524 = vmatpush2.msra.mxu0 0.0
        %1525 = vmatprep.subr.mxu0 0.0
        %1526 = vmatpush2.msra.mxu0 0.0
        %1527 = vmatprep.subr.mxu0 0.0
        %1528 = vmatpush2.msra.mxu0 0.0
        %1529 = vmatprep.subr.mxu0 0.0
        %1530 = vmatpush2.msra.mxu0 0.0
        %1531 = vmatprep.subr.mxu0 0.0
        %1532 = vmatpush2.msra.mxu0 0.0
        %1533 = vmatprep.subr.mxu0 0.0
        %1534 = vmatpush2.msra.mxu0 0.0
        %1535 = vmatprep.subr.mxu0 0.0
        %1536 = vmatpush2.msra.mxu0 0.0
        %1537 = vmatprep.subr.mxu0 0.0
        %1538 = vmatpush2.msra.mxu0 0.0
        %1539 = vmatprep.subr.mxu0 0.0
        %1540 = vmatpush2.msra.mxu0 0.0
        %1541 = vmatprep.subr.mxu0 0.0
        %1542 = vmatpush2.msra.mxu0 0.0
        %1543 = vmatprep.subr.mxu0 0.0
        %1544 = vmatpush2.msra.mxu0 0.0
        %1545 = vmatprep.subr.mxu0 0.0
        %1546 = vmatpush2.msra.mxu0 0.0
        %1547 = vmatprep.subr.mxu0 0.0
        %1548 = vmatpush2.msra.mxu0 0.0
        %1549 = vmatprep.subr.mxu0 0.0
        %1550 = vmatpush2.msra.mxu0 0.0
        %1551 = vmatprep.mubr.f32.mxu0 0.0
        %1552 = vmatmul.mubr.f32.gmra.mxu0 %v1482
        %v1553 = vpop.f32.mrf.mxu0
        %v1554 = vadd.f32 %v1476, %v1553
        %v1555 = vpop.f32.mrf.mxu0
        %1556 = vmatprep.mubr.f32.mxu0 0.0
        %1557 = vmatmul.mubr.f32.gmra.mxu0 %v1485
        %v1558 = vpop.f32.mrf.mxu0
        %v1559 = vadd.f32 %v1478, %v1558
        %v1560 = vpop.f32.mrf.mxu0
        %1561 = vdwg.mxu0
        %1562 = vrot.lane.b32.xlu0 %v1471, 96
        %v1563 = vpop.permute.xlu0 %1562
        %1564 = vrot.lane.b32.xlu0 %v1472, 96
        %v1565 = vpop.permute.xlu0 %1564
        %v1569 = vsel %vm380, %v371, 0
        %v1572 = vsel %vm380, %v372, 0
        %1574 = vmatprep.subr.mxu0 0.0
        %1575 = vmatpush1.msra.mxu0 0.0
        %1576 = vmatprep.subr.mxu0 0.0
        %1577 = vmatpush1.msra.mxu0 0.0
        %1578 = vmatprep.subr.mxu0 0.0
        %1579 = vmatpush1.msra.mxu0 0.0
        %1580 = vmatprep.subr.mxu0 0.0
        %1581 = vmatpush1.msra.mxu0 0.0
        %1582 = vmatprep.subr.mxu0 0.0
        %1583 = vmatpush1.msra.mxu0 0.0
        %1584 = vmatprep.subr.mxu0 0.0
        %1585 = vmatpush1.msra.mxu0 0.0
        %1586 = vmatprep.subr.mxu0 0.0
        %1587 = vmatpush1.msra.mxu0 0.0
        %1588 = vmatprep.subr.mxu0 0.0
        %1589 = vmatpush1.msra.mxu0 0.0
        %1590 = vmatprep.subr.mxu0 0.0
        %1591 = vmatpush1.msra.mxu0 0.0
        %1592 = vmatprep.subr.mxu0 0.0
        %1593 = vmatpush1.msra.mxu0 0.0
        %1594 = vmatprep.subr.mxu0 0.0
        %1595 = vmatpush1.msra.mxu0 0.0
        %1596 = vmatprep.subr.mxu0 0.0
        %1597 = vmatpush1.msra.mxu0 0.0
        %1598 = vmatprep.subr.mxu0 0.0
        %1599 = vmatpush1.msra.mxu0 0.0
        %1600 = vmatprep.subr.mxu0 0.0
        %1601 = vmatpush1.msra.mxu0 0.0
        %1602 = vmatprep.subr.mxu0 0.0
        %1603 = vmatpush1.msra.mxu0 %v1565
        %1604 = vmatprep.subr.mxu0 0.0
        %1605 = vmatpush1.msra.mxu0 %v1563
        %1606 = vmatprep.subr.mxu0 0.0
        %1607 = vmatpush2.msra.mxu0 0.0
        %1608 = vmatprep.subr.mxu0 0.0
        %1609 = vmatpush2.msra.mxu0 0.0
        %1610 = vmatprep.subr.mxu0 0.0
        %1611 = vmatpush2.msra.mxu0 0.0
        %1612 = vmatprep.subr.mxu0 0.0
        %1613 = vmatpush2.msra.mxu0 0.0
        %1614 = vmatprep.subr.mxu0 0.0
        %1615 = vmatpush2.msra.mxu0 0.0
        %1616 = vmatprep.subr.mxu0 0.0
        %1617 = vmatpush2.msra.mxu0 0.0
        %1618 = vmatprep.subr.mxu0 0.0
        %1619 = vmatpush2.msra.mxu0 0.0
        %1620 = vmatprep.subr.mxu0 0.0
        %1621 = vmatpush2.msra.mxu0 0.0
        %1622 = vmatprep.subr.mxu0 0.0
        %1623 = vmatpush2.msra.mxu0 0.0
        %1624 = vmatprep.subr.mxu0 0.0
        %1625 = vmatpush2.msra.mxu0 0.0
        %1626 = vmatprep.subr.mxu0 0.0
        %1627 = vmatpush2.msra.mxu0 0.0
        %1628 = vmatprep.subr.mxu0 0.0
        %1629 = vmatpush2.msra.mxu0 0.0
        %1630 = vmatprep.subr.mxu0 0.0
        %1631 = vmatpush2.msra.mxu0 0.0
        %1632 = vmatprep.subr.mxu0 0.0
        %1633 = vmatpush2.msra.mxu0 0.0
        %1634 = vmatprep.subr.mxu0 0.0
        %1635 = vmatpush2.msra.mxu0 0.0
        %1636 = vmatprep.subr.mxu0 0.0
        %1637 = vmatpush2.msra.mxu0 0.0
        %1638 = vmatprep.mubr.f32.mxu0 0.0
        %1639 = vmatmul.mubr.f32.gmra.mxu0 %v1569
        %v1640 = vpop.f32.mrf.mxu0
        %v1641 = vadd.f32 0.0, %v1640
        %v1642 = vpop.f32.mrf.mxu0
        %1643 = vmatprep.mubr.f32.mxu0 0.0
        %1644 = vmatmul.mubr.f32.gmra.mxu0 %v1572
        %v1645 = vpop.f32.mrf.mxu0
        %v1646 = vadd.f32 0.0, %v1645
        %v1647 = vpop.f32.mrf.mxu0
        %1648 = vdwg.mxu0
        %v1649 = vadd.f32 %v1554, %v1641
        %v1650 = vadd.f32 %v1559, %v1646
        %v1651 = vld [vmem:[#allocation10 + $0x110] sm:$0xf]
        %vm1652 = vcmask 15360
        %v1654 = vsel %vm1652, %v1651, 0
        %vm1656 = vcmask 1041408
        %v1658 = vsel %vm1656, %v451, 0
        %1660 = vmatprep.subr.mxu0 0.0
        %1661 = vmatpush1.msra.mxu0 0.0
        %1662 = vmatprep.subr.mxu0 0.0
        %1663 = vmatpush1.msra.mxu0 0.0
        %1664 = vmatprep.subr.mxu0 0.0
        %1665 = vmatpush1.msra.mxu0 0.0
        %1666 = vmatprep.subr.mxu0 0.0
        %1667 = vmatpush1.msra.mxu0 0.0
        %1668 = vmatprep.subr.mxu0 0.0
        %1669 = vmatpush1.msra.mxu0 0.0
        %1670 = vmatprep.subr.mxu0 0.0
        %1671 = vmatpush1.msra.mxu0 0.0
        %1672 = vmatprep.subr.mxu0 0.0
        %1673 = vmatpush1.msra.mxu0 0.0
        %1674 = vmatprep.subr.mxu0 0.0
        %1675 = vmatpush1.msra.mxu0 0.0
        %1676 = vmatprep.subr.mxu0 0.0
        %1677 = vmatpush1.msra.mxu0 0.0
        %1678 = vmatprep.subr.mxu0 0.0
        %1679 = vmatpush1.msra.mxu0 0.0
        %1680 = vmatprep.subr.mxu0 0.0
        %1681 = vmatpush1.msra.mxu0 0.0
        %1682 = vmatprep.subr.mxu0 0.0
        %1683 = vmatpush1.msra.mxu0 0.0
        %1684 = vmatprep.subr.mxu0 0.0
        %1685 = vmatpush1.msra.mxu0 0.0
        %1686 = vmatprep.subr.mxu0 0.0
        %1687 = vmatpush1.msra.mxu0 0.0
        %1688 = vmatprep.subr.mxu0 0.0
        %1689 = vmatpush1.msra.mxu0 0.0
        %1690 = vmatprep.subr.mxu0 0.0
        %1691 = vmatpush1.msra.mxu0 %v1658
        %1692 = vmatprep.subr.mxu0 0.0
        %1693 = vmatpush2.msra.mxu0 0.0
        %1694 = vmatprep.subr.mxu0 0.0
        %1695 = vmatpush2.msra.mxu0 0.0
        %1696 = vmatprep.subr.mxu0 0.0
        %1697 = vmatpush2.msra.mxu0 0.0
        %1698 = vmatprep.subr.mxu0 0.0
        %1699 = vmatpush2.msra.mxu0 0.0
        %1700 = vmatprep.subr.mxu0 0.0
        %1701 = vmatpush2.msra.mxu0 0.0
        %1702 = vmatprep.subr.mxu0 0.0
        %1703 = vmatpush2.msra.mxu0 0.0
        %1704 = vmatprep.subr.mxu0 0.0
        %1705 = vmatpush2.msra.mxu0 0.0
        %1706 = vmatprep.subr.mxu0 0.0
        %1707 = vmatpush2.msra.mxu0 0.0
        %1708 = vmatprep.subr.mxu0 0.0
        %1709 = vmatpush2.msra.mxu0 0.0
        %1710 = vmatprep.subr.mxu0 0.0
        %1711 = vmatpush2.msra.mxu0 0.0
        %1712 = vmatprep.subr.mxu0 0.0
        %1713 = vmatpush2.msra.mxu0 0.0
        %1714 = vmatprep.subr.mxu0 0.0
        %1715 = vmatpush2.msra.mxu0 0.0
        %1716 = vmatprep.subr.mxu0 0.0
        %1717 = vmatpush2.msra.mxu0 0.0
        %1718 = vmatprep.subr.mxu0 0.0
        %1719 = vmatpush2.msra.mxu0 0.0
        %1720 = vmatprep.subr.mxu0 0.0
        %1721 = vmatpush2.msra.mxu0 0.0
        %1722 = vmatprep.subr.mxu0 0.0
        %1723 = vmatpush2.msra.mxu0 0.0
        %1724 = vmatprep.mubr.f32.mxu0 0.0
        %1725 = vmatmul.mubr.f32.gmra.mxu0 %v1654
        %v1726 = vpop.f32.mrf.mxu0
        %v1727 = vadd.f32 0.0, %v1726
        %v1728 = vpop.f32.mrf.mxu0
        %1729 = vdwg.mxu0
        %v1730 = vadd.f32 %v531, %v1727
        %v1731 = vld [vmem:[#allocation10 + $0x118] sm:$0xff]
        %vm1732 = vcmask 31744
        %v1734 = vsel %vm1732, %v1731, 0
        %vm1736 = vcmask 1043456
        %v1738 = vsel %vm1736, %v1730, 0
        %1740 = vmatprep.subr.mxu0 0.0
        %1741 = vmatpush1.msra.mxu0 0.0
        %1742 = vmatprep.subr.mxu0 0.0
        %1743 = vmatpush1.msra.mxu0 0.0
        %1744 = vmatprep.subr.mxu0 0.0
        %1745 = vmatpush1.msra.mxu0 0.0
        %1746 = vmatprep.subr.mxu0 0.0
        %1747 = vmatpush1.msra.mxu0 0.0
        %1748 = vmatprep.subr.mxu0 0.0
        %1749 = vmatpush1.msra.mxu0 0.0
        %1750 = vmatprep.subr.mxu0 0.0
        %1751 = vmatpush1.msra.mxu0 0.0
        %1752 = vmatprep.subr.mxu0 0.0
        %1753 = vmatpush1.msra.mxu0 0.0
        %1754 = vmatprep.subr.mxu0 0.0
        %1755 = vmatpush1.msra.mxu0 0.0
        %1756 = vmatprep.subr.mxu0 0.0
        %1757 = vmatpush1.msra.mxu0 0.0
        %1758 = vmatprep.subr.mxu0 0.0
        %1759 = vmatpush1.msra.mxu0 0.0
        %1760 = vmatprep.subr.mxu0 0.0
        %1761 = vmatpush1.msra.mxu0 0.0
        %1762 = vmatprep.subr.mxu0 0.0
        %1763 = vmatpush1.msra.mxu0 0.0
        %1764 = vmatprep.subr.mxu0 0.0
        %1765 = vmatpush1.msra.mxu0 0.0
        %1766 = vmatprep.subr.mxu0 0.0
        %1767 = vmatpush1.msra.mxu0 0.0
        %1768 = vmatprep.subr.mxu0 0.0
        %1769 = vmatpush1.msra.mxu0 0.0
        %1770 = vmatprep.subr.mxu0 0.0
        %1771 = vmatpush1.msra.mxu0 %v1738
        %1772 = vmatprep.subr.mxu0 0.0
        %1773 = vmatpush2.msra.mxu0 0.0
        %1774 = vmatprep.subr.mxu0 0.0
        %1775 = vmatpush2.msra.mxu0 0.0
        %1776 = vmatprep.subr.mxu0 0.0
        %1777 = vmatpush2.msra.mxu0 0.0
        %1778 = vmatprep.subr.mxu0 0.0
        %1779 = vmatpush2.msra.mxu0 0.0
        %1780 = vmatprep.subr.mxu0 0.0
        %1781 = vmatpush2.msra.mxu0 0.0
        %1782 = vmatprep.subr.mxu0 0.0
        %1783 = vmatpush2.msra.mxu0 0.0
        %1784 = vmatprep.subr.mxu0 0.0
        %1785 = vmatpush2.msra.mxu0 0.0
        %1786 = vmatprep.subr.mxu0 0.0
        %1787 = vmatpush2.msra.mxu0 0.0
        %1788 = vmatprep.subr.mxu0 0.0
        %1789 = vmatpush2.msra.mxu0 0.0
        %1790 = vmatprep.subr.mxu0 0.0
        %1791 = vmatpush2.msra.mxu0 0.0
        %1792 = vmatprep.subr.mxu0 0.0
        %1793 = vmatpush2.msra.mxu0 0.0
        %1794 = vmatprep.subr.mxu0 0.0
        %1795 = vmatpush2.msra.mxu0 0.0
        %1796 = vmatprep.subr.mxu0 0.0
        %1797 = vmatpush2.msra.mxu0 0.0
        %1798 = vmatprep.subr.mxu0 0.0
        %1799 = vmatpush2.msra.mxu0 0.0
        %1800 = vmatprep.subr.mxu0 0.0
        %1801 = vmatpush2.msra.mxu0 0.0
        %1802 = vmatprep.subr.mxu0 0.0
        %1803 = vmatpush2.msra.mxu0 0.0
        %1804 = vmatprep.mubr.f32.mxu0 0.0
        %1805 = vmatmul.mubr.f32.gmra.mxu0 %v1734
        %v1806 = vpop.f32.mrf.mxu0
        %v1807 = vadd.f32 0.0, %v1806
        %v1808 = vpop.f32.mrf.mxu0
        %1809 = vdwg.mxu0
        %v1810 = vadd.f32 %v611, %v1807
        %v1811 = vld [vmem:[#allocation10 + $0x120] sm:$0xff]
        %v1812 = vld [vmem:[#allocation10 + $0x128] sm:$0xff]
        %vm1813 = vcmask 64512
        %v1815 = vsel %vm1813, %v1811, 0
        %v1818 = vsel %vm1813, %v1812, 0
        %1820 = vmatprep.subr.mxu0 0.0
        %1821 = vmatpush1.msra.mxu0 0.0
        %1822 = vmatprep.subr.mxu0 0.0
        %1823 = vmatpush1.msra.mxu0 0.0
        %1824 = vmatprep.subr.mxu0 0.0
        %1825 = vmatpush1.msra.mxu0 0.0
        %1826 = vmatprep.subr.mxu0 0.0
        %1827 = vmatpush1.msra.mxu0 0.0
        %1828 = vmatprep.subr.mxu0 0.0
        %1829 = vmatpush1.msra.mxu0 0.0
        %1830 = vmatprep.subr.mxu0 0.0
        %1831 = vmatpush1.msra.mxu0 0.0
        %1832 = vmatprep.subr.mxu0 0.0
        %1833 = vmatpush1.msra.mxu0 0.0
        %1834 = vmatprep.subr.mxu0 0.0
        %1835 = vmatpush1.msra.mxu0 0.0
        %1836 = vmatprep.subr.mxu0 0.0
        %1837 = vmatpush1.msra.mxu0 0.0
        %1838 = vmatprep.subr.mxu0 0.0
        %1839 = vmatpush1.msra.mxu0 0.0
        %1840 = vmatprep.subr.mxu0 0.0
        %1841 = vmatpush1.msra.mxu0 0.0
        %1842 = vmatprep.subr.mxu0 0.0
        %1843 = vmatpush1.msra.mxu0 0.0
        %1844 = vmatprep.subr.mxu0 0.0
        %1845 = vmatpush1.msra.mxu0 0.0
        %1846 = vmatprep.subr.mxu0 0.0
        %1847 = vmatpush1.msra.mxu0 0.0
        %1848 = vmatprep.subr.mxu0 0.0
        %1849 = vmatpush1.msra.mxu0 0.0
        %1850 = vmatprep.subr.mxu0 0.0
        %1851 = vmatpush1.msra.mxu0 %v1810
        %1852 = vmatprep.subr.mxu0 0.0
        %1853 = vmatpush2.msra.mxu0 0.0
        %1854 = vmatprep.subr.mxu0 0.0
        %1855 = vmatpush2.msra.mxu0 0.0
        %1856 = vmatprep.subr.mxu0 0.0
        %1857 = vmatpush2.msra.mxu0 0.0
        %1858 = vmatprep.subr.mxu0 0.0
        %1859 = vmatpush2.msra.mxu0 0.0
        %1860 = vmatprep.subr.mxu0 0.0
        %1861 = vmatpush2.msra.mxu0 0.0
        %1862 = vmatprep.subr.mxu0 0.0
        %1863 = vmatpush2.msra.mxu0 0.0
        %1864 = vmatprep.subr.mxu0 0.0
        %1865 = vmatpush2.msra.mxu0 0.0
        %1866 = vmatprep.subr.mxu0 0.0
        %1867 = vmatpush2.msra.mxu0 0.0
        %1868 = vmatprep.subr.mxu0 0.0
        %1869 = vmatpush2.msra.mxu0 0.0
        %1870 = vmatprep.subr.mxu0 0.0
        %1871 = vmatpush2.msra.mxu0 0.0
        %1872 = vmatprep.subr.mxu0 0.0
        %1873 = vmatpush2.msra.mxu0 0.0
        %1874 = vmatprep.subr.mxu0 0.0
        %1875 = vmatpush2.msra.mxu0 0.0
        %1876 = vmatprep.subr.mxu0 0.0
        %1877 = vmatpush2.msra.mxu0 0.0
        %1878 = vmatprep.subr.mxu0 0.0
        %1879 = vmatpush2.msra.mxu0 0.0
        %1880 = vmatprep.subr.mxu0 0.0
        %1881 = vmatpush2.msra.mxu0 0.0
        %1882 = vmatprep.subr.mxu0 0.0
        %1883 = vmatpush2.msra.mxu0 0.0
        %1884 = vmatprep.mubr.f32.mxu0 0.0
        %1885 = vmatmul.mubr.f32.gmra.mxu0 %v1815
        %v1886 = vpop.f32.mrf.mxu0
        %v1887 = vadd.f32 0.0, %v1886
        %v1888 = vpop.f32.mrf.mxu0
        %1889 = vmatprep.mubr.f32.mxu0 0.0
        %1890 = vmatmul.mubr.f32.gmra.mxu0 %v1818
        %v1891 = vpop.f32.mrf.mxu0
        %v1892 = vadd.f32 0.0, %v1891
        %v1893 = vpop.f32.mrf.mxu0
        %1894 = vdwg.mxu0
        %v1895 = vadd.f32 %v1649, %v1887
        %v1896 = vadd.f32 %v1650, %v1892
        %v1897 = vld [vmem:[#allocation10 + $0x130] sm:$0xff]
        %v1898 = vld [vmem:[#allocation10 + $0x138] sm:$0xff]
        %v1899 = vsel %vm380, %v451, 0
        %1901 = vmatprep.subr.mxu0 0.0
        %1902 = vmatpush1.msra.mxu0 0.0
        %1903 = vmatprep.subr.mxu0 0.0
        %1904 = vmatpush1.msra.mxu0 0.0
        %1905 = vmatprep.subr.mxu0 0.0
        %1906 = vmatpush1.msra.mxu0 0.0
        %1907 = vmatprep.subr.mxu0 0.0
        %1908 = vmatpush1.msra.mxu0 0.0
        %1909 = vmatprep.subr.mxu0 0.0
        %1910 = vmatpush1.msra.mxu0 0.0
        %1911 = vmatprep.subr.mxu0 0.0
        %1912 = vmatpush1.msra.mxu0 0.0
        %1913 = vmatprep.subr.mxu0 0.0
        %1914 = vmatpush1.msra.mxu0 0.0
        %1915 = vmatprep.subr.mxu0 0.0
        %1916 = vmatpush1.msra.mxu0 0.0
        %1917 = vmatprep.subr.mxu0 0.0
        %1918 = vmatpush1.msra.mxu0 0.0
        %1919 = vmatprep.subr.mxu0 0.0
        %1920 = vmatpush1.msra.mxu0 0.0
        %1921 = vmatprep.subr.mxu0 0.0
        %1922 = vmatpush1.msra.mxu0 0.0
        %1923 = vmatprep.subr.mxu0 0.0
        %1924 = vmatpush1.msra.mxu0 0.0
        %1925 = vmatprep.subr.mxu0 0.0
        %1926 = vmatpush1.msra.mxu0 0.0
        %1927 = vmatprep.subr.mxu0 0.0
        %1928 = vmatpush1.msra.mxu0 0.0
        %1929 = vmatprep.subr.mxu0 0.0
        %1930 = vmatpush1.msra.mxu0 %v1898
        %1931 = vmatprep.subr.mxu0 0.0
        %1932 = vmatpush1.msra.mxu0 %v1897
        %1933 = vmatprep.subr.mxu0 0.0
        %1934 = vmatpush2.msra.mxu0 0.0
        %1935 = vmatprep.subr.mxu0 0.0
        %1936 = vmatpush2.msra.mxu0 0.0
        %1937 = vmatprep.subr.mxu0 0.0
        %1938 = vmatpush2.msra.mxu0 0.0
        %1939 = vmatprep.subr.mxu0 0.0
        %1940 = vmatpush2.msra.mxu0 0.0
        %1941 = vmatprep.subr.mxu0 0.0
        %1942 = vmatpush2.msra.mxu0 0.0
        %1943 = vmatprep.subr.mxu0 0.0
        %1944 = vmatpush2.msra.mxu0 0.0
        %1945 = vmatprep.subr.mxu0 0.0
        %1946 = vmatpush2.msra.mxu0 0.0
        %1947 = vmatprep.subr.mxu0 0.0
        %1948 = vmatpush2.msra.mxu0 0.0
        %1949 = vmatprep.subr.mxu0 0.0
        %1950 = vmatpush2.msra.mxu0 0.0
        %1951 = vmatprep.subr.mxu0 0.0
        %1952 = vmatpush2.msra.mxu0 0.0
        %1953 = vmatprep.subr.mxu0 0.0
        %1954 = vmatpush2.msra.mxu0 0.0
        %1955 = vmatprep.subr.mxu0 0.0
        %1956 = vmatpush2.msra.mxu0 0.0
        %1957 = vmatprep.subr.mxu0 0.0
        %1958 = vmatpush2.msra.mxu0 0.0
        %1959 = vmatprep.subr.mxu0 0.0
        %1960 = vmatpush2.msra.mxu0 0.0
        %1961 = vmatprep.subr.mxu0 0.0
        %1962 = vmatpush2.msra.mxu0 0.0
        %1963 = vmatprep.subr.mxu0 0.0
        %1964 = vmatpush2.msra.mxu0 0.0
        %1965 = vmatprep.mubr.f32.mxu0 0.0
        %1966 = vmatmul.mubr.f32.gmra.mxu0 %v1899
        %v1967 = vpop.f32.mrf.mxu0
        %v1968 = vadd.f32 0.0, %v1967
        %v1969 = vpop.f32.mrf.mxu0
        %1970 = vdwg.mxu0
        %v1971 = vld [vmem:[#allocation10 + $0x160] sm:$0xff]
        %v1972 = vld [vmem:[#allocation10 + $0x168] sm:$0xff]
        %v1973 = vld [vmem:[#allocation10 + $0x170] sm:$0xff]
        %v1974 = vld [vmem:[#allocation10 + $0x178] sm:$0xff]
        %1976 = vrot.lane.b32.xlu0 %v1968, 112
        %v1977 = vpop.permute.xlu0 %1976
        %v1979 = vsel %vm1652, %v1973, 0
        %v1982 = vsel %vm1652, %v1974, 0
        %v1984 = vsel %vm1656, %v1977, 0
        %1986 = vmatprep.subr.mxu0 0.0
        %1987 = vmatpush1.msra.mxu0 0.0
        %1988 = vmatprep.subr.mxu0 0.0
        %1989 = vmatpush1.msra.mxu0 0.0
        %1990 = vmatprep.subr.mxu0 0.0
        %1991 = vmatpush1.msra.mxu0 0.0
        %1992 = vmatprep.subr.mxu0 0.0
        %1993 = vmatpush1.msra.mxu0 0.0
        %1994 = vmatprep.subr.mxu0 0.0
        %1995 = vmatpush1.msra.mxu0 0.0
        %1996 = vmatprep.subr.mxu0 0.0
        %1997 = vmatpush1.msra.mxu0 0.0
        %1998 = vmatprep.subr.mxu0 0.0
        %1999 = vmatpush1.msra.mxu0 0.0
        %2000 = vmatprep.subr.mxu0 0.0
        %2001 = vmatpush1.msra.mxu0 0.0
        %2002 = vmatprep.subr.mxu0 0.0
        %2003 = vmatpush1.msra.mxu0 0.0
        %2004 = vmatprep.subr.mxu0 0.0
        %2005 = vmatpush1.msra.mxu0 0.0
        %2006 = vmatprep.subr.mxu0 0.0
        %2007 = vmatpush1.msra.mxu0 0.0
        %2008 = vmatprep.subr.mxu0 0.0
        %2009 = vmatpush1.msra.mxu0 0.0
        %2010 = vmatprep.subr.mxu0 0.0
        %2011 = vmatpush1.msra.mxu0 0.0
        %2012 = vmatprep.subr.mxu0 0.0
        %2013 = vmatpush1.msra.mxu0 0.0
        %2014 = vmatprep.subr.mxu0 0.0
        %2015 = vmatpush1.msra.mxu0 0.0
        %2016 = vmatprep.subr.mxu0 0.0
        %2017 = vmatpush1.msra.mxu0 %v1984
        %2018 = vmatprep.subr.mxu0 0.0
        %2019 = vmatpush2.msra.mxu0 0.0
        %2020 = vmatprep.subr.mxu0 0.0
        %2021 = vmatpush2.msra.mxu0 0.0
        %2022 = vmatprep.subr.mxu0 0.0
        %2023 = vmatpush2.msra.mxu0 0.0
        %2024 = vmatprep.subr.mxu0 0.0
        %2025 = vmatpush2.msra.mxu0 0.0
        %2026 = vmatprep.subr.mxu0 0.0
        %2027 = vmatpush2.msra.mxu0 0.0
        %2028 = vmatprep.subr.mxu0 0.0
        %2029 = vmatpush2.msra.mxu0 0.0
        %2030 = vmatprep.subr.mxu0 0.0
        %2031 = vmatpush2.msra.mxu0 0.0
        %2032 = vmatprep.subr.mxu0 0.0
        %2033 = vmatpush2.msra.mxu0 0.0
        %2034 = vmatprep.subr.mxu0 0.0
        %2035 = vmatpush2.msra.mxu0 0.0
        %2036 = vmatprep.subr.mxu0 0.0
        %2037 = vmatpush2.msra.mxu0 0.0
        %2038 = vmatprep.subr.mxu0 0.0
        %2039 = vmatpush2.msra.mxu0 0.0
        %2040 = vmatprep.subr.mxu0 0.0
        %2041 = vmatpush2.msra.mxu0 0.0
        %2042 = vmatprep.subr.mxu0 0.0
        %2043 = vmatpush2.msra.mxu0 0.0
        %2044 = vmatprep.subr.mxu0 0.0
        %2045 = vmatpush2.msra.mxu0 0.0
        %2046 = vmatprep.subr.mxu0 0.0
        %2047 = vmatpush2.msra.mxu0 0.0
        %2048 = vmatprep.subr.mxu0 0.0
        %2049 = vmatpush2.msra.mxu0 0.0
        %2050 = vmatprep.mubr.f32.mxu0 0.0
        %2051 = vmatmul.mubr.f32.gmra.mxu0 %v1979
        %v2052 = vpop.f32.mrf.mxu0
        %v2053 = vadd.f32 0.0, %v2052
        %v2054 = vpop.f32.mrf.mxu0
        %2055 = vmatprep.mubr.f32.mxu0 0.0
        %2056 = vmatmul.mubr.f32.gmra.mxu0 %v1982
        %v2057 = vpop.f32.mrf.mxu0
        %v2058 = vadd.f32 0.0, %v2057
        %v2059 = vpop.f32.mrf.mxu0
        %2060 = vdwg.mxu0
        %v2062 = vsel %vm1652, %v1971, 0
        %v2065 = vsel %vm1652, %v1972, 0
        %v2067 = vsel %vm1656, %v1968, 0
        %2069 = vmatprep.subr.mxu0 0.0
        %2070 = vmatpush1.msra.mxu0 0.0
        %2071 = vmatprep.subr.mxu0 0.0
        %2072 = vmatpush1.msra.mxu0 0.0
        %2073 = vmatprep.subr.mxu0 0.0
        %2074 = vmatpush1.msra.mxu0 0.0
        %2075 = vmatprep.subr.mxu0 0.0
        %2076 = vmatpush1.msra.mxu0 0.0
        %2077 = vmatprep.subr.mxu0 0.0
        %2078 = vmatpush1.msra.mxu0 0.0
        %2079 = vmatprep.subr.mxu0 0.0
        %2080 = vmatpush1.msra.mxu0 0.0
        %2081 = vmatprep.subr.mxu0 0.0
        %2082 = vmatpush1.msra.mxu0 0.0
        %2083 = vmatprep.subr.mxu0 0.0
        %2084 = vmatpush1.msra.mxu0 0.0
        %2085 = vmatprep.subr.mxu0 0.0
        %2086 = vmatpush1.msra.mxu0 0.0
        %2087 = vmatprep.subr.mxu0 0.0
        %2088 = vmatpush1.msra.mxu0 0.0
        %2089 = vmatprep.subr.mxu0 0.0
        %2090 = vmatpush1.msra.mxu0 0.0
        %2091 = vmatprep.subr.mxu0 0.0
        %2092 = vmatpush1.msra.mxu0 0.0
        %2093 = vmatprep.subr.mxu0 0.0
        %2094 = vmatpush1.msra.mxu0 0.0
        %2095 = vmatprep.subr.mxu0 0.0
        %2096 = vmatpush1.msra.mxu0 0.0
        %2097 = vmatprep.subr.mxu0 0.0
        %2098 = vmatpush1.msra.mxu0 0.0
        %2099 = vmatprep.subr.mxu0 0.0
        %2100 = vmatpush1.msra.mxu0 %v2067
        %2101 = vmatprep.subr.mxu0 0.0
        %2102 = vmatpush2.msra.mxu0 0.0
        %2103 = vmatprep.subr.mxu0 0.0
        %2104 = vmatpush2.msra.mxu0 0.0
        %2105 = vmatprep.subr.mxu0 0.0
        %2106 = vmatpush2.msra.mxu0 0.0
        %2107 = vmatprep.subr.mxu0 0.0
        %2108 = vmatpush2.msra.mxu0 0.0
        %2109 = vmatprep.subr.mxu0 0.0
        %2110 = vmatpush2.msra.mxu0 0.0
        %2111 = vmatprep.subr.mxu0 0.0
        %2112 = vmatpush2.msra.mxu0 0.0
        %2113 = vmatprep.subr.mxu0 0.0
        %2114 = vmatpush2.msra.mxu0 0.0
        %2115 = vmatprep.subr.mxu0 0.0
        %2116 = vmatpush2.msra.mxu0 0.0
        %2117 = vmatprep.subr.mxu0 0.0
        %2118 = vmatpush2.msra.mxu0 0.0
        %2119 = vmatprep.subr.mxu0 0.0
        %2120 = vmatpush2.msra.mxu0 0.0
        %2121 = vmatprep.subr.mxu0 0.0
        %2122 = vmatpush2.msra.mxu0 0.0
        %2123 = vmatprep.subr.mxu0 0.0
        %2124 = vmatpush2.msra.mxu0 0.0
        %2125 = vmatprep.subr.mxu0 0.0
        %2126 = vmatpush2.msra.mxu0 0.0
        %2127 = vmatprep.subr.mxu0 0.0
        %2128 = vmatpush2.msra.mxu0 0.0
        %2129 = vmatprep.subr.mxu0 0.0
        %2130 = vmatpush2.msra.mxu0 0.0
        %2131 = vmatprep.subr.mxu0 0.0
        %2132 = vmatpush2.msra.mxu0 0.0
        %2133 = vmatprep.mubr.f32.mxu0 0.0
        %2134 = vmatmul.mubr.f32.gmra.mxu0 %v2062
        %v2135 = vpop.f32.mrf.mxu0
        %v2136 = vadd.f32 %v2053, %v2135
        %v2137 = vpop.f32.mrf.mxu0
        %2138 = vmatprep.mubr.f32.mxu0 0.0
        %2139 = vmatmul.mubr.f32.gmra.mxu0 %v2065
        %v2140 = vpop.f32.mrf.mxu0
        %v2141 = vadd.f32 %v2058, %v2140
        %v2142 = vpop.f32.mrf.mxu0
        %2143 = vdwg.mxu0
        %v2144 = vld [vmem:[#allocation10 + $0x180] sm:$0xff]
        %v2145 = vld [vmem:[#allocation10 + $0x188] sm:$0xff]
        %2146 = vrot.lane.b32.xlu0 %v1968, 96
        %v2147 = vpop.permute.xlu0 %2146
        %v2149 = vsel %vm1652, %v2144, 0
        %v2152 = vsel %vm1652, %v2145, 0
        %v2154 = vsel %vm1656, %v2147, 0
        %2156 = vmatprep.subr.mxu0 0.0
        %2157 = vmatpush1.msra.mxu0 0.0
        %2158 = vmatprep.subr.mxu0 0.0
        %2159 = vmatpush1.msra.mxu0 0.0
        %2160 = vmatprep.subr.mxu0 0.0
        %2161 = vmatpush1.msra.mxu0 0.0
        %2162 = vmatprep.subr.mxu0 0.0
        %2163 = vmatpush1.msra.mxu0 0.0
        %2164 = vmatprep.subr.mxu0 0.0
        %2165 = vmatpush1.msra.mxu0 0.0
        %2166 = vmatprep.subr.mxu0 0.0
        %2167 = vmatpush1.msra.mxu0 0.0
        %2168 = vmatprep.subr.mxu0 0.0
        %2169 = vmatpush1.msra.mxu0 0.0
        %2170 = vmatprep.subr.mxu0 0.0
        %2171 = vmatpush1.msra.mxu0 0.0
        %2172 = vmatprep.subr.mxu0 0.0
        %2173 = vmatpush1.msra.mxu0 0.0
        %2174 = vmatprep.subr.mxu0 0.0
        %2175 = vmatpush1.msra.mxu0 0.0
        %2176 = vmatprep.subr.mxu0 0.0
        %2177 = vmatpush1.msra.mxu0 0.0
        %2178 = vmatprep.subr.mxu0 0.0
        %2179 = vmatpush1.msra.mxu0 0.0
        %2180 = vmatprep.subr.mxu0 0.0
        %2181 = vmatpush1.msra.mxu0 0.0
        %2182 = vmatprep.subr.mxu0 0.0
        %2183 = vmatpush1.msra.mxu0 0.0
        %2184 = vmatprep.subr.mxu0 0.0
        %2185 = vmatpush1.msra.mxu0 0.0
        %2186 = vmatprep.subr.mxu0 0.0
        %2187 = vmatpush1.msra.mxu0 %v2154
        %2188 = vmatprep.subr.mxu0 0.0
        %2189 = vmatpush2.msra.mxu0 0.0
        %2190 = vmatprep.subr.mxu0 0.0
        %2191 = vmatpush2.msra.mxu0 0.0
        %2192 = vmatprep.subr.mxu0 0.0
        %2193 = vmatpush2.msra.mxu0 0.0
        %2194 = vmatprep.subr.mxu0 0.0
        %2195 = vmatpush2.msra.mxu0 0.0
        %2196 = vmatprep.subr.mxu0 0.0
        %2197 = vmatpush2.msra.mxu0 0.0
        %2198 = vmatprep.subr.mxu0 0.0
        %2199 = vmatpush2.msra.mxu0 0.0
        %2200 = vmatprep.subr.mxu0 0.0
        %2201 = vmatpush2.msra.mxu0 0.0
        %2202 = vmatprep.subr.mxu0 0.0
        %2203 = vmatpush2.msra.mxu0 0.0
        %2204 = vmatprep.subr.mxu0 0.0
        %2205 = vmatpush2.msra.mxu0 0.0
        %2206 = vmatprep.subr.mxu0 0.0
        %2207 = vmatpush2.msra.mxu0 0.0
        %2208 = vmatprep.subr.mxu0 0.0
        %2209 = vmatpush2.msra.mxu0 0.0
        %2210 = vmatprep.subr.mxu0 0.0
        %2211 = vmatpush2.msra.mxu0 0.0
        %2212 = vmatprep.subr.mxu0 0.0
        %2213 = vmatpush2.msra.mxu0 0.0
        %2214 = vmatprep.subr.mxu0 0.0
        %2215 = vmatpush2.msra.mxu0 0.0
        %2216 = vmatprep.subr.mxu0 0.0
        %2217 = vmatpush2.msra.mxu0 0.0
        %2218 = vmatprep.subr.mxu0 0.0
        %2219 = vmatpush2.msra.mxu0 0.0
        %2220 = vmatprep.mubr.f32.mxu0 0.0
        %2221 = vmatmul.mubr.f32.gmra.mxu0 %v2149
        %v2222 = vpop.f32.mrf.mxu0
        %v2223 = vadd.f32 0.0, %v2222
        %v2224 = vpop.f32.mrf.mxu0
        %2225 = vmatprep.mubr.f32.mxu0 0.0
        %2226 = vmatmul.mubr.f32.gmra.mxu0 %v2152
        %v2227 = vpop.f32.mrf.mxu0
        %v2228 = vadd.f32 0.0, %v2227
        %v2229 = vpop.f32.mrf.mxu0
        %2230 = vdwg.mxu0
        %v2231 = vadd.f32 %v2136, %v2223
        %v2232 = vadd.f32 %v2141, %v2228
        %v2233 = vld [vmem:[#allocation10 + $0x140] sm:$0xff]
        %v2234 = vld [vmem:[#allocation10 + $0x148] sm:$0xff]
        %v2235 = vsel %vm380, %v1730, 0
        %2237 = vmatprep.subr.mxu0 0.0
        %2238 = vmatpush1.msra.mxu0 0.0
        %2239 = vmatprep.subr.mxu0 0.0
        %2240 = vmatpush1.msra.mxu0 0.0
        %2241 = vmatprep.subr.mxu0 0.0
        %2242 = vmatpush1.msra.mxu0 0.0
        %2243 = vmatprep.subr.mxu0 0.0
        %2244 = vmatpush1.msra.mxu0 0.0
        %2245 = vmatprep.subr.mxu0 0.0
        %2246 = vmatpush1.msra.mxu0 0.0
        %2247 = vmatprep.subr.mxu0 0.0
        %2248 = vmatpush1.msra.mxu0 0.0
        %2249 = vmatprep.subr.mxu0 0.0
        %2250 = vmatpush1.msra.mxu0 0.0
        %2251 = vmatprep.subr.mxu0 0.0
        %2252 = vmatpush1.msra.mxu0 0.0
        %2253 = vmatprep.subr.mxu0 0.0
        %2254 = vmatpush1.msra.mxu0 0.0
        %2255 = vmatprep.subr.mxu0 0.0
        %2256 = vmatpush1.msra.mxu0 0.0
        %2257 = vmatprep.subr.mxu0 0.0
        %2258 = vmatpush1.msra.mxu0 0.0
        %2259 = vmatprep.subr.mxu0 0.0
        %2260 = vmatpush1.msra.mxu0 0.0
        %2261 = vmatprep.subr.mxu0 0.0
        %2262 = vmatpush1.msra.mxu0 0.0
        %2263 = vmatprep.subr.mxu0 0.0
        %2264 = vmatpush1.msra.mxu0 0.0
        %2265 = vmatprep.subr.mxu0 0.0
        %2266 = vmatpush1.msra.mxu0 %v2234
        %2267 = vmatprep.subr.mxu0 0.0
        %2268 = vmatpush1.msra.mxu0 %v2233
        %2269 = vmatprep.subr.mxu0 0.0
        %2270 = vmatpush2.msra.mxu0 0.0
        %2271 = vmatprep.subr.mxu0 0.0
        %2272 = vmatpush2.msra.mxu0 0.0
        %2273 = vmatprep.subr.mxu0 0.0
        %2274 = vmatpush2.msra.mxu0 0.0
        %2275 = vmatprep.subr.mxu0 0.0
        %2276 = vmatpush2.msra.mxu0 0.0
        %2277 = vmatprep.subr.mxu0 0.0
        %2278 = vmatpush2.msra.mxu0 0.0
        %2279 = vmatprep.subr.mxu0 0.0
        %2280 = vmatpush2.msra.mxu0 0.0
        %2281 = vmatprep.subr.mxu0 0.0
        %2282 = vmatpush2.msra.mxu0 0.0
        %2283 = vmatprep.subr.mxu0 0.0
        %2284 = vmatpush2.msra.mxu0 0.0
        %2285 = vmatprep.subr.mxu0 0.0
        %2286 = vmatpush2.msra.mxu0 0.0
        %2287 = vmatprep.subr.mxu0 0.0
        %2288 = vmatpush2.msra.mxu0 0.0
        %2289 = vmatprep.subr.mxu0 0.0
        %2290 = vmatpush2.msra.mxu0 0.0
        %2291 = vmatprep.subr.mxu0 0.0
        %2292 = vmatpush2.msra.mxu0 0.0
        %2293 = vmatprep.subr.mxu0 0.0
        %2294 = vmatpush2.msra.mxu0 0.0
        %2295 = vmatprep.subr.mxu0 0.0
        %2296 = vmatpush2.msra.mxu0 0.0
        %2297 = vmatprep.subr.mxu0 0.0
        %2298 = vmatpush2.msra.mxu0 0.0
        %2299 = vmatprep.subr.mxu0 0.0
        %2300 = vmatpush2.msra.mxu0 0.0
        %2301 = vmatprep.mubr.f32.mxu0 0.0
        %2302 = vmatmul.mubr.f32.gmra.mxu0 %v2235
        %v2303 = vpop.f32.mrf.mxu0
        %v2304 = vadd.f32 0.0, %v2303
        %v2305 = vpop.f32.mrf.mxu0
        %2306 = vdwg.mxu0
        %v2307 = vld [vmem:[#allocation10 + $0x190] sm:$0xff]
        %v2308 = vld [vmem:[#allocation10 + $0x198] sm:$0xff]
        %v2309 = vld [vmem:[#allocation10 + $0x1a0] sm:$0xff]
        %v2310 = vld [vmem:[#allocation10 + $0x1a8] sm:$0xff]
        %2312 = vrot.lane.b32.xlu0 %v2304, 112
        %v2313 = vpop.permute.xlu0 %2312
        %v2315 = vsel %vm1732, %v2309, 0
        %v2318 = vsel %vm1732, %v2310, 0
        %v2320 = vsel %vm1736, %v2313, 0
        %2322 = vmatprep.subr.mxu0 0.0
        %2323 = vmatpush1.msra.mxu0 0.0
        %2324 = vmatprep.subr.mxu0 0.0
        %2325 = vmatpush1.msra.mxu0 0.0
        %2326 = vmatprep.subr.mxu0 0.0
        %2327 = vmatpush1.msra.mxu0 0.0
        %2328 = vmatprep.subr.mxu0 0.0
        %2329 = vmatpush1.msra.mxu0 0.0
        %2330 = vmatprep.subr.mxu0 0.0
        %2331 = vmatpush1.msra.mxu0 0.0
        %2332 = vmatprep.subr.mxu0 0.0
        %2333 = vmatpush1.msra.mxu0 0.0
        %2334 = vmatprep.subr.mxu0 0.0
        %2335 = vmatpush1.msra.mxu0 0.0
        %2336 = vmatprep.subr.mxu0 0.0
        %2337 = vmatpush1.msra.mxu0 0.0
        %2338 = vmatprep.subr.mxu0 0.0
        %2339 = vmatpush1.msra.mxu0 0.0
        %2340 = vmatprep.subr.mxu0 0.0
        %2341 = vmatpush1.msra.mxu0 0.0
        %2342 = vmatprep.subr.mxu0 0.0
        %2343 = vmatpush1.msra.mxu0 0.0
        %2344 = vmatprep.subr.mxu0 0.0
        %2345 = vmatpush1.msra.mxu0 0.0
        %2346 = vmatprep.subr.mxu0 0.0
        %2347 = vmatpush1.msra.mxu0 0.0
        %2348 = vmatprep.subr.mxu0 0.0
        %2349 = vmatpush1.msra.mxu0 0.0
        %2350 = vmatprep.subr.mxu0 0.0
        %2351 = vmatpush1.msra.mxu0 0.0
        %2352 = vmatprep.subr.mxu0 0.0
        %2353 = vmatpush1.msra.mxu0 %v2320
        %2354 = vmatprep.subr.mxu0 0.0
        %2355 = vmatpush2.msra.mxu0 0.0
        %2356 = vmatprep.subr.mxu0 0.0
        %2357 = vmatpush2.msra.mxu0 0.0
        %2358 = vmatprep.subr.mxu0 0.0
        %2359 = vmatpush2.msra.mxu0 0.0
        %2360 = vmatprep.subr.mxu0 0.0
        %2361 = vmatpush2.msra.mxu0 0.0
        %2362 = vmatprep.subr.mxu0 0.0
        %2363 = vmatpush2.msra.mxu0 0.0
        %2364 = vmatprep.subr.mxu0 0.0
        %2365 = vmatpush2.msra.mxu0 0.0
        %2366 = vmatprep.subr.mxu0 0.0
        %2367 = vmatpush2.msra.mxu0 0.0
        %2368 = vmatprep.subr.mxu0 0.0
        %2369 = vmatpush2.msra.mxu0 0.0
        %2370 = vmatprep.subr.mxu0 0.0
        %2371 = vmatpush2.msra.mxu0 0.0
        %2372 = vmatprep.subr.mxu0 0.0
        %2373 = vmatpush2.msra.mxu0 0.0
        %2374 = vmatprep.subr.mxu0 0.0
        %2375 = vmatpush2.msra.mxu0 0.0
        %2376 = vmatprep.subr.mxu0 0.0
        %2377 = vmatpush2.msra.mxu0 0.0
        %2378 = vmatprep.subr.mxu0 0.0
        %2379 = vmatpush2.msra.mxu0 0.0
        %2380 = vmatprep.subr.mxu0 0.0
        %2381 = vmatpush2.msra.mxu0 0.0
        %2382 = vmatprep.subr.mxu0 0.0
        %2383 = vmatpush2.msra.mxu0 0.0
        %2384 = vmatprep.subr.mxu0 0.0
        %2385 = vmatpush2.msra.mxu0 0.0
        %2386 = vmatprep.mubr.f32.mxu0 0.0
        %2387 = vmatmul.mubr.f32.gmra.mxu0 %v2315
        %v2388 = vpop.f32.mrf.mxu0
        %v2389 = vadd.f32 0.0, %v2388
        %v2390 = vpop.f32.mrf.mxu0
        %2391 = vmatprep.mubr.f32.mxu0 0.0
        %2392 = vmatmul.mubr.f32.gmra.mxu0 %v2318
        %v2393 = vpop.f32.mrf.mxu0
        %v2394 = vadd.f32 0.0, %v2393
        %v2395 = vpop.f32.mrf.mxu0
        %2396 = vdwg.mxu0
        %v2398 = vsel %vm1732, %v2307, 0
        %v2401 = vsel %vm1732, %v2308, 0
        %v2403 = vsel %vm1736, %v2304, 0
        %2405 = vmatprep.subr.mxu0 0.0
        %2406 = vmatpush1.msra.mxu0 0.0
        %2407 = vmatprep.subr.mxu0 0.0
        %2408 = vmatpush1.msra.mxu0 0.0
        %2409 = vmatprep.subr.mxu0 0.0
        %2410 = vmatpush1.msra.mxu0 0.0
        %2411 = vmatprep.subr.mxu0 0.0
        %2412 = vmatpush1.msra.mxu0 0.0
        %2413 = vmatprep.subr.mxu0 0.0
        %2414 = vmatpush1.msra.mxu0 0.0
        %2415 = vmatprep.subr.mxu0 0.0
        %2416 = vmatpush1.msra.mxu0 0.0
        %2417 = vmatprep.subr.mxu0 0.0
        %2418 = vmatpush1.msra.mxu0 0.0
        %2419 = vmatprep.subr.mxu0 0.0
        %2420 = vmatpush1.msra.mxu0 0.0
        %2421 = vmatprep.subr.mxu0 0.0
        %2422 = vmatpush1.msra.mxu0 0.0
        %2423 = vmatprep.subr.mxu0 0.0
        %2424 = vmatpush1.msra.mxu0 0.0
        %2425 = vmatprep.subr.mxu0 0.0
        %2426 = vmatpush1.msra.mxu0 0.0
        %2427 = vmatprep.subr.mxu0 0.0
        %2428 = vmatpush1.msra.mxu0 0.0
        %2429 = vmatprep.subr.mxu0 0.0
        %2430 = vmatpush1.msra.mxu0 0.0
        %2431 = vmatprep.subr.mxu0 0.0
        %2432 = vmatpush1.msra.mxu0 0.0
        %2433 = vmatprep.subr.mxu0 0.0
        %2434 = vmatpush1.msra.mxu0 0.0
        %2435 = vmatprep.subr.mxu0 0.0
        %2436 = vmatpush1.msra.mxu0 %v2403
        %2437 = vmatprep.subr.mxu0 0.0
        %2438 = vmatpush2.msra.mxu0 0.0
        %2439 = vmatprep.subr.mxu0 0.0
        %2440 = vmatpush2.msra.mxu0 0.0
        %2441 = vmatprep.subr.mxu0 0.0
        %2442 = vmatpush2.msra.mxu0 0.0
        %2443 = vmatprep.subr.mxu0 0.0
        %2444 = vmatpush2.msra.mxu0 0.0
        %2445 = vmatprep.subr.mxu0 0.0
        %2446 = vmatpush2.msra.mxu0 0.0
        %2447 = vmatprep.subr.mxu0 0.0
        %2448 = vmatpush2.msra.mxu0 0.0
        %2449 = vmatprep.subr.mxu0 0.0
        %2450 = vmatpush2.msra.mxu0 0.0
        %2451 = vmatprep.subr.mxu0 0.0
        %2452 = vmatpush2.msra.mxu0 0.0
        %2453 = vmatprep.subr.mxu0 0.0
        %2454 = vmatpush2.msra.mxu0 0.0
        %2455 = vmatprep.subr.mxu0 0.0
        %2456 = vmatpush2.msra.mxu0 0.0
        %2457 = vmatprep.subr.mxu0 0.0
        %2458 = vmatpush2.msra.mxu0 0.0
        %2459 = vmatprep.subr.mxu0 0.0
        %2460 = vmatpush2.msra.mxu0 0.0
        %2461 = vmatprep.subr.mxu0 0.0
        %2462 = vmatpush2.msra.mxu0 0.0
        %2463 = vmatprep.subr.mxu0 0.0
        %2464 = vmatpush2.msra.mxu0 0.0
        %2465 = vmatprep.subr.mxu0 0.0
        %2466 = vmatpush2.msra.mxu0 0.0
        %2467 = vmatprep.subr.mxu0 0.0
        %2468 = vmatpush2.msra.mxu0 0.0
        %2469 = vmatprep.mubr.f32.mxu0 0.0
        %2470 = vmatmul.mubr.f32.gmra.mxu0 %v2398
        %v2471 = vpop.f32.mrf.mxu0
        %v2472 = vadd.f32 %v2389, %v2471
        %v2473 = vpop.f32.mrf.mxu0
        %2474 = vmatprep.mubr.f32.mxu0 0.0
        %2475 = vmatmul.mubr.f32.gmra.mxu0 %v2401
        %v2476 = vpop.f32.mrf.mxu0
        %v2477 = vadd.f32 %v2394, %v2476
        %v2478 = vpop.f32.mrf.mxu0
        %2479 = vdwg.mxu0
        %v2480 = vld [vmem:[#allocation10 + $0x1b0] sm:$0xff]
        %v2481 = vld [vmem:[#allocation10 + $0x1b8] sm:$0xff]
        %2482 = vrot.lane.b32.xlu0 %v2304, 96
        %v2483 = vpop.permute.xlu0 %2482
        %v2485 = vsel %vm1732, %v2480, 0
        %v2488 = vsel %vm1732, %v2481, 0
        %v2490 = vsel %vm1736, %v2483, 0
        %2492 = vmatprep.subr.mxu0 0.0
        %2493 = vmatpush1.msra.mxu0 0.0
        %2494 = vmatprep.subr.mxu0 0.0
        %2495 = vmatpush1.msra.mxu0 0.0
        %2496 = vmatprep.subr.mxu0 0.0
        %2497 = vmatpush1.msra.mxu0 0.0
        %2498 = vmatprep.subr.mxu0 0.0
        %2499 = vmatpush1.msra.mxu0 0.0
        %2500 = vmatprep.subr.mxu0 0.0
        %2501 = vmatpush1.msra.mxu0 0.0
        %2502 = vmatprep.subr.mxu0 0.0
        %2503 = vmatpush1.msra.mxu0 0.0
        %2504 = vmatprep.subr.mxu0 0.0
        %2505 = vmatpush1.msra.mxu0 0.0
        %2506 = vmatprep.subr.mxu0 0.0
        %2507 = vmatpush1.msra.mxu0 0.0
        %2508 = vmatprep.subr.mxu0 0.0
        %2509 = vmatpush1.msra.mxu0 0.0
        %2510 = vmatprep.subr.mxu0 0.0
        %2511 = vmatpush1.msra.mxu0 0.0
        %2512 = vmatprep.subr.mxu0 0.0
        %2513 = vmatpush1.msra.mxu0 0.0
        %2514 = vmatprep.subr.mxu0 0.0
        %2515 = vmatpush1.msra.mxu0 0.0
        %2516 = vmatprep.subr.mxu0 0.0
        %2517 = vmatpush1.msra.mxu0 0.0
        %2518 = vmatprep.subr.mxu0 0.0
        %2519 = vmatpush1.msra.mxu0 0.0
        %2520 = vmatprep.subr.mxu0 0.0
        %2521 = vmatpush1.msra.mxu0 0.0
        %2522 = vmatprep.subr.mxu0 0.0
        %2523 = vmatpush1.msra.mxu0 %v2490
        %2524 = vmatprep.subr.mxu0 0.0
        %2525 = vmatpush2.msra.mxu0 0.0
        %2526 = vmatprep.subr.mxu0 0.0
        %2527 = vmatpush2.msra.mxu0 0.0
        %2528 = vmatprep.subr.mxu0 0.0
        %2529 = vmatpush2.msra.mxu0 0.0
        %2530 = vmatprep.subr.mxu0 0.0
        %2531 = vmatpush2.msra.mxu0 0.0
        %2532 = vmatprep.subr.mxu0 0.0
        %2533 = vmatpush2.msra.mxu0 0.0
        %2534 = vmatprep.subr.mxu0 0.0
        %2535 = vmatpush2.msra.mxu0 0.0
        %2536 = vmatprep.subr.mxu0 0.0
        %2537 = vmatpush2.msra.mxu0 0.0
        %2538 = vmatprep.subr.mxu0 0.0
        %2539 = vmatpush2.msra.mxu0 0.0
        %2540 = vmatprep.subr.mxu0 0.0
        %2541 = vmatpush2.msra.mxu0 0.0
        %2542 = vmatprep.subr.mxu0 0.0
        %2543 = vmatpush2.msra.mxu0 0.0
        %2544 = vmatprep.subr.mxu0 0.0
        %2545 = vmatpush2.msra.mxu0 0.0
        %2546 = vmatprep.subr.mxu0 0.0
        %2547 = vmatpush2.msra.mxu0 0.0
        %2548 = vmatprep.subr.mxu0 0.0
        %2549 = vmatpush2.msra.mxu0 0.0
        %2550 = vmatprep.subr.mxu0 0.0
        %2551 = vmatpush2.msra.mxu0 0.0
        %2552 = vmatprep.subr.mxu0 0.0
        %2553 = vmatpush2.msra.mxu0 0.0
        %2554 = vmatprep.subr.mxu0 0.0
        %2555 = vmatpush2.msra.mxu0 0.0
        %2556 = vmatprep.mubr.f32.mxu0 0.0
        %2557 = vmatmul.mubr.f32.gmra.mxu0 %v2485
        %v2558 = vpop.f32.mrf.mxu0
        %v2559 = vadd.f32 0.0, %v2558
        %v2560 = vpop.f32.mrf.mxu0
        %2561 = vmatprep.mubr.f32.mxu0 0.0
        %2562 = vmatmul.mubr.f32.gmra.mxu0 %v2488
        %v2563 = vpop.f32.mrf.mxu0
        %v2564 = vadd.f32 0.0, %v2563
        %v2565 = vpop.f32.mrf.mxu0
        %2566 = vdwg.mxu0
        %v2567 = vadd.f32 %v2472, %v2559
        %v2568 = vadd.f32 %v2477, %v2564
        %v2569 = vld [vmem:[#allocation10 + $0x150] sm:$0xff]
        %v2570 = vld [vmem:[#allocation10 + $0x158] sm:$0xff]
        %v2572 = vsel %vm380, %v1810, 0
        %2574 = vmatprep.subr.mxu0 0.0
        %2575 = vmatpush1.msra.mxu0 0.0
        %2576 = vmatprep.subr.mxu0 0.0
        %2577 = vmatpush1.msra.mxu0 0.0
        %2578 = vmatprep.subr.mxu0 0.0
        %2579 = vmatpush1.msra.mxu0 0.0
        %2580 = vmatprep.subr.mxu0 0.0
        %2581 = vmatpush1.msra.mxu0 0.0
        %2582 = vmatprep.subr.mxu0 0.0
        %2583 = vmatpush1.msra.mxu0 0.0
        %2584 = vmatprep.subr.mxu0 0.0
        %2585 = vmatpush1.msra.mxu0 0.0
        %2586 = vmatprep.subr.mxu0 0.0
        %2587 = vmatpush1.msra.mxu0 0.0
        %2588 = vmatprep.subr.mxu0 0.0
        %2589 = vmatpush1.msra.mxu0 0.0
        %2590 = vmatprep.subr.mxu0 0.0
        %2591 = vmatpush1.msra.mxu0 0.0
        %2592 = vmatprep.subr.mxu0 0.0
        %2593 = vmatpush1.msra.mxu0 0.0
        %2594 = vmatprep.subr.mxu0 0.0
        %2595 = vmatpush1.msra.mxu0 0.0
        %2596 = vmatprep.subr.mxu0 0.0
        %2597 = vmatpush1.msra.mxu0 0.0
        %2598 = vmatprep.subr.mxu0 0.0
        %2599 = vmatpush1.msra.mxu0 0.0
        %2600 = vmatprep.subr.mxu0 0.0
        %2601 = vmatpush1.msra.mxu0 0.0
        %2602 = vmatprep.subr.mxu0 0.0
        %2603 = vmatpush1.msra.mxu0 %v2570
        %2604 = vmatprep.subr.mxu0 0.0
        %2605 = vmatpush1.msra.mxu0 %v2569
        %2606 = vmatprep.subr.mxu0 0.0
        %2607 = vmatpush2.msra.mxu0 0.0
        %2608 = vmatprep.subr.mxu0 0.0
        %2609 = vmatpush2.msra.mxu0 0.0
        %2610 = vmatprep.subr.mxu0 0.0
        %2611 = vmatpush2.msra.mxu0 0.0
        %2612 = vmatprep.subr.mxu0 0.0
        %2613 = vmatpush2.msra.mxu0 0.0
        %2614 = vmatprep.subr.mxu0 0.0
        %2615 = vmatpush2.msra.mxu0 0.0
        %2616 = vmatprep.subr.mxu0 0.0
        %2617 = vmatpush2.msra.mxu0 0.0
        %2618 = vmatprep.subr.mxu0 0.0
        %2619 = vmatpush2.msra.mxu0 0.0
        %2620 = vmatprep.subr.mxu0 0.0
        %2621 = vmatpush2.msra.mxu0 0.0
        %2622 = vmatprep.subr.mxu0 0.0
        %2623 = vmatpush2.msra.mxu0 0.0
        %2624 = vmatprep.subr.mxu0 0.0
        %2625 = vmatpush2.msra.mxu0 0.0
        %2626 = vmatprep.subr.mxu0 0.0
        %2627 = vmatpush2.msra.mxu0 0.0
        %2628 = vmatprep.subr.mxu0 0.0
        %2629 = vmatpush2.msra.mxu0 0.0
        %2630 = vmatprep.subr.mxu0 0.0
        %2631 = vmatpush2.msra.mxu0 0.0
        %2632 = vmatprep.subr.mxu0 0.0
        %2633 = vmatpush2.msra.mxu0 0.0
        %2634 = vmatprep.subr.mxu0 0.0
        %2635 = vmatpush2.msra.mxu0 0.0
        %2636 = vmatprep.subr.mxu0 0.0
        %2637 = vmatpush2.msra.mxu0 0.0
        %2638 = vmatprep.mubr.f32.mxu0 0.0
        %2639 = vmatmul.mubr.f32.gmra.mxu0 %v2572
        %v2640 = vpop.f32.mrf.mxu0
        %v2641 = vadd.f32 0.0, %v2640
        %v2642 = vpop.f32.mrf.mxu0
        %2643 = vdwg.mxu0
        %v2644 = vld [vmem:[#allocation10 + $0x1c0] sm:$0xff]
        %v2645 = vld [vmem:[#allocation10 + $0x1c8] sm:$0xff]
        %v2646 = vld [vmem:[#allocation10 + $0x1d0] sm:$0xff]
        %v2647 = vld [vmem:[#allocation10 + $0x1d8] sm:$0xff]
        %2649 = vrot.lane.b32.xlu0 %v2641, 112
        %v2650 = vpop.permute.xlu0 %2649
        %v2653 = vsel %vm1813, %v2646, 0
        %v2656 = vsel %vm1813, %v2647, 0
        %2658 = vmatprep.subr.mxu0 0.0
        %2659 = vmatpush1.msra.mxu0 0.0
        %2660 = vmatprep.subr.mxu0 0.0
        %2661 = vmatpush1.msra.mxu0 0.0
        %2662 = vmatprep.subr.mxu0 0.0
        %2663 = vmatpush1.msra.mxu0 0.0
        %2664 = vmatprep.subr.mxu0 0.0
        %2665 = vmatpush1.msra.mxu0 0.0
        %2666 = vmatprep.subr.mxu0 0.0
        %2667 = vmatpush1.msra.mxu0 0.0
        %2668 = vmatprep.subr.mxu0 0.0
        %2669 = vmatpush1.msra.mxu0 0.0
        %2670 = vmatprep.subr.mxu0 0.0
        %2671 = vmatpush1.msra.mxu0 0.0
        %2672 = vmatprep.subr.mxu0 0.0
        %2673 = vmatpush1.msra.mxu0 0.0
        %2674 = vmatprep.subr.mxu0 0.0
        %2675 = vmatpush1.msra.mxu0 0.0
        %2676 = vmatprep.subr.mxu0 0.0
        %2677 = vmatpush1.msra.mxu0 0.0
        %2678 = vmatprep.subr.mxu0 0.0
        %2679 = vmatpush1.msra.mxu0 0.0
        %2680 = vmatprep.subr.mxu0 0.0
        %2681 = vmatpush1.msra.mxu0 0.0
        %2682 = vmatprep.subr.mxu0 0.0
        %2683 = vmatpush1.msra.mxu0 0.0
        %2684 = vmatprep.subr.mxu0 0.0
        %2685 = vmatpush1.msra.mxu0 0.0
        %2686 = vmatprep.subr.mxu0 0.0
        %2687 = vmatpush1.msra.mxu0 0.0
        %2688 = vmatprep.subr.mxu0 0.0
        %2689 = vmatpush1.msra.mxu0 %v2650
        %2690 = vmatprep.subr.mxu0 0.0
        %2691 = vmatpush2.msra.mxu0 0.0
        %2692 = vmatprep.subr.mxu0 0.0
        %2693 = vmatpush2.msra.mxu0 0.0
        %2694 = vmatprep.subr.mxu0 0.0
        %2695 = vmatpush2.msra.mxu0 0.0
        %2696 = vmatprep.subr.mxu0 0.0
        %2697 = vmatpush2.msra.mxu0 0.0
        %2698 = vmatprep.subr.mxu0 0.0
        %2699 = vmatpush2.msra.mxu0 0.0
        %2700 = vmatprep.subr.mxu0 0.0
        %2701 = vmatpush2.msra.mxu0 0.0
        %2702 = vmatprep.subr.mxu0 0.0
        %2703 = vmatpush2.msra.mxu0 0.0
        %2704 = vmatprep.subr.mxu0 0.0
        %2705 = vmatpush2.msra.mxu0 0.0
        %2706 = vmatprep.subr.mxu0 0.0
        %2707 = vmatpush2.msra.mxu0 0.0
        %2708 = vmatprep.subr.mxu0 0.0
        %2709 = vmatpush2.msra.mxu0 0.0
        %2710 = vmatprep.subr.mxu0 0.0
        %2711 = vmatpush2.msra.mxu0 0.0
        %2712 = vmatprep.subr.mxu0 0.0
        %2713 = vmatpush2.msra.mxu0 0.0
        %2714 = vmatprep.subr.mxu0 0.0
        %2715 = vmatpush2.msra.mxu0 0.0
        %2716 = vmatprep.subr.mxu0 0.0
        %2717 = vmatpush2.msra.mxu0 0.0
        %2718 = vmatprep.subr.mxu0 0.0
        %2719 = vmatpush2.msra.mxu0 0.0
        %2720 = vmatprep.subr.mxu0 0.0
        %2721 = vmatpush2.msra.mxu0 0.0
        %2722 = vmatprep.mubr.f32.mxu0 0.0
        %2723 = vmatmul.mubr.f32.gmra.mxu0 %v2653
        %v2724 = vpop.f32.mrf.mxu0
        %v2725 = vadd.f32 0.0, %v2724
        %v2726 = vpop.f32.mrf.mxu0
        %2727 = vmatprep.mubr.f32.mxu0 0.0
        %2728 = vmatmul.mubr.f32.gmra.mxu0 %v2656
        %v2729 = vpop.f32.mrf.mxu0
        %v2730 = vadd.f32 0.0, %v2729
        %v2731 = vpop.f32.mrf.mxu0
        %2732 = vdwg.mxu0
        %v2734 = vsel %vm1813, %v2644, 0
        %v2737 = vsel %vm1813, %v2645, 0
        %2739 = vmatprep.subr.mxu0 0.0
        %2740 = vmatpush1.msra.mxu0 0.0
        %2741 = vmatprep.subr.mxu0 0.0
        %2742 = vmatpush1.msra.mxu0 0.0
        %2743 = vmatprep.subr.mxu0 0.0
        %2744 = vmatpush1.msra.mxu0 0.0
        %2745 = vmatprep.subr.mxu0 0.0
        %2746 = vmatpush1.msra.mxu0 0.0
        %2747 = vmatprep.subr.mxu0 0.0
        %2748 = vmatpush1.msra.mxu0 0.0
        %2749 = vmatprep.subr.mxu0 0.0
        %2750 = vmatpush1.msra.mxu0 0.0
        %2751 = vmatprep.subr.mxu0 0.0
        %2752 = vmatpush1.msra.mxu0 0.0
        %2753 = vmatprep.subr.mxu0 0.0
        %2754 = vmatpush1.msra.mxu0 0.0
        %2755 = vmatprep.subr.mxu0 0.0
        %2756 = vmatpush1.msra.mxu0 0.0
        %2757 = vmatprep.subr.mxu0 0.0
        %2758 = vmatpush1.msra.mxu0 0.0
        %2759 = vmatprep.subr.mxu0 0.0
        %2760 = vmatpush1.msra.mxu0 0.0
        %2761 = vmatprep.subr.mxu0 0.0
        %2762 = vmatpush1.msra.mxu0 0.0
        %2763 = vmatprep.subr.mxu0 0.0
        %2764 = vmatpush1.msra.mxu0 0.0
        %2765 = vmatprep.subr.mxu0 0.0
        %2766 = vmatpush1.msra.mxu0 0.0
        %2767 = vmatprep.subr.mxu0 0.0
        %2768 = vmatpush1.msra.mxu0 0.0
        %2769 = vmatprep.subr.mxu0 0.0
        %2770 = vmatpush1.msra.mxu0 %v2641
        %2771 = vmatprep.subr.mxu0 0.0
        %2772 = vmatpush2.msra.mxu0 0.0
        %2773 = vmatprep.subr.mxu0 0.0
        %2774 = vmatpush2.msra.mxu0 0.0
        %2775 = vmatprep.subr.mxu0 0.0
        %2776 = vmatpush2.msra.mxu0 0.0
        %2777 = vmatprep.subr.mxu0 0.0
        %2778 = vmatpush2.msra.mxu0 0.0
        %2779 = vmatprep.subr.mxu0 0.0
        %2780 = vmatpush2.msra.mxu0 0.0
        %2781 = vmatprep.subr.mxu0 0.0
        %2782 = vmatpush2.msra.mxu0 0.0
        %2783 = vmatprep.subr.mxu0 0.0
        %2784 = vmatpush2.msra.mxu0 0.0
        %2785 = vmatprep.subr.mxu0 0.0
        %2786 = vmatpush2.msra.mxu0 0.0
        %2787 = vmatprep.subr.mxu0 0.0
        %2788 = vmatpush2.msra.mxu0 0.0
        %2789 = vmatprep.subr.mxu0 0.0
        %2790 = vmatpush2.msra.mxu0 0.0
        %2791 = vmatprep.subr.mxu0 0.0
        %2792 = vmatpush2.msra.mxu0 0.0
        %2793 = vmatprep.subr.mxu0 0.0
        %2794 = vmatpush2.msra.mxu0 0.0
        %2795 = vmatprep.subr.mxu0 0.0
        %2796 = vmatpush2.msra.mxu0 0.0
        %2797 = vmatprep.subr.mxu0 0.0
        %2798 = vmatpush2.msra.mxu0 0.0
        %2799 = vmatprep.subr.mxu0 0.0
        %2800 = vmatpush2.msra.mxu0 0.0
        %2801 = vmatprep.subr.mxu0 0.0
        %2802 = vmatpush2.msra.mxu0 0.0
        %2803 = vmatprep.mubr.f32.mxu0 0.0
        %2804 = vmatmul.mubr.f32.gmra.mxu0 %v2734
        %v2805 = vpop.f32.mrf.mxu0
        %v2806 = vadd.f32 %v2725, %v2805
        %v2807 = vpop.f32.mrf.mxu0
        %2808 = vmatprep.mubr.f32.mxu0 0.0
        %2809 = vmatmul.mubr.f32.gmra.mxu0 %v2737
        %v2810 = vpop.f32.mrf.mxu0
        %v2811 = vadd.f32 %v2730, %v2810
        %v2812 = vpop.f32.mrf.mxu0
        %2813 = vdwg.mxu0
        %v2814 = vld [vmem:[#allocation10 + $0x1e0] sm:$0xff]
        %v2815 = vld [vmem:[#allocation10 + $0x1e8] sm:$0xff]
        %2816 = vrot.lane.b32.xlu0 %v2641, 96
        %v2817 = vpop.permute.xlu0 %2816
        %v2820 = vsel %vm1813, %v2814, 0
        %v2823 = vsel %vm1813, %v2815, 0
        %2825 = vmatprep.subr.mxu0 0.0
        %2826 = vmatpush1.msra.mxu0 0.0
        %2827 = vmatprep.subr.mxu0 0.0
        %2828 = vmatpush1.msra.mxu0 0.0
        %2829 = vmatprep.subr.mxu0 0.0
        %2830 = vmatpush1.msra.mxu0 0.0
        %2831 = vmatprep.subr.mxu0 0.0
        %2832 = vmatpush1.msra.mxu0 0.0
        %2833 = vmatprep.subr.mxu0 0.0
        %2834 = vmatpush1.msra.mxu0 0.0
        %2835 = vmatprep.subr.mxu0 0.0
        %2836 = vmatpush1.msra.mxu0 0.0
        %2837 = vmatprep.subr.mxu0 0.0
        %2838 = vmatpush1.msra.mxu0 0.0
        %2839 = vmatprep.subr.mxu0 0.0
        %2840 = vmatpush1.msra.mxu0 0.0
        %2841 = vmatprep.subr.mxu0 0.0
        %2842 = vmatpush1.msra.mxu0 0.0
        %2843 = vmatprep.subr.mxu0 0.0
        %2844 = vmatpush1.msra.mxu0 0.0
        %2845 = vmatprep.subr.mxu0 0.0
        %2846 = vmatpush1.msra.mxu0 0.0
        %2847 = vmatprep.subr.mxu0 0.0
        %2848 = vmatpush1.msra.mxu0 0.0
        %2849 = vmatprep.subr.mxu0 0.0
        %2850 = vmatpush1.msra.mxu0 0.0
        %2851 = vmatprep.subr.mxu0 0.0
        %2852 = vmatpush1.msra.mxu0 0.0
        %2853 = vmatprep.subr.mxu0 0.0
        %2854 = vmatpush1.msra.mxu0 0.0
        %2855 = vmatprep.subr.mxu0 0.0
        %2856 = vmatpush1.msra.mxu0 %v2817
        %2857 = vmatprep.subr.mxu0 0.0
        %2858 = vmatpush2.msra.mxu0 0.0
        %2859 = vmatprep.subr.mxu0 0.0
        %2860 = vmatpush2.msra.mxu0 0.0
        %2861 = vmatprep.subr.mxu0 0.0
        %2862 = vmatpush2.msra.mxu0 0.0
        %2863 = vmatprep.subr.mxu0 0.0
        %2864 = vmatpush2.msra.mxu0 0.0
        %2865 = vmatprep.subr.mxu0 0.0
        %2866 = vmatpush2.msra.mxu0 0.0
        %2867 = vmatprep.subr.mxu0 0.0
        %2868 = vmatpush2.msra.mxu0 0.0
        %2869 = vmatprep.subr.mxu0 0.0
        %2870 = vmatpush2.msra.mxu0 0.0
        %2871 = vmatprep.subr.mxu0 0.0
        %2872 = vmatpush2.msra.mxu0 0.0
        %2873 = vmatprep.subr.mxu0 0.0
        %2874 = vmatpush2.msra.mxu0 0.0
        %2875 = vmatprep.subr.mxu0 0.0
        %2876 = vmatpush2.msra.mxu0 0.0
        %2877 = vmatprep.subr.mxu0 0.0
        %2878 = vmatpush2.msra.mxu0 0.0
        %2879 = vmatprep.subr.mxu0 0.0
        %2880 = vmatpush2.msra.mxu0 0.0
        %2881 = vmatprep.subr.mxu0 0.0
        %2882 = vmatpush2.msra.mxu0 0.0
        %2883 = vmatprep.subr.mxu0 0.0
        %2884 = vmatpush2.msra.mxu0 0.0
        %2885 = vmatprep.subr.mxu0 0.0
        %2886 = vmatpush2.msra.mxu0 0.0
        %2887 = vmatprep.subr.mxu0 0.0
        %2888 = vmatpush2.msra.mxu0 0.0
        %2889 = vmatprep.mubr.f32.mxu0 0.0
        %2890 = vmatmul.mubr.f32.gmra.mxu0 %v2820
        %v2891 = vpop.f32.mrf.mxu0
        %v2892 = vadd.f32 0.0, %v2891
        %v2893 = vpop.f32.mrf.mxu0
        %2894 = vmatprep.mubr.f32.mxu0 0.0
        %2895 = vmatmul.mubr.f32.gmra.mxu0 %v2823
        %v2896 = vpop.f32.mrf.mxu0
        %v2897 = vadd.f32 0.0, %v2896
        %v2898 = vpop.f32.mrf.mxu0
        %2899 = vdwg.mxu0
        %v2900 = vadd.f32 %v2806, %v2892
        %v2901 = vadd.f32 %v2811, %v2897
        %v2902 = vld [vmem:[#allocation10 + $0x230] sm:$0x1]
        %v2903 = vld [vmem:[#allocation10 + $0x1f0] sm:$0xff]
        %v2904 = vld [vmem:[#allocation10 + $0x1f8] sm:$0xff]
        %v2906 = vsel %vm380, %v2231, 0
        %v2909 = vsel %vm380, %v2232, 0
        %2911 = vmatprep.subr.mxu0 0.0
        %2912 = vmatpush1.msra.mxu0 0.0
        %2913 = vmatprep.subr.mxu0 0.0
        %2914 = vmatpush1.msra.mxu0 0.0
        %2915 = vmatprep.subr.mxu0 0.0
        %2916 = vmatpush1.msra.mxu0 0.0
        %2917 = vmatprep.subr.mxu0 0.0
        %2918 = vmatpush1.msra.mxu0 0.0
        %2919 = vmatprep.subr.mxu0 0.0
        %2920 = vmatpush1.msra.mxu0 0.0
        %2921 = vmatprep.subr.mxu0 0.0
        %2922 = vmatpush1.msra.mxu0 0.0
        %2923 = vmatprep.subr.mxu0 0.0
        %2924 = vmatpush1.msra.mxu0 0.0
        %2925 = vmatprep.subr.mxu0 0.0
        %2926 = vmatpush1.msra.mxu0 0.0
        %2927 = vmatprep.subr.mxu0 0.0
        %2928 = vmatpush1.msra.mxu0 0.0
        %2929 = vmatprep.subr.mxu0 0.0
        %2930 = vmatpush1.msra.mxu0 0.0
        %2931 = vmatprep.subr.mxu0 0.0
        %2932 = vmatpush1.msra.mxu0 0.0
        %2933 = vmatprep.subr.mxu0 0.0
        %2934 = vmatpush1.msra.mxu0 0.0
        %2935 = vmatprep.subr.mxu0 0.0
        %2936 = vmatpush1.msra.mxu0 0.0
        %2937 = vmatprep.subr.mxu0 0.0
        %2938 = vmatpush1.msra.mxu0 0.0
        %2939 = vmatprep.subr.mxu0 0.0
        %2940 = vmatpush1.msra.mxu0 %v2904
        %2941 = vmatprep.subr.mxu0 0.0
        %2942 = vmatpush1.msra.mxu0 %v2903
        %2943 = vmatprep.subr.mxu0 0.0
        %2944 = vmatpush2.msra.mxu0 0.0
        %2945 = vmatprep.subr.mxu0 0.0
        %2946 = vmatpush2.msra.mxu0 0.0
        %2947 = vmatprep.subr.mxu0 0.0
        %2948 = vmatpush2.msra.mxu0 0.0
        %2949 = vmatprep.subr.mxu0 0.0
        %2950 = vmatpush2.msra.mxu0 0.0
        %2951 = vmatprep.subr.mxu0 0.0
        %2952 = vmatpush2.msra.mxu0 0.0
        %2953 = vmatprep.subr.mxu0 0.0
        %2954 = vmatpush2.msra.mxu0 0.0
        %2955 = vmatprep.subr.mxu0 0.0
        %2956 = vmatpush2.msra.mxu0 0.0
        %2957 = vmatprep.subr.mxu0 0.0
        %2958 = vmatpush2.msra.mxu0 0.0
        %2959 = vmatprep.subr.mxu0 0.0
        %2960 = vmatpush2.msra.mxu0 0.0
        %2961 = vmatprep.subr.mxu0 0.0
        %2962 = vmatpush2.msra.mxu0 0.0
        %2963 = vmatprep.subr.mxu0 0.0
        %2964 = vmatpush2.msra.mxu0 0.0
        %2965 = vmatprep.subr.mxu0 0.0
        %2966 = vmatpush2.msra.mxu0 0.0
        %2967 = vmatprep.subr.mxu0 0.0
        %2968 = vmatpush2.msra.mxu0 0.0
        %2969 = vmatprep.subr.mxu0 0.0
        %2970 = vmatpush2.msra.mxu0 0.0
        %2971 = vmatprep.subr.mxu0 0.0
        %2972 = vmatpush2.msra.mxu0 0.0
        %2973 = vmatprep.subr.mxu0 0.0
        %2974 = vmatpush2.msra.mxu0 0.0
        %2975 = vmatprep.mubr.f32.mxu0 0.0
        %2976 = vmatmul.mubr.f32.gmra.mxu0 %v2906
        %v2977 = vpop.f32.mrf.mxu0
        %v2978 = vadd.f32 0.0, %v2977
        %v2979 = vpop.f32.mrf.mxu0
        %2980 = vmatprep.mubr.f32.mxu0 0.0
        %2981 = vmatmul.mubr.f32.gmra.mxu0 %v2909
        %v2982 = vpop.f32.mrf.mxu0
        %v2983 = vadd.f32 0.0, %v2982
        %v2984 = vpop.f32.mrf.mxu0
        %2985 = vdwg.mxu0
        %v2986 = vlaneseq
        %v2987 = vshrl.u32 %v2986, 7
        %v2988 = vsub.s32 0, %v2987
        %v2989 = vrot.slane %v2902, %v2988
        %v2990 = vadd.f32 %v2989, %v2978
        %v2991 = vadd.f32 %v2989, %v2983
        %v2992 = vld [vmem:[#allocation10 + $0x200] sm:$0xff]
        %v2993 = vld [vmem:[#allocation10 + $0x208] sm:$0xff]
        %v2995 = vsel %vm380, %v2567, 0
        %v2998 = vsel %vm380, %v2568, 0
        %3000 = vmatprep.subr.mxu0 0.0
        %3001 = vmatpush1.msra.mxu0 0.0
        %3002 = vmatprep.subr.mxu0 0.0
        %3003 = vmatpush1.msra.mxu0 0.0
        %3004 = vmatprep.subr.mxu0 0.0
        %3005 = vmatpush1.msra.mxu0 0.0
        %3006 = vmatprep.subr.mxu0 0.0
        %3007 = vmatpush1.msra.mxu0 0.0
        %3008 = vmatprep.subr.mxu0 0.0
        %3009 = vmatpush1.msra.mxu0 0.0
        %3010 = vmatprep.subr.mxu0 0.0
        %3011 = vmatpush1.msra.mxu0 0.0
        %3012 = vmatprep.subr.mxu0 0.0
        %3013 = vmatpush1.msra.mxu0 0.0
        %3014 = vmatprep.subr.mxu0 0.0
        %3015 = vmatpush1.msra.mxu0 0.0
        %3016 = vmatprep.subr.mxu0 0.0
        %3017 = vmatpush1.msra.mxu0 0.0
        %3018 = vmatprep.subr.mxu0 0.0
        %3019 = vmatpush1.msra.mxu0 0.0
        %3020 = vmatprep.subr.mxu0 0.0
        %3021 = vmatpush1.msra.mxu0 0.0
        %3022 = vmatprep.subr.mxu0 0.0
        %3023 = vmatpush1.msra.mxu0 0.0
        %3024 = vmatprep.subr.mxu0 0.0
        %3025 = vmatpush1.msra.mxu0 0.0
        %3026 = vmatprep.subr.mxu0 0.0
        %3027 = vmatpush1.msra.mxu0 0.0
        %3028 = vmatprep.subr.mxu0 0.0
        %3029 = vmatpush1.msra.mxu0 %v2993
        %3030 = vmatprep.subr.mxu0 0.0
        %3031 = vmatpush1.msra.mxu0 %v2992
        %3032 = vmatprep.subr.mxu0 0.0
        %3033 = vmatpush2.msra.mxu0 0.0
        %3034 = vmatprep.subr.mxu0 0.0
        %3035 = vmatpush2.msra.mxu0 0.0
        %3036 = vmatprep.subr.mxu0 0.0
        %3037 = vmatpush2.msra.mxu0 0.0
        %3038 = vmatprep.subr.mxu0 0.0
        %3039 = vmatpush2.msra.mxu0 0.0
        %3040 = vmatprep.subr.mxu0 0.0
        %3041 = vmatpush2.msra.mxu0 0.0
        %3042 = vmatprep.subr.mxu0 0.0
        %3043 = vmatpush2.msra.mxu0 0.0
        %3044 = vmatprep.subr.mxu0 0.0
        %3045 = vmatpush2.msra.mxu0 0.0
        %3046 = vmatprep.subr.mxu0 0.0
        %3047 = vmatpush2.msra.mxu0 0.0
        %3048 = vmatprep.subr.mxu0 0.0
        %3049 = vmatpush2.msra.mxu0 0.0
        %3050 = vmatprep.subr.mxu0 0.0
        %3051 = vmatpush2.msra.mxu0 0.0
        %3052 = vmatprep.subr.mxu0 0.0
        %3053 = vmatpush2.msra.mxu0 0.0
        %3054 = vmatprep.subr.mxu0 0.0
        %3055 = vmatpush2.msra.mxu0 0.0
        %3056 = vmatprep.subr.mxu0 0.0
        %3057 = vmatpush2.msra.mxu0 0.0
        %3058 = vmatprep.subr.mxu0 0.0
        %3059 = vmatpush2.msra.mxu0 0.0
        %3060 = vmatprep.subr.mxu0 0.0
        %3061 = vmatpush2.msra.mxu0 0.0
        %3062 = vmatprep.subr.mxu0 0.0
        %3063 = vmatpush2.msra.mxu0 0.0
        %3064 = vmatprep.mubr.f32.mxu0 0.0
        %3065 = vmatmul.mubr.f32.gmra.mxu0 %v2995
        %v3066 = vpop.f32.mrf.mxu0
        %v3067 = vadd.f32 0.0, %v3066
        %v3068 = vpop.f32.mrf.mxu0
        %3069 = vmatprep.mubr.f32.mxu0 0.0
        %3070 = vmatmul.mubr.f32.gmra.mxu0 %v2998
        %v3071 = vpop.f32.mrf.mxu0
        %v3072 = vadd.f32 0.0, %v3071
        %v3073 = vpop.f32.mrf.mxu0
        %3074 = vdwg.mxu0
        %v3075 = vadd.f32 %v2990, %v3067
        %v3076 = vadd.f32 %v2991, %v3072
        %v3077 = vld [vmem:[#allocation10 + $0x210] sm:$0xff]
        %v3078 = vld [vmem:[#allocation10 + $0x218] sm:$0xff]
        %v3080 = vsel %vm380, %v2900, 0
        %v3083 = vsel %vm380, %v2901, 0
        %3085 = vmatprep.subr.mxu0 0.0
        %3086 = vmatpush1.msra.mxu0 0.0
        %3087 = vmatprep.subr.mxu0 0.0
        %3088 = vmatpush1.msra.mxu0 0.0
        %3089 = vmatprep.subr.mxu0 0.0
        %3090 = vmatpush1.msra.mxu0 0.0
        %3091 = vmatprep.subr.mxu0 0.0
        %3092 = vmatpush1.msra.mxu0 0.0
        %3093 = vmatprep.subr.mxu0 0.0
        %3094 = vmatpush1.msra.mxu0 0.0
        %3095 = vmatprep.subr.mxu0 0.0
        %3096 = vmatpush1.msra.mxu0 0.0
        %3097 = vmatprep.subr.mxu0 0.0
        %3098 = vmatpush1.msra.mxu0 0.0
        %3099 = vmatprep.subr.mxu0 0.0
        %3100 = vmatpush1.msra.mxu0 0.0
        %3101 = vmatprep.subr.mxu0 0.0
        %3102 = vmatpush1.msra.mxu0 0.0
        %3103 = vmatprep.subr.mxu0 0.0
        %3104 = vmatpush1.msra.mxu0 0.0
        %3105 = vmatprep.subr.mxu0 0.0
        %3106 = vmatpush1.msra.mxu0 0.0
        %3107 = vmatprep.subr.mxu0 0.0
        %3108 = vmatpush1.msra.mxu0 0.0
        %3109 = vmatprep.subr.mxu0 0.0
        %3110 = vmatpush1.msra.mxu0 0.0
        %3111 = vmatprep.subr.mxu0 0.0
        %3112 = vmatpush1.msra.mxu0 0.0
        %3113 = vmatprep.subr.mxu0 0.0
        %3114 = vmatpush1.msra.mxu0 %v3078
        %3115 = vmatprep.subr.mxu0 0.0
        %3116 = vmatpush1.msra.mxu0 %v3077
        %3117 = vmatprep.subr.mxu0 0.0
        %3118 = vmatpush2.msra.mxu0 0.0
        %3119 = vmatprep.subr.mxu0 0.0
        %3120 = vmatpush2.msra.mxu0 0.0
        %3121 = vmatprep.subr.mxu0 0.0
        %3122 = vmatpush2.msra.mxu0 0.0
        %3123 = vmatprep.subr.mxu0 0.0
        %3124 = vmatpush2.msra.mxu0 0.0
        %3125 = vmatprep.subr.mxu0 0.0
        %3126 = vmatpush2.msra.mxu0 0.0
        %3127 = vmatprep.subr.mxu0 0.0
        %3128 = vmatpush2.msra.mxu0 0.0
        %3129 = vmatprep.subr.mxu0 0.0
        %3130 = vmatpush2.msra.mxu0 0.0
        %3131 = vmatprep.subr.mxu0 0.0
        %3132 = vmatpush2.msra.mxu0 0.0
        %3133 = vmatprep.subr.mxu0 0.0
        %3134 = vmatpush2.msra.mxu0 0.0
        %3135 = vmatprep.subr.mxu0 0.0
        %3136 = vmatpush2.msra.mxu0 0.0
        %3137 = vmatprep.subr.mxu0 0.0
        %3138 = vmatpush2.msra.mxu0 0.0
        %3139 = vmatprep.subr.mxu0 0.0
        %3140 = vmatpush2.msra.mxu0 0.0
        %3141 = vmatprep.subr.mxu0 0.0
        %3142 = vmatpush2.msra.mxu0 0.0
        %3143 = vmatprep.subr.mxu0 0.0
        %3144 = vmatpush2.msra.mxu0 0.0
        %3145 = vmatprep.subr.mxu0 0.0
        %3146 = vmatpush2.msra.mxu0 0.0
        %3147 = vmatprep.subr.mxu0 0.0
        %3148 = vmatpush2.msra.mxu0 0.0
        %3149 = vmatprep.mubr.f32.mxu0 0.0
        %3150 = vmatmul.mubr.f32.gmra.mxu0 %v3080
        %v3151 = vpop.f32.mrf.mxu0
        %v3152 = vadd.f32 0.0, %v3151
        %v3153 = vpop.f32.mrf.mxu0
        %3154 = vmatprep.mubr.f32.mxu0 0.0
        %3155 = vmatmul.mubr.f32.gmra.mxu0 %v3083
        %v3156 = vpop.f32.mrf.mxu0
        %v3157 = vadd.f32 0.0, %v3156
        %v3158 = vpop.f32.mrf.mxu0
        %3159 = vdwg.mxu0
        %v3160 = vadd.f32 %v3075, %v3152
        %v3161 = vadd.f32 %v3076, %v3157
        %v3162 = vld [vmem:[#allocation10 + $0x220] sm:$0xff]
        %v3163 = vld [vmem:[#allocation10 + $0x228] sm:$0xff]
        %v3165 = vsel %vm380, %v1895, 0
        %v3168 = vsel %vm380, %v1896, 0
        %3170 = vmatprep.subr.mxu0 0.0
        %3171 = vmatpush1.msra.mxu0 0.0
        %3172 = vmatprep.subr.mxu0 0.0
        %3173 = vmatpush1.msra.mxu0 0.0
        %3174 = vmatprep.subr.mxu0 0.0
        %3175 = vmatpush1.msra.mxu0 0.0
        %3176 = vmatprep.subr.mxu0 0.0
        %3177 = vmatpush1.msra.mxu0 0.0
        %3178 = vmatprep.subr.mxu0 0.0
        %3179 = vmatpush1.msra.mxu0 0.0
        %3180 = vmatprep.subr.mxu0 0.0
        %3181 = vmatpush1.msra.mxu0 0.0
        %3182 = vmatprep.subr.mxu0 0.0
        %3183 = vmatpush1.msra.mxu0 0.0
        %3184 = vmatprep.subr.mxu0 0.0
        %3185 = vmatpush1.msra.mxu0 0.0
        %3186 = vmatprep.subr.mxu0 0.0
        %3187 = vmatpush1.msra.mxu0 0.0
        %3188 = vmatprep.subr.mxu0 0.0
        %3189 = vmatpush1.msra.mxu0 0.0
        %3190 = vmatprep.subr.mxu0 0.0
        %3191 = vmatpush1.msra.mxu0 0.0
        %3192 = vmatprep.subr.mxu0 0.0
        %3193 = vmatpush1.msra.mxu0 0.0
        %3194 = vmatprep.subr.mxu0 0.0
        %3195 = vmatpush1.msra.mxu0 0.0
        %3196 = vmatprep.subr.mxu0 0.0
        %3197 = vmatpush1.msra.mxu0 0.0
        %3198 = vmatprep.subr.mxu0 0.0
        %3199 = vmatpush1.msra.mxu0 %v3163
        %3200 = vmatprep.subr.mxu0 0.0
        %3201 = vmatpush1.msra.mxu0 %v3162
        %3202 = vmatprep.subr.mxu0 0.0
        %3203 = vmatpush2.msra.mxu0 0.0
        %3204 = vmatprep.subr.mxu0 0.0
        %3205 = vmatpush2.msra.mxu0 0.0
        %3206 = vmatprep.subr.mxu0 0.0
        %3207 = vmatpush2.msra.mxu0 0.0
        %3208 = vmatprep.subr.mxu0 0.0
        %3209 = vmatpush2.msra.mxu0 0.0
        %3210 = vmatprep.subr.mxu0 0.0
        %3211 = vmatpush2.msra.mxu0 0.0
        %3212 = vmatprep.subr.mxu0 0.0
        %3213 = vmatpush2.msra.mxu0 0.0
        %3214 = vmatprep.subr.mxu0 0.0
        %3215 = vmatpush2.msra.mxu0 0.0
        %3216 = vmatprep.subr.mxu0 0.0
        %3217 = vmatpush2.msra.mxu0 0.0
        %3218 = vmatprep.subr.mxu0 0.0
        %3219 = vmatpush2.msra.mxu0 0.0
        %3220 = vmatprep.subr.mxu0 0.0
        %3221 = vmatpush2.msra.mxu0 0.0
        %3222 = vmatprep.subr.mxu0 0.0
        %3223 = vmatpush2.msra.mxu0 0.0
        %3224 = vmatprep.subr.mxu0 0.0
        %3225 = vmatpush2.msra.mxu0 0.0
        %3226 = vmatprep.subr.mxu0 0.0
        %3227 = vmatpush2.msra.mxu0 0.0
        %3228 = vmatprep.subr.mxu0 0.0
        %3229 = vmatpush2.msra.mxu0 0.0
        %3230 = vmatprep.subr.mxu0 0.0
        %3231 = vmatpush2.msra.mxu0 0.0
        %3232 = vmatprep.subr.mxu0 0.0
        %3233 = vmatpush2.msra.mxu0 0.0
        %3234 = vmatprep.mubr.f32.mxu0 0.0
        %3235 = vmatmul.mubr.f32.gmra.mxu0 %v3165
        %v3236 = vpop.f32.mrf.mxu0
        %v3237 = vadd.f32 0.0, %v3236
        %v3238 = vpop.f32.mrf.mxu0
        %3239 = vmatprep.mubr.f32.mxu0 0.0
        %3240 = vmatmul.mubr.f32.gmra.mxu0 %v3168
        %v3241 = vpop.f32.mrf.mxu0
        %v3242 = vadd.f32 0.0, %v3241
        %v3243 = vpop.f32.mrf.mxu0
        %3244 = vdwg.mxu0
        %v3245 = vadd.f32 %v3160, %v3237
        %v3246 = vadd.f32 %v3161, %v3242
        %3249 = vrot.lane.b32.xlu0 %v3245, 112
        %v3250 = vpop.permute.xlu0 %3249
        %3251 = vrot.lane.b32.xlu0 %v3246, 112
        %v3252 = vpop.permute.xlu0 %3251
        %3255 = vmatprep.subr.mxu0 0.0
        %3256 = vmatpush1.msra.mxu0 0.0
        %3257 = vmatprep.subr.mxu0 0.0
        %3258 = vmatpush1.msra.mxu0 0.0
        %3259 = vmatprep.subr.mxu0 0.0
        %3260 = vmatpush1.msra.mxu0 0.0
        %3261 = vmatprep.subr.mxu0 0.0
        %3262 = vmatpush1.msra.mxu0 0.0
        %3263 = vmatprep.subr.mxu0 0.0
        %3264 = vmatpush1.msra.mxu0 0.0
        %3265 = vmatprep.subr.mxu0 0.0
        %3266 = vmatpush1.msra.mxu0 0.0
        %3267 = vmatprep.subr.mxu0 0.0
        %3268 = vmatpush1.msra.mxu0 0.0
        %3269 = vmatprep.subr.mxu0 0.0
        %3270 = vmatpush1.msra.mxu0 0.0
        %3271 = vmatprep.subr.mxu0 0.0
        %3272 = vmatpush1.msra.mxu0 0.0
        %3273 = vmatprep.subr.mxu0 0.0
        %3274 = vmatpush1.msra.mxu0 0.0
        %3275 = vmatprep.subr.mxu0 0.0
        %3276 = vmatpush1.msra.mxu0 0.0
        %3277 = vmatprep.subr.mxu0 0.0
        %3278 = vmatpush1.msra.mxu0 0.0
        %3279 = vmatprep.subr.mxu0 0.0
        %3280 = vmatpush1.msra.mxu0 0.0
        %3281 = vmatprep.subr.mxu0 0.0
        %3282 = vmatpush1.msra.mxu0 0.0
        %3283 = vmatprep.subr.mxu0 0.0
        %3284 = vmatpush1.msra.mxu0 %v3246
        %3285 = vmatprep.subr.mxu0 0.0
        %3286 = vmatpush1.msra.mxu0 %v3245
        %3287 = vmatprep.subr.mxu0 0.0
        %3288 = vmatpush2.msra.mxu0 0.0
        %3289 = vmatprep.subr.mxu0 0.0
        %3290 = vmatpush2.msra.mxu0 0.0
        %3291 = vmatprep.subr.mxu0 0.0
        %3292 = vmatpush2.msra.mxu0 0.0
        %3293 = vmatprep.subr.mxu0 0.0
        %3294 = vmatpush2.msra.mxu0 0.0
        %3295 = vmatprep.subr.mxu0 0.0
        %3296 = vmatpush2.msra.mxu0 0.0
        %3297 = vmatprep.subr.mxu0 0.0
        %3298 = vmatpush2.msra.mxu0 0.0
        %3299 = vmatprep.subr.mxu0 0.0
        %3300 = vmatpush2.msra.mxu0 0.0
        %3301 = vmatprep.subr.mxu0 0.0
        %3302 = vmatpush2.msra.mxu0 0.0
        %3303 = vmatprep.subr.mxu0 0.0
        %3304 = vmatpush2.msra.mxu0 0.0
        %3305 = vmatprep.subr.mxu0 0.0
        %3306 = vmatpush2.msra.mxu0 0.0
        %3307 = vmatprep.subr.mxu0 0.0
        %3308 = vmatpush2.msra.mxu0 0.0
        %3309 = vmatprep.subr.mxu0 0.0
        %3310 = vmatpush2.msra.mxu0 0.0
        %3311 = vmatprep.subr.mxu0 0.0
        %3312 = vmatpush2.msra.mxu0 0.0
        %3313 = vmatprep.subr.mxu0 0.0
        %3314 = vmatpush2.msra.mxu0 0.0
        %3315 = vmatprep.subr.mxu0 0.0
        %3316 = vmatpush2.msra.mxu0 0.0
        %3317 = vmatprep.subr.mxu0 0.0
        %3318 = vmatpush2.msra.mxu0 0.0
        %3319 = vmatprep.mubr.f32.mxu0 0.0
        %3320 = vmatmul.mubr.f32.gmra.mxu0 %v1482
        %v3321 = vpop.f32.mrf.mxu0
        %v3322 = vadd.f32 %v3250, %v3321
        %v3323 = vpop.f32.mrf.mxu0
        %3324 = vmatprep.mubr.f32.mxu0 0.0
        %3325 = vmatmul.mubr.f32.gmra.mxu0 %v1485
        %v3326 = vpop.f32.mrf.mxu0
        %v3327 = vadd.f32 %v3252, %v3326
        %v3328 = vpop.f32.mrf.mxu0
        %3329 = vdwg.mxu0
        %3330 = vrot.lane.b32.xlu0 %v3245, 96
        %v3331 = vpop.permute.xlu0 %3330
        %3332 = vrot.lane.b32.xlu0 %v3246, 96
        %v3333 = vpop.permute.xlu0 %3332
        %3336 = vmatprep.subr.mxu0 0.0
        %3337 = vmatpush1.msra.mxu0 0.0
        %3338 = vmatprep.subr.mxu0 0.0
        %3339 = vmatpush1.msra.mxu0 0.0
        %3340 = vmatprep.subr.mxu0 0.0
        %3341 = vmatpush1.msra.mxu0 0.0
        %3342 = vmatprep.subr.mxu0 0.0
        %3343 = vmatpush1.msra.mxu0 0.0
        %3344 = vmatprep.subr.mxu0 0.0
        %3345 = vmatpush1.msra.mxu0 0.0
        %3346 = vmatprep.subr.mxu0 0.0
        %3347 = vmatpush1.msra.mxu0 0.0
        %3348 = vmatprep.subr.mxu0 0.0
        %3349 = vmatpush1.msra.mxu0 0.0
        %3350 = vmatprep.subr.mxu0 0.0
        %3351 = vmatpush1.msra.mxu0 0.0
        %3352 = vmatprep.subr.mxu0 0.0
        %3353 = vmatpush1.msra.mxu0 0.0
        %3354 = vmatprep.subr.mxu0 0.0
        %3355 = vmatpush1.msra.mxu0 0.0
        %3356 = vmatprep.subr.mxu0 0.0
        %3357 = vmatpush1.msra.mxu0 0.0
        %3358 = vmatprep.subr.mxu0 0.0
        %3359 = vmatpush1.msra.mxu0 0.0
        %3360 = vmatprep.subr.mxu0 0.0
        %3361 = vmatpush1.msra.mxu0 0.0
        %3362 = vmatprep.subr.mxu0 0.0
        %3363 = vmatpush1.msra.mxu0 0.0
        %3364 = vmatprep.subr.mxu0 0.0
        %3365 = vmatpush1.msra.mxu0 %v3333
        %3366 = vmatprep.subr.mxu0 0.0
        %3367 = vmatpush1.msra.mxu0 %v3331
        %3368 = vmatprep.subr.mxu0 0.0
        %3369 = vmatpush2.msra.mxu0 0.0
        %3370 = vmatprep.subr.mxu0 0.0
        %3371 = vmatpush2.msra.mxu0 0.0
        %3372 = vmatprep.subr.mxu0 0.0
        %3373 = vmatpush2.msra.mxu0 0.0
        %3374 = vmatprep.subr.mxu0 0.0
        %3375 = vmatpush2.msra.mxu0 0.0
        %3376 = vmatprep.subr.mxu0 0.0
        %3377 = vmatpush2.msra.mxu0 0.0
        %3378 = vmatprep.subr.mxu0 0.0
        %3379 = vmatpush2.msra.mxu0 0.0
        %3380 = vmatprep.subr.mxu0 0.0
        %3381 = vmatpush2.msra.mxu0 0.0
        %3382 = vmatprep.subr.mxu0 0.0
        %3383 = vmatpush2.msra.mxu0 0.0
        %3384 = vmatprep.subr.mxu0 0.0
        %3385 = vmatpush2.msra.mxu0 0.0
        %3386 = vmatprep.subr.mxu0 0.0
        %3387 = vmatpush2.msra.mxu0 0.0
        %3388 = vmatprep.subr.mxu0 0.0
        %3389 = vmatpush2.msra.mxu0 0.0
        %3390 = vmatprep.subr.mxu0 0.0
        %3391 = vmatpush2.msra.mxu0 0.0
        %3392 = vmatprep.subr.mxu0 0.0
        %3393 = vmatpush2.msra.mxu0 0.0
        %3394 = vmatprep.subr.mxu0 0.0
        %3395 = vmatpush2.msra.mxu0 0.0
        %3396 = vmatprep.subr.mxu0 0.0
        %3397 = vmatpush2.msra.mxu0 0.0
        %3398 = vmatprep.subr.mxu0 0.0
        %3399 = vmatpush2.msra.mxu0 0.0
        %3400 = vmatprep.mubr.f32.mxu0 0.0
        %3401 = vmatmul.mubr.f32.gmra.mxu0 %v1569
        %v3402 = vpop.f32.mrf.mxu0
        %v3403 = vadd.f32 0.0, %v3402
        %v3404 = vpop.f32.mrf.mxu0
        %3405 = vmatprep.mubr.f32.mxu0 0.0
        %3406 = vmatmul.mubr.f32.gmra.mxu0 %v1572
        %v3407 = vpop.f32.mrf.mxu0
        %v3408 = vadd.f32 0.0, %v3407
        %v3409 = vpop.f32.mrf.mxu0
        %3410 = vdwg.mxu0
        %v3411 = vadd.f32 %v3322, %v3403
        %v3412 = vadd.f32 %v3327, %v3408
        %v3413 = vld [vmem:[#allocation10 + $0x238] sm:$0xff]
        %v3414 = vld [vmem:[#allocation10 + $0x240] sm:$0xff]
        %v3416 = vsel %vm380, %v3411, 0
        %v3419 = vsel %vm380, %v3412, 0
        %3421 = vmatprep.subr.mxu0 0.0
        %3422 = vmatpush1.msra.mxu0 0.0
        %3423 = vmatprep.subr.mxu0 0.0
        %3424 = vmatpush1.msra.mxu0 0.0
        %3425 = vmatprep.subr.mxu0 0.0
        %3426 = vmatpush1.msra.mxu0 0.0
        %3427 = vmatprep.subr.mxu0 0.0
        %3428 = vmatpush1.msra.mxu0 0.0
        %3429 = vmatprep.subr.mxu0 0.0
        %3430 = vmatpush1.msra.mxu0 0.0
        %3431 = vmatprep.subr.mxu0 0.0
        %3432 = vmatpush1.msra.mxu0 0.0
        %3433 = vmatprep.subr.mxu0 0.0
        %3434 = vmatpush1.msra.mxu0 0.0
        %3435 = vmatprep.subr.mxu0 0.0
        %3436 = vmatpush1.msra.mxu0 0.0
        %3437 = vmatprep.subr.mxu0 0.0
        %3438 = vmatpush1.msra.mxu0 0.0
        %3439 = vmatprep.subr.mxu0 0.0
        %3440 = vmatpush1.msra.mxu0 0.0
        %3441 = vmatprep.subr.mxu0 0.0
        %3442 = vmatpush1.msra.mxu0 0.0
        %3443 = vmatprep.subr.mxu0 0.0
        %3444 = vmatpush1.msra.mxu0 0.0
        %3445 = vmatprep.subr.mxu0 0.0
        %3446 = vmatpush1.msra.mxu0 0.0
        %3447 = vmatprep.subr.mxu0 0.0
        %3448 = vmatpush1.msra.mxu0 0.0
        %3449 = vmatprep.subr.mxu0 0.0
        %3450 = vmatpush1.msra.mxu0 %v3414
        %3451 = vmatprep.subr.mxu0 0.0
        %3452 = vmatpush1.msra.mxu0 %v3413
        %3453 = vmatprep.subr.mxu0 0.0
        %3454 = vmatpush2.msra.mxu0 0.0
        %3455 = vmatprep.subr.mxu0 0.0
        %3456 = vmatpush2.msra.mxu0 0.0
        %3457 = vmatprep.subr.mxu0 0.0
        %3458 = vmatpush2.msra.mxu0 0.0
        %3459 = vmatprep.subr.mxu0 0.0
        %3460 = vmatpush2.msra.mxu0 0.0
        %3461 = vmatprep.subr.mxu0 0.0
        %3462 = vmatpush2.msra.mxu0 0.0
        %3463 = vmatprep.subr.mxu0 0.0
        %3464 = vmatpush2.msra.mxu0 0.0
        %3465 = vmatprep.subr.mxu0 0.0
        %3466 = vmatpush2.msra.mxu0 0.0
        %3467 = vmatprep.subr.mxu0 0.0
        %3468 = vmatpush2.msra.mxu0 0.0
        %3469 = vmatprep.subr.mxu0 0.0
        %3470 = vmatpush2.msra.mxu0 0.0
        %3471 = vmatprep.subr.mxu0 0.0
        %3472 = vmatpush2.msra.mxu0 0.0
        %3473 = vmatprep.subr.mxu0 0.0
        %3474 = vmatpush2.msra.mxu0 0.0
        %3475 = vmatprep.subr.mxu0 0.0
        %3476 = vmatpush2.msra.mxu0 0.0
        %3477 = vmatprep.subr.mxu0 0.0
        %3478 = vmatpush2.msra.mxu0 0.0
        %3479 = vmatprep.subr.mxu0 0.0
        %3480 = vmatpush2.msra.mxu0 0.0
        %3481 = vmatprep.subr.mxu0 0.0
        %3482 = vmatpush2.msra.mxu0 0.0
        %3483 = vmatprep.subr.mxu0 0.0
        %3484 = vmatpush2.msra.mxu0 0.0
        %3485 = vmatprep.mubr.f32.mxu0 0.0
        %3486 = vmatmul.mubr.f32.gmra.mxu0 %v3416
        %v3487 = vpop.f32.mrf.mxu0
        %v3488 = vadd.f32 0.0, %v3487
        %v3489 = vpop.f32.mrf.mxu0
        %3490 = vmatprep.mubr.f32.mxu0 0.0
        %3491 = vmatmul.mubr.f32.gmra.mxu0 %v3419
        %v3492 = vpop.f32.mrf.mxu0
        %v3493 = vadd.f32 0.0, %v3492
        %v3494 = vpop.f32.mrf.mxu0
        %3495 = vdwg.mxu0
        %v3496 = vld [vmem:[#allocation10 + $0x248] sm:$0xff]
        %v3497 = vld [vmem:[#allocation10 + $0x250] sm:$0xff]
        %v3498 = vmul.f32 %v3488, %v3496
        %v3499 = vmul.f32 %v3493, %v3497
        %v3500 = vld [vmem:[#allocation10 + $0x258] sm:$0xff]
        %v3501 = vld [vmem:[#allocation10 + $0x260] sm:$0xff]
        %v3502 = vld [vmem:[#allocation10 + $0x268] sm:$0xff]
        %v3503 = vld [vmem:[#allocation10 + $0x270] sm:$0xff]
        %v3504 = vld [vmem:[#allocation10 + $0x278] sm:$0xff]
        %v3505 = vld [vmem:[#allocation10 + $0x280] sm:$0xff]
        %v3506 = vld [vmem:[#allocation10 + $0x288] sm:$0xff]
        %v3507 = vld [vmem:[#allocation10 + $0x290] sm:$0xff]
        %v3508 = vld [vmem:[#allocation10 + $0x298] sm:$0xff]
        %v3509 = vld [vmem:[#allocation10 + $0x2a0] sm:$0xff]
        %v3510 = vld [vmem:[#allocation10 + $0x2a8] sm:$0xff]
        %v3511 = vld [vmem:[#allocation10 + $0x2b0] sm:$0xff]
        %v3512 = vld [vmem:[#allocation10 + $0x2b8] sm:$0xff]
        %v3513 = vld [vmem:[#allocation10 + $0x2c0] sm:$0xff]
        %v3514 = vld [vmem:[#allocation10 + $0x2c8] sm:$0xff]
        %v3515 = vld [vmem:[#allocation10 + $0x2d0] sm:$0xff]
        %3516 = vmatprep.subr.mxu0 0.0
        %3517 = vmatpush1.msra.mxu0 %v3515
        %3518 = vmatprep.subr.mxu0 0.0
        %3519 = vmatpush1.msra.mxu0 %v3514
        %3520 = vmatprep.subr.mxu0 0.0
        %3521 = vmatpush1.msra.mxu0 %v3513
        %3522 = vmatprep.subr.mxu0 0.0
        %3523 = vmatpush1.msra.mxu0 %v3512
        %3524 = vmatprep.subr.mxu0 0.0
        %3525 = vmatpush1.msra.mxu0 %v3511
        %3526 = vmatprep.subr.mxu0 0.0
        %3527 = vmatpush1.msra.mxu0 %v3510
        %3528 = vmatprep.subr.mxu0 0.0
        %3529 = vmatpush1.msra.mxu0 %v3509
        %3530 = vmatprep.subr.mxu0 0.0
        %3531 = vmatpush1.msra.mxu0 %v3508
        %3532 = vmatprep.subr.mxu0 0.0
        %3533 = vmatpush1.msra.mxu0 %v3507
        %3534 = vmatprep.subr.mxu0 0.0
        %3535 = vmatpush1.msra.mxu0 %v3506
        %3536 = vmatprep.subr.mxu0 0.0
        %3537 = vmatpush1.msra.mxu0 %v3505
        %3538 = vmatprep.subr.mxu0 0.0
        %3539 = vmatpush1.msra.mxu0 %v3504
        %3540 = vmatprep.subr.mxu0 0.0
        %3541 = vmatpush1.msra.mxu0 %v3503
        %3542 = vmatprep.subr.mxu0 0.0
        %3543 = vmatpush1.msra.mxu0 %v3502
        %3544 = vmatprep.subr.mxu0 0.0
        %3545 = vmatpush1.msra.mxu0 %v3501
        %3546 = vmatprep.subr.mxu0 0.0
        %3547 = vmatpush1.msra.mxu0 %v3500
        %3548 = vmatprep.subr.mxu0 0.0
        %3549 = vmatpush2.msra.mxu0 0.0
        %3550 = vmatprep.subr.mxu0 0.0
        %3551 = vmatpush2.msra.mxu0 0.0
        %3552 = vmatprep.subr.mxu0 0.0
        %3553 = vmatpush2.msra.mxu0 0.0
        %3554 = vmatprep.subr.mxu0 0.0
        %3555 = vmatpush2.msra.mxu0 0.0
        %3556 = vmatprep.subr.mxu0 0.0
        %3557 = vmatpush2.msra.mxu0 0.0
        %3558 = vmatprep.subr.mxu0 0.0
        %3559 = vmatpush2.msra.mxu0 0.0
        %3560 = vmatprep.subr.mxu0 0.0
        %3561 = vmatpush2.msra.mxu0 0.0
        %3562 = vmatprep.subr.mxu0 0.0
        %3563 = vmatpush2.msra.mxu0 0.0
        %3564 = vmatprep.subr.mxu0 0.0
        %3565 = vmatpush2.msra.mxu0 0.0
        %3566 = vmatprep.subr.mxu0 0.0
        %3567 = vmatpush2.msra.mxu0 0.0
        %3568 = vmatprep.subr.mxu0 0.0
        %3569 = vmatpush2.msra.mxu0 0.0
        %3570 = vmatprep.subr.mxu0 0.0
        %3571 = vmatpush2.msra.mxu0 0.0
        %3572 = vmatprep.subr.mxu0 0.0
        %3573 = vmatpush2.msra.mxu0 0.0
        %3574 = vmatprep.subr.mxu0 0.0
        %3575 = vmatpush2.msra.mxu0 0.0
        %3576 = vmatprep.subr.mxu0 0.0
        %3577 = vmatpush2.msra.mxu0 0.0
        %3578 = vmatprep.subr.mxu0 0.0
        %3579 = vmatpush2.msra.mxu0 0.0
        %3580 = vmatprep.mubr.f32.mxu0 0.0
        %3581 = vmatmul.mubr.f32.gmra.mxu0 %v3498
        %v3582 = vpop.f32.mrf.mxu0
        %v3583 = vadd.f32 0.0, %v3582
        %v3584 = vpop.f32.mrf.mxu0
        %3585 = vmatprep.mubr.f32.mxu0 0.0
        %3586 = vmatmul.mubr.f32.gmra.mxu0 %v3499
        %v3587 = vpop.f32.mrf.mxu0
        %v3588 = vadd.f32 0.0, %v3587
        %v3589 = vpop.f32.mrf.mxu0
        %3590 = vdwg.mxu0
        %v3591 = vsel %vm1813, %v3583, 0.0
        %v3592 = vsel %vm1813, %v3588, 0.0
        %v3593 = vadd.f32 %v3591, %v3592
        %v3594 = vrot.slane %v3593, 4
        %v3595 = vadd.f32 %v3593, %v3594
        %v3596 = vrot.slane %v3595, 2
        %v3597 = vadd.f32 %v3595, %v3596
        %v3598 = vrot.slane %v3597, 1
        %v3599 = vadd.f32 %v3597, %v3598
        %v3600 = vld [vmem:[#allocation10 + $0x2d8] sm:$0x1]
        %v3601 = vadd.f32 %v3599, %v3600
        %vm3602 = vcmask 57344
        %3603 = vst.msk [vmem:[%s363] sm:$0x1] %vm3602, %v3601
        %s3604 = sand.u32 %s161, 1
        %s3605 = scalar_lea.sflag [#allocation4], %s3604
        %s3606 = sand.u32 %s161, 1
        %s3607 = scalar_lea.vmem [#allocation11], %s3606
        // Predicated region
        $region61: #{forward.1} parent=39 // pred_check
          %p3608 = pneg %p171
        $region62: #{forward.1} parent=39 // pred_check_branch
          %3610 = sbr.rel (%p3608) target = $region64
        $region63: #{forward.1} parent=39 // pred_region
          %s3612 = ssub.s32 16, 16
          %3613 = vsyncadd %s3605, %s3612
          %s3614 = smul.addr %s28, 16
          %s3615 = scalar_lea.hbm %s5, %s3614
          %s3617 = sshll.u32 %s3607, 4
          %s3618 = int_to_ptr.vmem [resolvable:$true] %s3617
          %3620 = dma.vmem_to_hbm [thread:$0]  %s3618, 16, %s3615, %s3605
        $region64: #{forward.1} parent=39 // pred_fallthru
          _
      $region40: #{forward.1} parent=5 // pred_fallthru
        _
      %p3621 = scmp.le.s32.totalorder 2, %s23
      // Predicated region
      $region65: #{forward.1} parent=5 // pred_check
        %p3622 = pneg %p3621
      $region66: #{forward.1} parent=5 // pred_check_branch
        %3624 = sbr.rel (%p3622) target = $region68
      $region67: #{forward.1} parent=5 // pred_region
        %s3625 = ssub.s32 %s23, 2
        // Predicated region
        $region69: #{forward.1} parent=67 // pred_check
          %p3626 = pneg %p177
        $region70: #{forward.1} parent=67 // pred_check_branch
          %3628 = sbr.rel (%p3626) target = $region72
        $region71: #{forward.1} parent=67 // pred_region
          %s3629 = sand.u32 %s162, 1
          %s3630 = scalar_lea.sflag [#allocation4], %s3629
          %s3631 = sand.u32 %s162, 1
          %s3632 = scalar_lea.vmem [#allocation11], %s3631
          %3633 = dma.done %s3630, 16
        $region72: #{forward.1} parent=67 // pred_fallthru
          _
      $region68: #{forward.1} parent=5 // pred_fallthru
        _
    $region6: #{forward.1} parent=1 // loop_footer
      %s27 = sadd.s32 1, %s23
    $region7: #{forward.1} parent=1 // loop_footer_branch
      %22 = sbr.rel target = $region3
    $region8: #{forward.1} parent=1 // loop_exit
      _
    %3634 = vsyncpa [#allocation3], 1
    %s3635 = scalar_lea.sflag [#allocation3], 1
    %3636 = vsyncpa %s3635, 1
    %3637 = vsyncpa [#allocation6], 1
    %s3638 = scalar_lea.sflag [#allocation6], 1
    %3639 = vsyncpa %s3638, 1
    %3640 = vsyncpa [#allocation9], 1
    %s3641 = scalar_lea.sflag [#allocation9], 1
    %3642 = vsyncpa %s3641, 1
    %3643 = vsyncpa [#allocation4], 1
    %s3644 = scalar_lea.sflag [#allocation4], 1
    %3645 = vsyncpa %s3644, 1

</llo_original>
